<compile_context>
chip_gen: v7x
topology: tpu7x:2x2x1
jax: 0.10.0
libtpu: 0.0.40
codegen_flags: <defaults>
</compile_context>

<pallas_src>
import functools

import jax
import jax.numpy as jnp
from jax.experimental import pallas as pl
from jax.experimental.pallas import tpu as pltpu

_LANES = 128
_MIB = 1024 * 1024


def _round_up(x, m):
    return ((x + m - 1) // m) * m


def _device_kind():
    try:
        return jax.devices()[0].device_kind.lower()
    except Exception:
        return ""


def _vmem_budget_bytes(kind):
    # ~85% of physical VMEM: leaves headroom for Mosaic internal scratch/spill.
    try:
        cap = int(pltpu.get_tpu_info().vmem_capacity_bytes)
    except Exception:
        cap = (64 if "v7" in kind else 128) * _MIB
    return int(0.85 * cap)


def _estimate_vmem_bytes(e_tile, n_pad, hdp, return_attention):
    resident = (n_pad * hdp * 2            # node table (bf16, single-buffered)
                + n_pad * hdp * 4          # f32 accumulator slab (single-buffered)
                + 2 * hdp * _LANES * 4)    # pool + pool_t (f32, single-buffered)
    streamed = (2 * e_tile * hdp * 2       # eft tile (bf16, double-buffered)
                + 2 * e_tile * _LANES * 4  # dst column (int32, lane-padded)
                + 2 * 8 * e_tile * 4)      # dst row (int32, sublane-padded)
    if return_attention:
        streamed += 2 * e_tile * _LANES * 4
    temps = (2 * e_tile * n_pad * 2        # one-hot S and S^T (bf16)
             + 4 * e_tile * hdp * 4        # ft_dst / prod / a_full (f32)
             + e_tile * hdp * 2            # msg (bf16)
             + 4 * e_tile * _LANES * 4)    # sim / exp / attention (f32)
    return resident + streamed + temps


def _magnn_kernel(dst_col_ref, dst_row_ref, node_ref, eft_ref, pool_ref,
                  pool_t_ref, out_ref, a_ref=None, *, num_heads, msg_bf16,
                  approx_recip):
    j = pl.program_id(1)

    # Zero this core's resident accumulator slab on its first edge tile.
    @pl.when(j == 0)
    def _():
        out_ref[...] = jnp.zeros_like(out_ref)

    dst_col = dst_col_ref[...]            # (ET, 1)  int32, edges on sublanes
    dst_row = dst_row_ref[...]            # (1, ET)  int32, edges on lanes
    node = node_ref[...]                  # (Np, HDp) bf16, VMEM-resident
    eft_bf = eft_ref[...]                 # (ET, HDp) bf16 edge features
    pool = pool_ref[...]                  # (HDp, 128) f32: feature lane -> head
    pool_t = pool_t_ref[...]              # (128, HDp) f32: head -> feature lanes

    et = dst_col.shape[0]
    n_pad = node.shape[0]
    hp = pool.shape[1]

    # One-hot destination matrices, each built directly in its matmul's natural
    # orientation (cheap VPU iota+compare) so neither MXU operand needs an XLU
    # transpose.  Padded edges carry dst == n_pad -> all-zero rows/columns.
    lane_node = jax.lax.broadcasted_iota(jnp.int32, (et, n_pad), 1)
    s_mat = (lane_node == dst_col).astype(jnp.bfloat16)            # (ET, Np)
    sub_node = jax.lax.broadcasted_iota(jnp.int32, (n_pad, et), 0)
    s_t = (sub_node == dst_row).astype(jnp.bfloat16)               # (Np, ET)

    # Gather dst node features per edge: ft_dst[e] = node[dst(e)]  (bf16 MXU, f32 acc)
    ft_dst = jax.lax.dot_general(s_mat, node, (((1,), (0,)), ((), ())),
                                 preferred_element_type=jnp.float32)

    eft_f32 = eft_bf.astype(jnp.float32)
    prod = eft_f32 * ft_dst                        # fn.e_mul_v('eft','ft','m')

    # Per-head sum over feature lanes -> sim (ET, H), heads on lanes (padded to 128).
    sim = jax.lax.dot_general(prod, pool, (((1,), (0,)), ((), ())),
                              preferred_element_type=jnp.float32)
    head_pad = jax.lax.broadcasted_iota(jnp.int32, (1, hp), 1) >= num_heads
    sim = sim + jnp.where(head_pad, jnp.float32(-1e30), jnp.float32(0.0))

    # softmax over heads (f32); divide on the EUP via approximate reciprocal.
    m = jnp.max(sim, axis=-1, keepdims=True)
    ex = jnp.exp(sim - m)
    denom = jnp.sum(ex, axis=-1, keepdims=True)
    if approx_recip:
        a = ex * pl.reciprocal(denom, approx=True)
    else:
        a = ex / denom

    # Broadcast each head's attention over its feature lanes, scale edge features.
    a_full = jax.lax.dot_general(a, pool_t, (((1,), (0,)), ((), ())),
                                 preferred_element_type=jnp.float32)   # (ET, HDp)
    if msg_bf16:
        msg = eft_bf * a_full.astype(jnp.bfloat16)       # bf16 VALU (v6e/v7x)
    else:
        msg = (eft_f32 * a_full).astype(jnp.bfloat16)    # f32 VALU (v5e)

    # Scatter-sum messages onto destination nodes: acc += S^T @ msg (bf16 MXU, f32 acc)
    out_ref[0] += jax.lax.dot_general(s_t, msg, (((1,), (0,)), ((), ())),
                                      preferred_element_type=jnp.float32)

    if a_ref is not None:
        a_ref[...] = a[:, :num_heads]                    # exact (ET, H) writeback


def _xla_fallback(node, eft, dst, num_nodes):
    # Pure-XLA segment-sum formulation for graphs where the dense one-hot
    # gather/scatter would burn O(E*N*H*D) MXU flops on zeros or not fit VMEM.
    node = node.astype(jnp.bfloat16).astype(jnp.float32)
    eft = eft.astype(jnp.bfloat16).astype(jnp.float32)
    dst = dst.astype(jnp.int32)
    ft_dst = jnp.take(node, dst, axis=0)
    sim = jnp.sum(eft * ft_dst, axis=-1)
    a = jax.nn.softmax(sim, axis=-1)[..., None]
    msg = eft * a
    v = jnp.zeros((num_nodes,) + eft.shape[1:], jnp.float32).at[dst].add(msg)
    return v, a


def magnn_metapath_specific_forward(node, eft, dst, num_nodes, *, e_tile=None,
                                    core_splits=None, return_attention=True,
                                    msg_bf16=None, approx_reciprocal=True,
                                    max_dense_nodes=None):
    """Pallas forward of MAGNN_metapath_specific (use_minibatch=False path).

    node: (N, H, D) float -- g.ndata['ft']
    eft : (E, H, D) float -- g.edata['eft']
    dst : (E,)      int   -- destination node index of each edge
    Returns v (N, H, D) f32 and, if return_attention, also a (E, H, 1) f32.
    """
    N = int(num_nodes)
    E, H, D = eft.shape

    if E == 0:  # g.number_of_edges() == 0 branch of the module
        v = jnp.zeros((N, H, D), jnp.float32)
        if return_attention:
            return v, jnp.zeros((0, H, 1), jnp.float32)
        return v

    kind = _device_kind()
    is_v5e = ("v5e" in kind) or ("v5 lite" in kind) or ("v5lite" in kind)
    if msg_bf16 is None:
        msg_bf16 = not is_v5e             # v5e has no bf16 VALU -> keep f32 product
    if core_splits is None:
        core_splits = 2 if "v7" in kind else 1   # v7x: one edge shard per TensorCore
    if max_dense_nodes is None:
        max_dense_nodes = 4096 if is_v5e else 16384

    n_align = 256 if ("v6" in kind or "v7" in kind) else 128   # full MXU width
    HD = H * D
    HDp = _round_up(HD, _LANES)           # tail-only lane padding of the H*D axis
    N_pad = _round_up(max(N, 1), n_align)
    budget = _vmem_budget_bytes(kind)

    # TODO(synk): a dst-sorted Pallas segment-sum kernel (scalar-prefetched
    # per-node-tile edge ranges) is the right path for large-N graphs.
    if (N_pad > max_dense_nodes
            or _estimate_vmem_bytes(_LANES, N_pad, HDp, return_attention) > budget):
        v, a = _xla_fallback(node, eft, dst, N)
        return (v, a) if return_attention else v

    if e_tile is None:
        e_tile = 512                      # big tiles amortize accumulator RMW + step overhead
    e_tile = max(_LANES, _round_up(min(int(e_tile), _round_up(E, _LANES)), _LANES))
    while e_tile > _LANES and _estimate_vmem_bytes(e_tile, N_pad, HDp,
                                                   return_attention) > budget:
        e_tile -= _LANES

    n_tiles = _round_up(pl.cdiv(E, e_tile), core_splits)
    tiles_per_split = n_tiles // core_splits
    E_pad = n_tiles * e_tile

    bf16 = jnp.bfloat16
    node_flat = jnp.pad(node.astype(bf16).reshape(N, HD),
                        ((0, N_pad - N), (0, HDp - HD)))
    eft_flat = jnp.pad(eft.astype(bf16).reshape(E, HD),
                       ((0, E_pad - E), (0, HDp - HD)))

    # Padded edges get an out-of-range dst sentinel -> all-zero one-hot row/col.
    dst_pad = jnp.concatenate(
        [dst.astype(jnp.int32), jnp.full((E_pad - E,), N_pad, jnp.int32)])
    dst_col = dst_pad[:, None]            # (E_pad, 1): edges on sublanes (builds S)
    dst_row = dst_pad[None, :]            # (1, E_pad): edges on lanes   (builds S^T)

    # pool[h*D+d, h] = 1 maps flat feature lanes -> heads; pool_t maps back.
    lane = jnp.arange(HDp)
    head_of_lane = jnp.where(lane < HD, lane // D, -1)
    pool = (head_of_lane[:, None] == jnp.arange(_LANES)[None, :]).astype(jnp.float32)
    pool_t = (jnp.arange(_LANES)[:, None] == head_of_lane[None, :]).astype(jnp.float32)

    est = _estimate_vmem_bytes(e_tile, N_pad, HDp, return_attention)
    vmem_limit = int(min(budget, max(32 * _MIB, 2 * est)))

    flops = (4 * E_pad * N_pad * HDp          # one-hot gather + scatter matmuls
             + 4 * E_pad * HDp * _LANES       # sim + attention-broadcast matmuls
             + 6 * E_pad * HDp)               # elementwise
    bytes_accessed = (N_pad * HDp * 2 + E_pad * HDp * 2 + 2 * E_pad * 4
                      + 2 * HDp * _LANES * 4 + core_splits * N_pad * HDp * 4
                      + (E_pad * H * 4 if return_attention else 0))

    kernel = functools.partial(_magnn_kernel, num_heads=H, msg_bf16=bool(msg_bf16),
                               approx_recip=bool(approx_reciprocal))
    edge_block = lambda c, j: (c * tiles_per_split + j, 0)

    def _run(single_buffer):
        def resident(shape, index_map):
            # Grid-invariant blocks: no second pipeline buffer needed.
            if single_buffer:
                return pl.BlockSpec(shape, index_map, pipeline_mode=pl.Buffered(1))
            return pl.BlockSpec(shape, index_map)

        in_specs = [
            pl.BlockSpec((e_tile, 1), edge_block),                            # dst col
            pl.BlockSpec((1, e_tile), lambda c, j: (0, c * tiles_per_split + j)),  # dst row
            resident((N_pad, HDp), lambda c, j: (0, 0)),                      # node table
            pl.BlockSpec((e_tile, HDp), edge_block),                          # eft tile
            resident((HDp, _LANES), lambda c, j: (0, 0)),                     # pool
            resident((_LANES, HDp), lambda c, j: (0, 0)),                     # pool_t
        ]
        acc_spec = resident((1, N_pad, HDp), lambda c, j: (c, 0, 0))
        acc_shape = jax.ShapeDtypeStruct((core_splits, N_pad, HDp), jnp.float32)
        if return_attention:
            out_specs = (acc_spec, pl.BlockSpec((e_tile, H), edge_block))
            out_shape = (acc_shape, jax.ShapeDtypeStruct((E_pad, H), jnp.float32))
        else:
            out_specs, out_shape = acc_spec, acc_shape

        return pl.pallas_call(
            kernel,
            grid=(core_splits, tiles_per_split),
            in_specs=in_specs,
            out_specs=out_specs,
            out_shape=out_shape,
            compiler_params=pltpu.CompilerParams(
                dimension_semantics=("parallel", "arbitrary"),
                vmem_limit_bytes=vmem_limit),
            cost_estimate=pl.CostEstimate(
                flops=int(flops), transcendentals=int(E_pad * _LANES),
                bytes_accessed=int(bytes_accessed)),
        )(dst_col, dst_row, node_flat, eft_flat, pool, pool_t)

    try:
        result = _run(single_buffer=True)
    except Exception:
        # TODO(synk): pipeline_mode=pl.Buffered(1) unsupported in this JAX build;
        # rerun with default double-buffered resident blocks.
        result = _run(single_buffer=False)

    if return_attention:
        acc, a_pad = result
    else:
        acc, a_pad = result, None

    v = acc.sum(axis=0)[:N, :HD].reshape(N, H, D)   # sum per-core slabs, strip pad
    if return_attention:
        return v, a_pad[:E, :, None]
    return v


def minibatch_head(v, a, target_idx):
    # Glue for the use_minibatch=True return path:
    #   F.normalize(v[target_idx] + 1e-15, 2)  (L2 normalize over dim=1 = heads)
    vt = v[target_idx] + 1e-15
    norm = jnp.sqrt(jnp.sum(vt * vt, axis=1, keepdims=True))
    return vt / jnp.maximum(norm, 1e-12), a


def _reference(node, eft, dst, num_nodes):
    # Mirrors the kernel's bf16 storage of node/eft; everything else f32.
    node = node.astype(jnp.bfloat16).astype(jnp.float32)
    eft = eft.astype(jnp.bfloat16).astype(jnp.float32)
    ft_dst = node[dst]                                  # (E, H, D)
    sim = jnp.sum(eft * ft_dst, axis=-1)                # (E, H)
    a = jax.nn.softmax(sim, axis=-1)[..., None]         # (E, H, 1)
    msg = eft * a
    out = jnp.zeros((num_nodes,) + eft.shape[1:], jnp.float32).at[dst].add(msg)
    return out, a


if __name__ == "__main__":
    # Small synthetic "graph": N nodes, E edges, H heads, D out_dim.
    num_heads, out_dim = 4, 8
    N, E = 8, 16

    key = jax.random.PRNGKey(0)
    k1, k2, k3 = jax.random.split(key, 3)
    node = jax.random.normal(k1, (N, num_heads, out_dim), dtype=jnp.float32)
    eft = jax.random.normal(k2, (E, num_heads, out_dim), dtype=jnp.float32)
    dst = jax.random.randint(k3, (E,), 0, N, dtype=jnp.int32)

    v_ref, a_ref = _reference(node, eft, dst, N)

    # 1) Default configuration (auto core split / tile size / VMEM budget).
    v, a = magnn_metapath_specific_forward(node, eft, dst, N)
    jax.block_until_ready((v, a))
    assert v.shape == (N, num_heads, out_dim) and a.shape == (E, num_heads, 1)
    assert jnp.allclose(v, v_ref, atol=3e-2, rtol=3e-2), "v mismatch (default)"
    assert jnp.allclose(a, a_ref, atol=1e-2, rtol=1e-2), "a mismatch (default)"

    # 2) Explicit two-way core split (per-core accumulator slabs; parallel on v7x,
    #    sequential but still correct on single-TensorCore chips).
    v2, a2 = magnn_metapath_specific_forward(node, eft, dst, N,
                                             e_tile=128, core_splits=2)
    jax.block_until_ready((v2, a2))
    assert jnp.allclose(v2, v_ref, atol=3e-2, rtol=3e-2), "v mismatch (2-core)"
    assert jnp.allclose(a2, a_ref, atol=1e-2, rtol=1e-2), "a mismatch (2-core)"

    # 3) Attention-free path (the module's non-minibatch forward returns only v).
    v3 = magnn_metapath_specific_forward(node, eft, dst, N, return_attention=False)
    jax.block_until_ready(v3)
    assert jnp.allclose(v3, v_ref, atol=3e-2, rtol=3e-2), "v mismatch (no-attn)"

    # TODO(synk): DGL graph construction itself has no Pallas equivalent; the graph
    # is represented by the explicit dst-index array consumed by the kernel.
    print("KERNEL_OK")
</pallas_src>

<mosaic_0001>
module attributes {stable_mosaic.version = 11 : i64} {
  func.func @_magnn_kernel(%arg0: i32, %arg1: i32, %arg2: memref<128x1xi32, #tpu.memory_space<vmem>>, %arg3: memref<1x128xi32, #tpu.memory_space<vmem>>, %arg4: memref<128x128xbf16, #tpu.memory_space<vmem>>, %arg5: memref<128x128xbf16, #tpu.memory_space<vmem>>, %arg6: memref<128x128xf32, #tpu.memory_space<vmem>>, %arg7: memref<128x128xf32, #tpu.memory_space<vmem>>, %arg8: memref<1x128x128xf32, #tpu.memory_space<vmem>>, %arg9: memref<128x4xf32, #tpu.memory_space<vmem>>) attributes {dimension_semantics = [#tpu.dimension_semantics<parallel>, #tpu.dimension_semantics<arbitrary>], iteration_bounds = array<i64: 1, 1>, scalar_prefetch = 0 : i64, scratch_operands = 0 : i64, tpu.core_type = #tpu.core_type<tc>, window_params = [{transform_indices = @transform_0, window_bounds = array<i64: 128, 1>}, {transform_indices = @transform_1, window_bounds = array<i64: 1, 128>}, {pipeline_mode = #tpu.pipeline_mode<synchronous>, transform_indices = @transform_2, window_bounds = array<i64: 128, 128>}, {transform_indices = @transform_3, window_bounds = array<i64: 128, 128>}, {pipeline_mode = #tpu.pipeline_mode<synchronous>, transform_indices = @transform_4, window_bounds = array<i64: 128, 128>}, {pipeline_mode = #tpu.pipeline_mode<synchronous>, transform_indices = @transform_5, window_bounds = array<i64: 128, 128>}, {pipeline_mode = #tpu.pipeline_mode<synchronous>, transform_indices = @transform_6, window_bounds = array<i64: 1, 128, 128>}, {transform_indices = @transform_7, window_bounds = array<i64: 128, 4>}]} {
    %c0_i32 = arith.constant 0 : i32
    %0 = arith.cmpi eq, %arg1, %c0_i32 : i32
    %1 = arith.extui %0 : i1 to i32
    %c0_i32_0 = arith.constant 0 : i32
    %2 = arith.cmpi ne, %1, %c0_i32_0 : i32
    scf.if %2 {
      %cst_27 = arith.constant 0.000000e+00 : f32
      %55 = vector.broadcast %cst_27 : f32 to vector<1x128x128xf32>
      %c0_28 = arith.constant 0 : index
      %c0_29 = arith.constant 0 : index
      %c0_30 = arith.constant 0 : index
      %56 = vector.load %arg8[%c0_28, %c0_29, %c0_30] : memref<1x128x128xf32, #tpu.memory_space<vmem>>, vector<1x128x128xf32>
      tpu.vector_store %arg8[%c0_28, %c0_29, %c0_30], %55 {strides = array<i32>} : memref<1x128x128xf32, #tpu.memory_space<vmem>>, vector<1x128x128xf32>,
    } else {
    }
    %c0 = arith.constant 0 : index
    %c0_1 = arith.constant 0 : index
    %3 = vector.load %arg2[%c0, %c0_1] : memref<128x1xi32, #tpu.memory_space<vmem>>, vector<128x1xi32>
    %c0_2 = arith.constant 0 : index
    %c0_3 = arith.constant 0 : index
    %4 = vector.load %arg3[%c0_2, %c0_3] : memref<1x128xi32, #tpu.memory_space<vmem>>, vector<1x128xi32>
    %c0_4 = arith.constant 0 : index
    %c0_5 = arith.constant 0 : index
    %5 = vector.load %arg4[%c0_4, %c0_5] : memref<128x128xbf16, #tpu.memory_space<vmem>>, vector<128x128xbf16>
    %c0_6 = arith.constant 0 : index
    %c0_7 = arith.constant 0 : index
    %6 = vector.load %arg5[%c0_6, %c0_7] : memref<128x128xbf16, #tpu.memory_space<vmem>>, vector<128x128xbf16>
    %c0_8 = arith.constant 0 : index
    %c0_9 = arith.constant 0 : index
    %7 = vector.load %arg6[%c0_8, %c0_9] : memref<128x128xf32, #tpu.memory_space<vmem>>, vector<128x128xf32>
    %c0_10 = arith.constant 0 : index
    %c0_11 = arith.constant 0 : index
    %8 = vector.load %arg7[%c0_10, %c0_11] : memref<128x128xf32, #tpu.memory_space<vmem>>, vector<128x128xf32>
    %9 = tpu.iota {dimensions = array<i32: 1>} : vector<128x128xi32>
    %10 = vector.broadcast %3 : vector<128x1xi32> to vector<128x128xi32>
    %11 = arith.cmpi eq, %9, %10 : vector<128x128xi32>
    %12 = arith.extui %11 : vector<128x128xi1> to vector<128x128xi32>
    %13 = arith.sitofp %12 : vector<128x128xi32> to vector<128x128xf32>
    %14 = arith.truncf %13 : vector<128x128xf32> to vector<128x128xbf16>
    %15 = tpu.iota {dimensions = array<i32: 0>} : vector<128x128xi32>
    %16 = vector.broadcast %4 : vector<1x128xi32> to vector<128x128xi32>
    %17 = arith.cmpi eq, %15, %16 : vector<128x128xi32>
    %18 = arith.extui %17 : vector<128x128xi1> to vector<128x128xi32>
    %19 = arith.sitofp %18 : vector<128x128xi32> to vector<128x128xf32>
    %20 = arith.truncf %19 : vector<128x128xf32> to vector<128x128xbf16>
    %cst = arith.constant dense<0.000000e+00> : vector<128x128xf32>
    %21 = tpu.matmul %14, %5, %cst {dimension_numbers = #tpu.dot_dimension_numbers<[1], [0], [0], [1], [0, 0, 1, 1], [], []>} : vector<128x128xbf16>, vector<128x128xbf16>, vector<128x128xf32> -> vector<128x128xf32>
    %22 = arith.extf %6 : vector<128x128xbf16> to vector<128x128xf32>
    %23 = arith.mulf %22, %21 : vector<128x128xf32>
    %cst_12 = arith.constant dense<0.000000e+00> : vector<128x128xf32>
    %24 = tpu.matmul %23, %7, %cst_12 {dimension_numbers = #tpu.dot_dimension_numbers<[1], [0], [0], [1], [0, 0, 1, 1], [], []>} : vector<128x128xf32>, vector<128x128xf32>, vector<128x128xf32> -> vector<128x128xf32>
    %25 = tpu.iota {dimensions = array<i32: 1>} : vector<1x128xi32>
    %c4_i32 = arith.constant 4 : i32
    %26 = vector.broadcast %c4_i32 : i32 to vector<1x128xi32>
    %27 = arith.cmpi sge, %25, %26 : vector<1x128xi32>
    %cst_13 = arith.constant -1.000000e+30 : f32
    %cst_14 = arith.constant 0.000000e+00 : f32
    %28 = vector.broadcast %cst_13 : f32 to vector<1x128xf32>
    %29 = vector.broadcast %cst_14 : f32 to vector<1x128xf32>
    %30 = arith.select %27, %28, %29 : vector<1x128xi1>, vector<1x128xf32>
    %31 = vector.broadcast %30 : vector<1x128xf32> to vector<128x128xf32>
    %32 = arith.addf %24, %31 : vector<128x128xf32>
    %cst_15 = arith.constant dense<0xFF800000> : vector<128xf32>
    %33 = vector.multi_reduction <maximumf>, %32, %cst_15 [1] : vector<128x128xf32> to vector<128xf32>
    %34 = vector.shape_cast %33 : vector<128xf32> to vector<128x1xf32>
    %35 = vector.broadcast %34 : vector<128x1xf32> to vector<128x128xf32>
    %36 = arith.subf %32, %35 : vector<128x128xf32>
    %37 = math.exp %36 : vector<128x128xf32>
    %cst_16 = arith.constant dense<0.000000e+00> : vector<128xf32>
    %38 = vector.multi_reduction <add>, %37, %cst_16 [1] : vector<128x128xf32> to vector<128xf32>
    %39 = vector.shape_cast %38 : vector<128xf32> to vector<128x1xf32>
    %40 = tpu.reciprocal %39 {approx = true} : vector<128x1xf32> -> vector<128x1xf32>
    %41 = vector.broadcast %40 : vector<128x1xf32> to vector<128x128xf32>
    %42 = arith.mulf %37, %41 : vector<128x128xf32>
    %cst_17 = arith.constant dense<0.000000e+00> : vector<128x128xf32>
    %43 = tpu.matmul %42, %8, %cst_17 {dimension_numbers = #tpu.dot_dimension_numbers<[1], [0], [0], [1], [0, 0, 1, 1], [], []>} : vector<128x128xf32>, vector<128x128xf32>, vector<128x128xf32> -> vector<128x128xf32>
    %44 = arith.truncf %43 : vector<128x128xf32> to vector<128x128xbf16>
    %45 = arith.mulf %6, %44 : vector<128x128xbf16>
    %c0_18 = arith.constant 0 : index
    %c0_19 = arith.constant 0 : index
    %c0_20 = arith.constant 0 : index
    %46 = vector.load %arg8[%c0_18, %c0_19, %c0_20] : memref<1x128x128xf32, #tpu.memory_space<vmem>>, vector<1x128x128xf32>
    %47 = vector.shape_cast %46 : vector<1x128x128xf32> to vector<128x128xf32>
    %cst_21 = arith.constant dense<0.000000e+00> : vector<128x128xf32>
    %48 = tpu.matmul %20, %45, %cst_21 {dimension_numbers = #tpu.dot_dimension_numbers<[1], [0], [0], [1], [0, 0, 1, 1], [], []>} : vector<128x128xbf16>, vector<128x128xbf16>, vector<128x128xf32> -> vector<128x128xf32>
    %49 = arith.addf %47, %48 : vector<128x128xf32>
    %c0_22 = arith.constant 0 : index
    %c0_23 = arith.constant 0 : index
    %c0_24 = arith.constant 0 : index
    %50 = vector.load %arg8[%c0_22, %c0_23, %c0_24] : memref<1x128x128xf32, #tpu.memory_space<vmem>>, vector<1x128x128xf32>
    %51 = vector.shape_cast %50 : vector<1x128x128xf32> to vector<128x128xf32>
    %52 = vector.shape_cast %49 : vector<128x128xf32> to vector<1x128x128xf32>
    tpu.vector_store %arg8[%c0_22, %c0_23, %c0_24], %52 {strides = array<i32>} : memref<1x128x128xf32, #tpu.memory_space<vmem>>, vector<1x128x128xf32>,
    %53 = vector.extract_strided_slice %42 {offsets = [0, 0], sizes = [128, 4], strides = [1, 1]} : vector<128x128xf32> to vector<128x4xf32>
    %c0_25 = arith.constant 0 : index
    %c0_26 = arith.constant 0 : index
    %54 = vector.load %arg9[%c0_25, %c0_26] : memref<128x4xf32, #tpu.memory_space<vmem>>, vector<128x4xf32>
    tpu.vector_store %arg9[%c0_25, %c0_26], %53 {strides = array<i32>} : memref<128x4xf32, #tpu.memory_space<vmem>>, vector<128x4xf32>,
    return
  }
  func.func @transform_0(%arg0: i32, %arg1: i32) -> (i32, i32) {
    %c1_i32 = arith.constant 1 : i32
    %0 = arith.muli %arg0, %c1_i32 : i32
    %1 = arith.addi %0, %arg1 : i32
    %c0_i32 = arith.constant 0 : i32
    %c0_i32_0 = arith.constant 0 : i32
    return %1, %c0_i32 : i32, i32
  }
  func.func @transform_1(%arg0: i32, %arg1: i32) -> (i32, i32) {
    %c1_i32 = arith.constant 1 : i32
    %0 = arith.muli %arg0, %c1_i32 : i32
    %1 = arith.addi %0, %arg1 : i32
    %c0_i32 = arith.constant 0 : i32
    %c0_i32_0 = arith.constant 0 : i32
    return %c0_i32, %1 : i32, i32
  }
  func.func @transform_2(%arg0: i32, %arg1: i32) -> (i32, i32) {
    %c0_i32 = arith.constant 0 : i32
    %c0_i32_0 = arith.constant 0 : i32
    %c0_i32_1 = arith.constant 0 : i32
    return %c0_i32, %c0_i32_0 : i32, i32
  }
  func.func @transform_3(%arg0: i32, %arg1: i32) -> (i32, i32) {
    %c1_i32 = arith.constant 1 : i32
    %0 = arith.muli %arg0, %c1_i32 : i32
    %1 = arith.addi %0, %arg1 : i32
    %c0_i32 = arith.constant 0 : i32
    %c0_i32_0 = arith.constant 0 : i32
    return %1, %c0_i32 : i32, i32
  }
  func.func @transform_4(%arg0: i32, %arg1: i32) -> (i32, i32) {
    %c0_i32 = arith.constant 0 : i32
    %c0_i32_0 = arith.constant 0 : i32
    %c0_i32_1 = arith.constant 0 : i32
    return %c0_i32, %c0_i32_0 : i32, i32
  }
  func.func @transform_5(%arg0: i32, %arg1: i32) -> (i32, i32) {
    %c0_i32 = arith.constant 0 : i32
    %c0_i32_0 = arith.constant 0 : i32
    %c0_i32_1 = arith.constant 0 : i32
    return %c0_i32, %c0_i32_0 : i32, i32
  }
  func.func @transform_6(%arg0: i32, %arg1: i32) -> (i32, i32, i32) {
    %c0_i32 = arith.constant 0 : i32
    %c0_i32_0 = arith.constant 0 : i32
    %c0_i32_1 = arith.constant 0 : i32
    return %arg0, %c0_i32, %c0_i32_0 : i32, i32, i32
  }
  func.func @transform_7(%arg0: i32, %arg1: i32) -> (i32, i32) {
    %c1_i32 = arith.constant 1 : i32
    %0 = arith.muli %arg0, %c1_i32 : i32
    %1 = arith.addi %0, %arg1 : i32
    %c0_i32 = arith.constant 0 : i32
    %c0_i32_0 = arith.constant 0 : i32
    return %1, %c0_i32 : i32, i32
  }
}

module attributes {stable_mosaic.version = 11 : i64} {
  func.func @_magnn_kernel(%arg0: i32, %arg1: i32, %arg2: memref<128x1xi32, #tpu.memory_space<vmem>>, %arg3: memref<1x128xi32, #tpu.memory_space<vmem>>, %arg4: memref<128x128xbf16, #tpu.memory_space<vmem>>, %arg5: memref<128x128xbf16, #tpu.memory_space<vmem>>, %arg6: memref<128x128xf32, #tpu.memory_space<vmem>>, %arg7: memref<128x128xf32, #tpu.memory_space<vmem>>, %arg8: memref<1x128x128xf32, #tpu.memory_space<vmem>>, %arg9: memref<128x4xf32, #tpu.memory_space<vmem>>) attributes {dimension_semantics = [#tpu.dimension_semantics<parallel>, #tpu.dimension_semantics<arbitrary>], iteration_bounds = array<i64: 1, 1>, scalar_prefetch = 0 : i64, scratch_operands = 0 : i64, tpu.core_type = #tpu.core_type<tc>, window_params = [{transform_indices = @transform_0, window_bounds = array<i64: 128, 1>}, {transform_indices = @transform_1, window_bounds = array<i64: 1, 128>}, {pipeline_mode = #tpu.pipeline_mode<synchronous>, transform_indices = @transform_2, window_bounds = array<i64: 128, 128>}, {transform_indices = @transform_3, window_bounds = array<i64: 128, 128>}, {pipeline_mode = #tpu.pipeline_mode<synchronous>, transform_indices = @transform_4, window_bounds = array<i64: 128, 128>}, {pipeline_mode = #tpu.pipeline_mode<synchronous>, transform_indices = @transform_5, window_bounds = array<i64: 128, 128>}, {transform_indices = @transform_6, window_bounds = array<i64: 1, 128, 128>}, {transform_indices = @transform_7, window_bounds = array<i64: 128, 4>}]} {
    %c0_i32 = arith.constant 0 : i32
    %0 = arith.cmpi eq, %arg1, %c0_i32 : i32
    %1 = arith.extui %0 : i1 to i32
    %c0_i32_0 = arith.constant 0 : i32
    %2 = arith.cmpi ne, %1, %c0_i32_0 : i32
    scf.if %2 {
      %cst_27 = arith.constant 0.000000e+00 : f32
      %55 = vector.broadcast %cst_27 : f32 to vector<1x128x128xf32>
      %c0_28 = arith.constant 0 : index
      %c0_29 = arith.constant 0 : index
      %c0_30 = arith.constant 0 : index
      %56 = vector.load %arg8[%c0_28, %c0_29, %c0_30] : memref<1x128x128xf32, #tpu.memory_space<vmem>>, vector<1x128x128xf32>
      tpu.vector_store %arg8[%c0_28, %c0_29, %c0_30], %55 {strides = array<i32>} : memref<1x128x128xf32, #tpu.memory_space<vmem>>, vector<1x128x128xf32>,
    } else {
    }
    %c0 = arith.constant 0 : index
    %c0_1 = arith.constant 0 : index
    %3 = vector.load %arg2[%c0, %c0_1] : memref<128x1xi32, #tpu.memory_space<vmem>>, vector<128x1xi32>
    %c0_2 = arith.constant 0 : index
    %c0_3 = arith.constant 0 : index
    %4 = vector.load %arg3[%c0_2, %c0_3] : memref<1x128xi32, #tpu.memory_space<vmem>>, vector<1x128xi32>
    %c0_4 = arith.constant 0 : index
    %c0_5 = arith.constant 0 : index
    %5 = vector.load %arg4[%c0_4, %c0_5] : memref<128x128xbf16, #tpu.memory_space<vmem>>, vector<128x128xbf16>
    %c0_6 = arith.constant 0 : index
    %c0_7 = arith.constant 0 : index
    %6 = vector.load %arg5[%c0_6, %c0_7] : memref<128x128xbf16, #tpu.memory_space<vmem>>, vector<128x128xbf16>
    %c0_8 = arith.constant 0 : index
    %c0_9 = arith.constant 0 : index
    %7 = vector.load %arg6[%c0_8, %c0_9] : memref<128x128xf32, #tpu.memory_space<vmem>>, vector<128x128xf32>
    %c0_10 = arith.constant 0 : index
    %c0_11 = arith.constant 0 : index
    %8 = vector.load %arg7[%c0_10, %c0_11] : memref<128x128xf32, #tpu.memory_space<vmem>>, vector<128x128xf32>
    %9 = tpu.iota {dimensions = array<i32: 1>} : vector<128x128xi32>
    %10 = vector.broadcast %3 : vector<128x1xi32> to vector<128x128xi32>
    %11 = arith.cmpi eq, %9, %10 : vector<128x128xi32>
    %12 = arith.extui %11 : vector<128x128xi1> to vector<128x128xi32>
    %13 = arith.sitofp %12 : vector<128x128xi32> to vector<128x128xf32>
    %14 = arith.truncf %13 : vector<128x128xf32> to vector<128x128xbf16>
    %15 = tpu.iota {dimensions = array<i32: 0>} : vector<128x128xi32>
    %16 = vector.broadcast %4 : vector<1x128xi32> to vector<128x128xi32>
    %17 = arith.cmpi eq, %15, %16 : vector<128x128xi32>
    %18 = arith.extui %17 : vector<128x128xi1> to vector<128x128xi32>
    %19 = arith.sitofp %18 : vector<128x128xi32> to vector<128x128xf32>
    %20 = arith.truncf %19 : vector<128x128xf32> to vector<128x128xbf16>
    %cst = arith.constant dense<0.000000e+00> : vector<128x128xf32>
    %21 = tpu.matmul %14, %5, %cst {dimension_numbers = #tpu.dot_dimension_numbers<[1], [0], [0], [1], [0, 0, 1, 1], [], []>} : vector<128x128xbf16>, vector<128x128xbf16>, vector<128x128xf32> -> vector<128x128xf32>
    %22 = arith.extf %6 : vector<128x128xbf16> to vector<128x128xf32>
    %23 = arith.mulf %22, %21 : vector<128x128xf32>
    %cst_12 = arith.constant dense<0.000000e+00> : vector<128x128xf32>
    %24 = tpu.matmul %23, %7, %cst_12 {dimension_numbers = #tpu.dot_dimension_numbers<[1], [0], [0], [1], [0, 0, 1, 1], [], []>} : vector<128x128xf32>, vector<128x128xf32>, vector<128x128xf32> -> vector<128x128xf32>
    %25 = tpu.iota {dimensions = array<i32: 1>} : vector<1x128xi32>
    %c4_i32 = arith.constant 4 : i32
    %26 = vector.broadcast %c4_i32 : i32 to vector<1x128xi32>
    %27 = arith.cmpi sge, %25, %26 : vector<1x128xi32>
    %cst_13 = arith.constant -1.000000e+30 : f32
    %cst_14 = arith.constant 0.000000e+00 : f32
    %28 = vector.broadcast %cst_13 : f32 to vector<1x128xf32>
    %29 = vector.broadcast %cst_14 : f32 to vector<1x128xf32>
    %30 = arith.select %27, %28, %29 : vector<1x128xi1>, vector<1x128xf32>
    %31 = vector.broadcast %30 : vector<1x128xf32> to vector<128x128xf32>
    %32 = arith.addf %24, %31 : vector<128x128xf32>
    %cst_15 = arith.constant dense<0xFF800000> : vector<128xf32>
    %33 = vector.multi_reduction <maximumf>, %32, %cst_15 [1] : vector<128x128xf32> to vector<128xf32>
    %34 = vector.shape_cast %33 : vector<128xf32> to vector<128x1xf32>
    %35 = vector.broadcast %34 : vector<128x1xf32> to vector<128x128xf32>
    %36 = arith.subf %32, %35 : vector<128x128xf32>
    %37 = math.exp %36 : vector<128x128xf32>
    %cst_16 = arith.constant dense<0.000000e+00> : vector<128xf32>
    %38 = vector.multi_reduction <add>, %37, %cst_16 [1] : vector<128x128xf32> to vector<128xf32>
    %39 = vector.shape_cast %38 : vector<128xf32> to vector<128x1xf32>
    %40 = tpu.reciprocal %39 {approx = true} : vector<128x1xf32> -> vector<128x1xf32>
    %41 = vector.broadcast %40 : vector<128x1xf32> to vector<128x128xf32>
    %42 = arith.mulf %37, %41 : vector<128x128xf32>
    %cst_17 = arith.constant dense<0.000000e+00> : vector<128x128xf32>
    %43 = tpu.matmul %42, %8, %cst_17 {dimension_numbers = #tpu.dot_dimension_numbers<[1], [0], [0], [1], [0, 0, 1, 1], [], []>} : vector<128x128xf32>, vector<128x128xf32>, vector<128x128xf32> -> vector<128x128xf32>
    %44 = arith.truncf %43 : vector<128x128xf32> to vector<128x128xbf16>
    %45 = arith.mulf %6, %44 : vector<128x128xbf16>
    %c0_18 = arith.constant 0 : index
    %c0_19 = arith.constant 0 : index
    %c0_20 = arith.constant 0 : index
    %46 = vector.load %arg8[%c0_18, %c0_19, %c0_20] : memref<1x128x128xf32, #tpu.memory_space<vmem>>, vector<1x128x128xf32>
    %47 = vector.shape_cast %46 : vector<1x128x128xf32> to vector<128x128xf32>
    %cst_21 = arith.constant dense<0.000000e+00> : vector<128x128xf32>
    %48 = tpu.matmul %20, %45, %cst_21 {dimension_numbers = #tpu.dot_dimension_numbers<[1], [0], [0], [1], [0, 0, 1, 1], [], []>} : vector<128x128xbf16>, vector<128x128xbf16>, vector<128x128xf32> -> vector<128x128xf32>
    %49 = arith.addf %47, %48 : vector<128x128xf32>
    %c0_22 = arith.constant 0 : index
    %c0_23 = arith.constant 0 : index
    %c0_24 = arith.constant 0 : index
    %50 = vector.load %arg8[%c0_22, %c0_23, %c0_24] : memref<1x128x128xf32, #tpu.memory_space<vmem>>, vector<1x128x128xf32>
    %51 = vector.shape_cast %50 : vector<1x128x128xf32> to vector<128x128xf32>
    %52 = vector.shape_cast %49 : vector<128x128xf32> to vector<1x128x128xf32>
    tpu.vector_store %arg8[%c0_22, %c0_23, %c0_24], %52 {strides = array<i32>} : memref<1x128x128xf32, #tpu.memory_space<vmem>>, vector<1x128x128xf32>,
    %53 = vector.extract_strided_slice %42 {offsets = [0, 0], sizes = [128, 4], strides = [1, 1]} : vector<128x128xf32> to vector<128x4xf32>
    %c0_25 = arith.constant 0 : index
    %c0_26 = arith.constant 0 : index
    %54 = vector.load %arg9[%c0_25, %c0_26] : memref<128x4xf32, #tpu.memory_space<vmem>>, vector<128x4xf32>
    tpu.vector_store %arg9[%c0_25, %c0_26], %53 {strides = array<i32>} : memref<128x4xf32, #tpu.memory_space<vmem>>, vector<128x4xf32>,
    return
  }
  func.func @transform_0(%arg0: i32, %arg1: i32) -> (i32, i32) {
    %c1_i32 = arith.constant 1 : i32
    %0 = arith.muli %arg0, %c1_i32 : i32
    %1 = arith.addi %0, %arg1 : i32
    %c0_i32 = arith.constant 0 : i32
    %c0_i32_0 = arith.constant 0 : i32
    return %1, %c0_i32 : i32, i32
  }
  func.func @transform_1(%arg0: i32, %arg1: i32) -> (i32, i32) {
    %c1_i32 = arith.constant 1 : i32
    %0 = arith.muli %arg0, %c1_i32 : i32
    %1 = arith.addi %0, %arg1 : i32
    %c0_i32 = arith.constant 0 : i32
    %c0_i32_0 = arith.constant 0 : i32
    return %c0_i32, %1 : i32, i32
  }
  func.func @transform_2(%arg0: i32, %arg1: i32) -> (i32, i32) {
    %c0_i32 = arith.constant 0 : i32
    %c0_i32_0 = arith.constant 0 : i32
    %c0_i32_1 = arith.constant 0 : i32
    return %c0_i32, %c0_i32_0 : i32, i32
  }
  func.func @transform_3(%arg0: i32, %arg1: i32) -> (i32, i32) {
    %c1_i32 = arith.constant 1 : i32
    %0 = arith.muli %arg0, %c1_i32 : i32
    %1 = arith.addi %0, %arg1 : i32
    %c0_i32 = arith.constant 0 : i32
    %c0_i32_0 = arith.constant 0 : i32
    return %1, %c0_i32 : i32, i32
  }
  func.func @transform_4(%arg0: i32, %arg1: i32) -> (i32, i32) {
    %c0_i32 = arith.constant 0 : i32
    %c0_i32_0 = arith.constant 0 : i32
    %c0_i32_1 = arith.constant 0 : i32
    return %c0_i32, %c0_i32_0 : i32, i32
  }
  func.func @transform_5(%arg0: i32, %arg1: i32) -> (i32, i32) {
    %c0_i32 = arith.constant 0 : i32
    %c0_i32_0 = arith.constant 0 : i32
    %c0_i32_1 = arith.constant 0 : i32
    return %c0_i32, %c0_i32_0 : i32, i32
  }
  func.func @transform_6(%arg0: i32, %arg1: i32) -> (i32, i32, i32) {
    %c0_i32 = arith.constant 0 : i32
    %c0_i32_0 = arith.constant 0 : i32
    %c0_i32_1 = arith.constant 0 : i32
    return %arg0, %c0_i32, %c0_i32_0 : i32, i32, i32
  }
  func.func @transform_7(%arg0: i32, %arg1: i32) -> (i32, i32) {
    %c1_i32 = arith.constant 1 : i32
    %0 = arith.muli %arg0, %c1_i32 : i32
    %1 = arith.addi %0, %arg1 : i32
    %c0_i32 = arith.constant 0 : i32
    %c0_i32_0 = arith.constant 0 : i32
    return %1, %c0_i32 : i32, i32
  }
}

</mosaic_0001>

<llo_original>
// kernel: tpu_custom_call.1
$region0: #{tpu_custom_call.1}
  #allocation0 [shape = 'u32[]', space=smem, size = 0x4, offset = 0x4, fixed_abs, tag = 'smem constant byte address 0x4 - core index']
  #allocation1 [shape = 'u32[144,128]{1,0:T(1,128)}', space=vmem, size = 0x12000, scoped, tag = 'internal scratch']
  %s0 = inlined_call_operand.vmem [shape: s32[128,1], index: 0, kind: input, shape index: {}]
  %s1 = inlined_call_operand.vmem [shape: s32[1,128], index: 1, kind: input, shape index: {}]
  %s2 = inlined_call_operand.hbm [shape: bf16[128,128], index: 2, kind: input, shape index: {}]
  %s3 = inlined_call_operand.hbm [shape: bf16[128,128], index: 3, kind: input, shape index: {}]
  %s4 = inlined_call_operand.vmem [shape: f32[128,128], index: 4, kind: input, shape index: {}]
  %s5 = inlined_call_operand.hbm [shape: f32[128,128], index: 5, kind: input, shape index: {}]
  %s6 = inlined_call_operand.hbm [shape: f32[1,128,128], index: 6, kind: output, shape index: {0}]
  %s7 = inlined_call_operand.vmem [shape: f32[128,4], index: 7, kind: output, shape index: {1}]
  %8 = xla_tuple %s6, %s7
  %s9 = sld [smem:[#allocation0]]
  $region58: #{tpu_custom_call.1} parent=0
    _
  %s11 = ssub.s32 1, %s9
  %s12 = scalar_select 0, %s11, %s9
  $region1: #{tpu_custom_call.1} parent=0
    #allocation2 [shape = 'u8[32768]{0}', space=vmem, size = 0x8000, scoped, tag = 'input window, operand 2, single buffered']
    #allocation3 [shape = 's32[1]{0}', space=sflag, size = 0x4, scoped, tag = 'scoped memory for tpu_custom_call.1']
    #allocation4 [shape = 's32[1]{0}', space=sflag, size = 0x4, scoped, tag = 'scoped memory for tpu_custom_call.1']
    #allocation5 [shape = 'u8[32768]{0}', space=vmem, size = 0x8000, scoped, tag = 'input window, operand 3, single buffered']
    #allocation6 [shape = 's32[1]{0}', space=sflag, size = 0x4, scoped, tag = 'scoped memory for tpu_custom_call.1']
    #allocation7 [shape = 'u8[65536]{0}', space=vmem, size = 0x10000, scoped, tag = 'input window, operand 5, single buffered']
    #allocation8 [shape = 'u8[65536]{0}', space=vmem, size = 0x10000, scoped, tag = 'output window, operand 0, single buffered']
    %13 = vsyncpa [#allocation3], 0
    %14 = vsyncpa [#allocation6], 0
    %15 = vsyncpa [#allocation4], 0
    // Predicated region
    $region2: #{tpu_custom_call.1} parent=1 // pred_check
      _
    $region3: #{tpu_custom_call.1} parent=1 // pred_check_branch
      %17 = sbr.rel (0) target = $region5
    $region4: #{tpu_custom_call.1} parent=1 // pred_region
      %s18 = sadd.s32 0, 0
      %s19 = smul.u32 16, %s18
      %p20 = scmp.lt.s32.totalorder %s19, 15
      %s21 = scalar_select %p20, %s19, 15
      %s22 = smul.addr %s21, 8
      %s23 = scalar_lea.vmem %s0, %s22
      %s24 = sadd.s32 0, 0
      %s25 = smul.u32 16, %s24
    $region5: #{tpu_custom_call.1} parent=1 // pred_fallthru
      _
    // Predicated region
    $region6: #{tpu_custom_call.1} parent=1 // pred_check
      _
    $region7: #{tpu_custom_call.1} parent=1 // pred_check_branch
      %27 = sbr.rel (0) target = $region9
    $region8: #{tpu_custom_call.1} parent=1 // pred_region
      %s28 = sadd.s32 0, 0
      %p29 = scmp.lt.s32.totalorder %s28, 0
      %s30 = scalar_select %p29, %s28, 0
      %s31 = scalar_lea.vmem %s1, %s30
      %s32 = sadd.s32 0, 0
    $region9: #{tpu_custom_call.1} parent=1 // pred_fallthru
      _
    // Predicated region
    $region10: #{tpu_custom_call.1} parent=1 // pred_check
      _
    $region11: #{tpu_custom_call.1} parent=1 // pred_check_branch
      %34 = sbr.rel (0) target = $region13
    $region12: #{tpu_custom_call.1} parent=1 // pred_region
      %s36 = ssub.s32 1024, 1024
      %37 = vsyncadd [#allocation3], %s36
      %s38 = sshll.u32 [#allocation2], 4
      %s39 = int_to_ptr.vmem [resolvable:$true] %s38
      %44 = dma.hbm_to_vmem [thread:$0]  %s2, 1024, %s39, [#allocation3], 64, 64, 4
    $region13: #{tpu_custom_call.1} parent=1 // pred_fallthru
      _
    // Predicated region
    $region14: #{tpu_custom_call.1} parent=1 // pred_check
      _
    $region15: #{tpu_custom_call.1} parent=1 // pred_check_branch
      %46 = sbr.rel (0) target = $region17
    $region16: #{tpu_custom_call.1} parent=1 // pred_region
      %s47 = sadd.s32 0, 0
      %s48 = smul.u32 16, %s47
      %s50 = ssub.s32 1024, 1024
      %51 = vsyncadd [#allocation6], %s50
      %s52 = smul.addr %s48, 64
      %s53 = scalar_lea.hbm %s3, %s52
      %s54 = sshll.u32 [#allocation5], 4
      %s55 = int_to_ptr.vmem [resolvable:$true] %s54
      %60 = dma.hbm_to_vmem [thread:$0]  %s53, 1024, %s55, [#allocation6], 64, 64, 4
    $region17: #{tpu_custom_call.1} parent=1 // pred_fallthru
      _
    // Predicated region
    $region18: #{tpu_custom_call.1} parent=1 // pred_check
      _
    $region19: #{tpu_custom_call.1} parent=1 // pred_check_branch
      %62 = sbr.rel (0) target = $region21
    $region20: #{tpu_custom_call.1} parent=1 // pred_region
      _
    $region21: #{tpu_custom_call.1} parent=1 // pred_fallthru
      _
    // Predicated region
    $region22: #{tpu_custom_call.1} parent=1 // pred_check
      _
    $region23: #{tpu_custom_call.1} parent=1 // pred_check_branch
      %64 = sbr.rel (0) target = $region25
    $region24: #{tpu_custom_call.1} parent=1 // pred_region
      %s66 = ssub.s32 2048, 2048
      %67 = vsyncadd [#allocation6], %s66
      %s68 = sshll.u32 [#allocation7], 4
      %s69 = int_to_ptr.vmem [resolvable:$true] %s68
      %74 = dma.hbm_to_vmem [thread:$0]  %s5, 2048, %s69, [#allocation6], 128, 128, 8
    $region25: #{tpu_custom_call.1} parent=1 // pred_fallthru
      _
    // Predicated region
    $region26: #{tpu_custom_call.1} parent=1 // pred_check
      _
    $region27: #{tpu_custom_call.1} parent=1 // pred_check_branch
      %76 = sbr.rel (0) target = $region29
    $region28: #{tpu_custom_call.1} parent=1 // pred_region
      %77 = dma.done [#allocation3], 1024
    $region29: #{tpu_custom_call.1} parent=1 // pred_fallthru
      _
    // Predicated region
    $region30: #{tpu_custom_call.1} parent=1 // pred_check
      _
    $region31: #{tpu_custom_call.1} parent=1 // pred_check_branch
      %79 = sbr.rel (0) target = $region33
    $region32: #{tpu_custom_call.1} parent=1 // pred_region
      %80 = dma.done [#allocation6], 1024
    $region33: #{tpu_custom_call.1} parent=1 // pred_fallthru
      _
    // Predicated region
    $region34: #{tpu_custom_call.1} parent=1 // pred_check
      _
    $region35: #{tpu_custom_call.1} parent=1 // pred_check_branch
      %82 = sbr.rel (0) target = $region37
    $region36: #{tpu_custom_call.1} parent=1 // pred_region
      %83 = dma.done [#allocation6], 2048
    $region37: #{tpu_custom_call.1} parent=1 // pred_fallthru
      _
    %s84 = sadd.s32 0, 0
    %s85 = smul.u32 16, %s84
    %p86 = scmp.lt.s32.totalorder %s85, 15
    %s87 = scalar_select %p86, %s85, 15
    %s88 = smul.addr %s87, 8
    %s89 = scalar_lea.vmem %s0, %s88
    %s90 = sadd.s32 0, 0
    %p91 = scmp.lt.s32.totalorder %s90, 0
    %s92 = scalar_select %p91, %s90, 0
    %s93 = scalar_lea.vmem %s1, %s92
    %s94 = sadd.s32 0, 0
    %s95 = smul.u32 16, %s94
    %p96 = scmp.lt.s32.totalorder %s95, 15
    %s97 = scalar_select %p96, %s95, 15
    %s98 = smul.addr %s97, 8
    %s99 = scalar_lea.vmem %s7, %s98
    %s100 = sadd.s32 0, 0
    %s101 = smul.u32 16, %s100
    %p102 = scmp.lt.s32.totalorder %s101, 15
    %s103 = scalar_select %p102, %s101, 15
    %s104 = smul.addr %s103, 8
    %s105 = scalar_lea.vmem %s0, %s104
    %s106 = sadd.s32 0, 0
    %s107 = smul.u32 16, %s106
    %s108 = sadd.s32 0, 0
    %p109 = scmp.lt.s32.totalorder %s108, 0
    %s110 = scalar_select %p109, %s108, 0
    %s111 = scalar_lea.vmem %s1, %s110
    %s112 = sadd.s32 0, 0
    %s113 = sadd.s32 0, 0
    %s114 = smul.u32 16, %s113
    %s115 = sadd.s32 0, 0
    %s116 = smul.u32 16, %s115
    %p117 = scmp.lt.s32.totalorder %s116, 15
    %s118 = scalar_select %p117, %s116, 15
    %s119 = smul.addr %s118, 8
    %s120 = scalar_lea.vmem %s7, %s119
    %s121 = sadd.s32 0, 0
    %s122 = smul.u32 16, %s121
    %p124 = scmp.eq.s32.totalorder 0, 0
    // Predicated region
    $region38: #{tpu_custom_call.1} parent=1 // pred_check
      %p125 = pneg %p124
    $region39: #{tpu_custom_call.1} parent=1 // pred_check_branch
      %127 = sbr.rel (%p125) target = $region41
    $region40: #{tpu_custom_call.1} parent=1 // pred_region
      %128 = vst [vmem:[#allocation8] sm:$0xff] 0.0
      %129 = vst [vmem:[#allocation8 + $0x8] sm:$0xff] 0.0
      %130 = vst [vmem:[#allocation8 + $0x10] sm:$0xff] 0.0
      %131 = vst [vmem:[#allocation8 + $0x18] sm:$0xff] 0.0
      %132 = vst [vmem:[#allocation8 + $0x20] sm:$0xff] 0.0
      %133 = vst [vmem:[#allocation8 + $0x28] sm:$0xff] 0.0
      %134 = vst [vmem:[#allocation8 + $0x30] sm:$0xff] 0.0
      %135 = vst [vmem:[#allocation8 + $0x38] sm:$0xff] 0.0
      %136 = vst [vmem:[#allocation8 + $0x40] sm:$0xff] 0.0
      %137 = vst [vmem:[#allocation8 + $0x48] sm:$0xff] 0.0
      %138 = vst [vmem:[#allocation8 + $0x50] sm:$0xff] 0.0
      %139 = vst [vmem:[#allocation8 + $0x58] sm:$0xff] 0.0
      %140 = vst [vmem:[#allocation8 + $0x60] sm:$0xff] 0.0
      %141 = vst [vmem:[#allocation8 + $0x68] sm:$0xff] 0.0
      %142 = vst [vmem:[#allocation8 + $0x70] sm:$0xff] 0.0
      %143 = vst [vmem:[#allocation8 + $0x78] sm:$0xff] 0.0
    $region41: #{tpu_custom_call.1} parent=1 // pred_fallthru
      _
    %v144 = vld [vmem:[%s105] sm:$0xff]
    %v145 = vld [vmem:[%s105 + $0x8] sm:$0xff]
    %v146 = vld [vmem:[%s105 + $0x10] sm:$0xff]
    %v147 = vld [vmem:[%s105 + $0x18] sm:$0xff]
    %v148 = vld [vmem:[%s105 + $0x20] sm:$0xff]
    %v149 = vld [vmem:[%s105 + $0x28] sm:$0xff]
    %v150 = vld [vmem:[%s105 + $0x30] sm:$0xff]
    %v151 = vld [vmem:[%s105 + $0x38] sm:$0xff]
    %v152 = vld [vmem:[%s105 + $0x40] sm:$0xff]
    %v153 = vld [vmem:[%s105 + $0x48] sm:$0xff]
    %v154 = vld [vmem:[%s105 + $0x50] sm:$0xff]
    %v155 = vld [vmem:[%s105 + $0x58] sm:$0xff]
    %v156 = vld [vmem:[%s105 + $0x60] sm:$0xff]
    %v157 = vld [vmem:[%s105 + $0x68] sm:$0xff]
    %v158 = vld [vmem:[%s105 + $0x70] sm:$0xff]
    %v159 = vld [vmem:[%s105 + $0x78] sm:$0xff]
    %v160 = vld [vmem:[%s111] sm:$0x1]
    %v161 = vld [vmem:[#allocation2] sm:$0xf]
    %v162 = vld [vmem:[#allocation2 + $0x4] sm:$0xf]
    %v163 = vld [vmem:[#allocation2 + $0x8] sm:$0xf]
    %v164 = vld [vmem:[#allocation2 + $0xc] sm:$0xf]
    %v165 = vld [vmem:[#allocation2 + $0x10] sm:$0xf]
    %v166 = vld [vmem:[#allocation2 + $0x14] sm:$0xf]
    %v167 = vld [vmem:[#allocation2 + $0x18] sm:$0xf]
    %v168 = vld [vmem:[#allocation2 + $0x1c] sm:$0xf]
    %v169 = vld [vmem:[#allocation2 + $0x20] sm:$0xf]
    %v170 = vld [vmem:[#allocation2 + $0x24] sm:$0xf]
    %v171 = vld [vmem:[#allocation2 + $0x28] sm:$0xf]
    %v172 = vld [vmem:[#allocation2 + $0x2c] sm:$0xf]
    %v173 = vld [vmem:[#allocation2 + $0x30] sm:$0xf]
    %v174 = vld [vmem:[#allocation2 + $0x34] sm:$0xf]
    %v175 = vld [vmem:[#allocation2 + $0x38] sm:$0xf]
    %v176 = vld [vmem:[#allocation2 + $0x3c] sm:$0xf]
    %v177 = vld [vmem:[#allocation5] sm:$0xf]
    %v178 = vld [vmem:[#allocation5 + $0x4] sm:$0xf]
    %v179 = vld [vmem:[#allocation5 + $0x8] sm:$0xf]
    %v180 = vld [vmem:[#allocation5 + $0xc] sm:$0xf]
    %v181 = vld [vmem:[#allocation5 + $0x10] sm:$0xf]
    %v182 = vld [vmem:[#allocation5 + $0x14] sm:$0xf]
    %v183 = vld [vmem:[#allocation5 + $0x18] sm:$0xf]
    %v184 = vld [vmem:[#allocation5 + $0x1c] sm:$0xf]
    %v185 = vld [vmem:[#allocation5 + $0x20] sm:$0xf]
    %v186 = vld [vmem:[#allocation5 + $0x24] sm:$0xf]
    %v187 = vld [vmem:[#allocation5 + $0x28] sm:$0xf]
    %v188 = vld [vmem:[#allocation5 + $0x2c] sm:$0xf]
    %v189 = vld [vmem:[#allocation5 + $0x30] sm:$0xf]
    %v190 = vld [vmem:[#allocation5 + $0x34] sm:$0xf]
    %v191 = vld [vmem:[#allocation5 + $0x38] sm:$0xf]
    %v192 = vld [vmem:[#allocation5 + $0x3c] sm:$0xf]
    %v193 = vld [vmem:[%s4] sm:$0xff]
    %v194 = vld [vmem:[%s4 + $0x8] sm:$0xff]
    %v195 = vld [vmem:[%s4 + $0x10] sm:$0xff]
    %v196 = vld [vmem:[%s4 + $0x18] sm:$0xff]
    %v197 = vld [vmem:[%s4 + $0x20] sm:$0xff]
    %v198 = vld [vmem:[%s4 + $0x28] sm:$0xff]
    %v199 = vld [vmem:[%s4 + $0x30] sm:$0xff]
    %v200 = vld [vmem:[%s4 + $0x38] sm:$0xff]
    %v201 = vld [vmem:[%s4 + $0x40] sm:$0xff]
    %v202 = vld [vmem:[%s4 + $0x48] sm:$0xff]
    %v203 = vld [vmem:[%s4 + $0x50] sm:$0xff]
    %v204 = vld [vmem:[%s4 + $0x58] sm:$0xff]
    %v205 = vld [vmem:[%s4 + $0x60] sm:$0xff]
    %v206 = vld [vmem:[%s4 + $0x68] sm:$0xff]
    %v207 = vld [vmem:[%s4 + $0x70] sm:$0xff]
    %v208 = vld [vmem:[%s4 + $0x78] sm:$0xff]
    %v209 = vld [vmem:[#allocation7] sm:$0xff]
    %v210 = vld [vmem:[#allocation7 + $0x8] sm:$0xff]
    %v211 = vld [vmem:[#allocation7 + $0x10] sm:$0xff]
    %v212 = vld [vmem:[#allocation7 + $0x18] sm:$0xff]
    %v213 = vld [vmem:[#allocation7 + $0x20] sm:$0xff]
    %v214 = vld [vmem:[#allocation7 + $0x28] sm:$0xff]
    %v215 = vld [vmem:[#allocation7 + $0x30] sm:$0xff]
    %v216 = vld [vmem:[#allocation7 + $0x38] sm:$0xff]
    %v217 = vld [vmem:[#allocation7 + $0x40] sm:$0xff]
    %v218 = vld [vmem:[#allocation7 + $0x48] sm:$0xff]
    %v219 = vld [vmem:[#allocation7 + $0x50] sm:$0xff]
    %v220 = vld [vmem:[#allocation7 + $0x58] sm:$0xff]
    %v221 = vld [vmem:[#allocation7 + $0x60] sm:$0xff]
    %v222 = vld [vmem:[#allocation7 + $0x68] sm:$0xff]
    %v223 = vld [vmem:[#allocation7 + $0x70] sm:$0xff]
    %v224 = vld [vmem:[#allocation7 + $0x78] sm:$0xff]
    %v225 = vlaneseq
    %v226 = vand.u32 %v225, 127
    %227 = vset.pattern.permute.xlu0 0
    %228 = vperm.xlu0 %227, %v144
    %v229 = vpop.permute.xlu0 %228
    %230 = vset.pattern.permute.xlu0 0
    %231 = vperm.xlu0 %230, %v145
    %v232 = vpop.permute.xlu0 %231
    %233 = vset.pattern.permute.xlu0 0
    %234 = vperm.xlu0 %233, %v146
    %v235 = vpop.permute.xlu0 %234
    %236 = vset.pattern.permute.xlu0 0
    %237 = vperm.xlu0 %236, %v147
    %v238 = vpop.permute.xlu0 %237
    %239 = vset.pattern.permute.xlu0 0
    %240 = vperm.xlu0 %239, %v148
    %v241 = vpop.permute.xlu0 %240
    %242 = vset.pattern.permute.xlu0 0
    %243 = vperm.xlu0 %242, %v149
    %v244 = vpop.permute.xlu0 %243
    %245 = vset.pattern.permute.xlu0 0
    %246 = vperm.xlu0 %245, %v150
    %v247 = vpop.permute.xlu0 %246
    %248 = vset.pattern.permute.xlu0 0
    %249 = vperm.xlu0 %248, %v151
    %v250 = vpop.permute.xlu0 %249
    %251 = vset.pattern.permute.xlu0 0
    %252 = vperm.xlu0 %251, %v152
    %v253 = vpop.permute.xlu0 %252
    %254 = vset.pattern.permute.xlu0 0
    %255 = vperm.xlu0 %254, %v153
    %v256 = vpop.permute.xlu0 %255
    %257 = vset.pattern.permute.xlu0 0
    %258 = vperm.xlu0 %257, %v154
    %v259 = vpop.permute.xlu0 %258
    %260 = vset.pattern.permute.xlu0 0
    %261 = vperm.xlu0 %260, %v155
    %v262 = vpop.permute.xlu0 %261
    %263 = vset.pattern.permute.xlu0 0
    %264 = vperm.xlu0 %263, %v156
    %v265 = vpop.permute.xlu0 %264
    %266 = vset.pattern.permute.xlu0 0
    %267 = vperm.xlu0 %266, %v157
    %v268 = vpop.permute.xlu0 %267
    %269 = vset.pattern.permute.xlu0 0
    %270 = vperm.xlu0 %269, %v158
    %v271 = vpop.permute.xlu0 %270
    %272 = vset.pattern.permute.xlu0 0
    %273 = vperm.xlu0 %272, %v159
    %v274 = vpop.permute.xlu0 %273
    %vm275 = vcmp.eq.s32.totalorder %v226, %v229
    %vm276 = vcmp.eq.s32.totalorder %v226, %v232
    %vm277 = vcmp.eq.s32.totalorder %v226, %v235
    %vm278 = vcmp.eq.s32.totalorder %v226, %v238
    %vm279 = vcmp.eq.s32.totalorder %v226, %v241
    %vm280 = vcmp.eq.s32.totalorder %v226, %v244
    %vm281 = vcmp.eq.s32.totalorder %v226, %v247
    %vm282 = vcmp.eq.s32.totalorder %v226, %v250
    %vm283 = vcmp.eq.s32.totalorder %v226, %v253
    %vm284 = vcmp.eq.s32.totalorder %v226, %v256
    %vm285 = vcmp.eq.s32.totalorder %v226, %v259
    %vm286 = vcmp.eq.s32.totalorder %v226, %v262
    %vm287 = vcmp.eq.s32.totalorder %v226, %v265
    %vm288 = vcmp.eq.s32.totalorder %v226, %v268
    %vm289 = vcmp.eq.s32.totalorder %v226, %v271
    %vm290 = vcmp.eq.s32.totalorder %v226, %v274
    %v291 = vsel %vm275, 1, 0
    %v292 = vsel %vm276, 1, 0
    %v293 = vsel %vm277, 1, 0
    %v294 = vsel %vm278, 1, 0
    %v295 = vsel %vm279, 1, 0
    %v296 = vsel %vm280, 1, 0
    %v297 = vsel %vm281, 1, 0
    %v298 = vsel %vm282, 1, 0
    %v299 = vsel %vm283, 1, 0
    %v300 = vsel %vm284, 1, 0
    %v301 = vsel %vm285, 1, 0
    %v302 = vsel %vm286, 1, 0
    %v303 = vsel %vm287, 1, 0
    %v304 = vsel %vm288, 1, 0
    %v305 = vsel %vm289, 1, 0
    %v306 = vsel %vm290, 1, 0
    %v307 = vcvt.s32.f32 %v291
    %v308 = vcvt.s32.f32 %v292
    %v309 = vcvt.s32.f32 %v293
    %v310 = vcvt.s32.f32 %v294
    %v311 = vcvt.s32.f32 %v295
    %v312 = vcvt.s32.f32 %v296
    %v313 = vcvt.s32.f32 %v297
    %v314 = vcvt.s32.f32 %v298
    %v315 = vcvt.s32.f32 %v299
    %v316 = vcvt.s32.f32 %v300
    %v317 = vcvt.s32.f32 %v301
    %v318 = vcvt.s32.f32 %v302
    %v319 = vcvt.s32.f32 %v303
    %v320 = vcvt.s32.f32 %v304
    %v321 = vcvt.s32.f32 %v305
    %v322 = vcvt.s32.f32 %v306
    %v323 = vpack.c.bf16 %v308, %v307
    %v324 = vpack.c.bf16 %v310, %v309
    %v325 = vpack.c.bf16 %v312, %v311
    %v326 = vpack.c.bf16 %v314, %v313
    %v327 = vpack.c.bf16 %v316, %v315
    %v328 = vpack.c.bf16 %v318, %v317
    %v329 = vpack.c.bf16 %v320, %v319
    %v330 = vpack.c.bf16 %v322, %v321
    %v331 = vlaneseq
    %v332 = vshrl.u32 %v331, 7
    %v333 = vadd.s32 %v332, 8
    %v334 = vadd.s32 %v332, 16
    %v335 = vadd.s32 %v332, 24
    %v336 = vadd.s32 %v332, 32
    %v337 = vadd.s32 %v332, 40
    %v338 = vadd.s32 %v332, 48
    %v339 = vadd.s32 %v332, 56
    %v340 = vadd.s32 %v332, 64
    %v341 = vadd.s32 %v332, 72
    %v342 = vadd.s32 %v332, 80
    %v343 = vadd.s32 %v332, 88
    %v344 = vadd.s32 %v332, 96
    %v345 = vadd.s32 %v332, 104
    %v346 = vadd.s32 %v332, 112
    %v347 = vadd.s32 %v332, 120
    %v348 = vlaneseq
    %v349 = vshrl.u32 %v348, 7
    %v350 = vsub.s32 0, %v349
    %v351 = vrot.slane %v160, %v350
    %vm352 = vcmp.eq.s32.totalorder %v332, %v351
    %vm353 = vcmp.eq.s32.totalorder %v333, %v351
    %vm354 = vcmp.eq.s32.totalorder %v334, %v351
    %vm355 = vcmp.eq.s32.totalorder %v335, %v351
    %vm356 = vcmp.eq.s32.totalorder %v336, %v351
    %vm357 = vcmp.eq.s32.totalorder %v337, %v351
    %vm358 = vcmp.eq.s32.totalorder %v338, %v351
    %vm359 = vcmp.eq.s32.totalorder %v339, %v351
    %vm360 = vcmp.eq.s32.totalorder %v340, %v351
    %vm361 = vcmp.eq.s32.totalorder %v341, %v351
    %vm362 = vcmp.eq.s32.totalorder %v342, %v351
    %vm363 = vcmp.eq.s32.totalorder %v343, %v351
    %vm364 = vcmp.eq.s32.totalorder %v344, %v351
    %vm365 = vcmp.eq.s32.totalorder %v345, %v351
    %vm366 = vcmp.eq.s32.totalorder %v346, %v351
    %vm367 = vcmp.eq.s32.totalorder %v347, %v351
    %v368 = vsel %vm352, 1, 0
    %v369 = vsel %vm353, 1, 0
    %v370 = vsel %vm354, 1, 0
    %v371 = vsel %vm355, 1, 0
    %v372 = vsel %vm356, 1, 0
    %v373 = vsel %vm357, 1, 0
    %v374 = vsel %vm358, 1, 0
    %v375 = vsel %vm359, 1, 0
    %v376 = vsel %vm360, 1, 0
    %v377 = vsel %vm361, 1, 0
    %v378 = vsel %vm362, 1, 0
    %v379 = vsel %vm363, 1, 0
    %v380 = vsel %vm364, 1, 0
    %v381 = vsel %vm365, 1, 0
    %v382 = vsel %vm366, 1, 0
    %v383 = vsel %vm367, 1, 0
    %v384 = vcvt.s32.f32 %v368
    %v385 = vcvt.s32.f32 %v369
    %v386 = vcvt.s32.f32 %v370
    %v387 = vcvt.s32.f32 %v371
    %v388 = vcvt.s32.f32 %v372
    %v389 = vcvt.s32.f32 %v373
    %v390 = vcvt.s32.f32 %v374
    %v391 = vcvt.s32.f32 %v375
    %v392 = vcvt.s32.f32 %v376
    %v393 = vcvt.s32.f32 %v377
    %v394 = vcvt.s32.f32 %v378
    %v395 = vcvt.s32.f32 %v379
    %v396 = vcvt.s32.f32 %v380
    %v397 = vcvt.s32.f32 %v381
    %v398 = vcvt.s32.f32 %v382
    %v399 = vcvt.s32.f32 %v383
    %v400 = vpack.c.bf16 %v385, %v384
    %v401 = vpack.c.bf16 %v387, %v386
    %v402 = vpack.c.bf16 %v389, %v388
    %v403 = vpack.c.bf16 %v391, %v390
    %v404 = vpack.c.bf16 %v393, %v392
    %v405 = vpack.c.bf16 %v395, %v394
    %v406 = vpack.c.bf16 %v397, %v396
    %v407 = vpack.c.bf16 %v399, %v398
    %v424 = vunpack.c.l.b16 %v161
    %v425 = vunpack.c.l.b16 %v162
    %v426 = vunpack.c.l.b16 %v163
    %v427 = vunpack.c.l.b16 %v164
    %v428 = vunpack.c.l.b16 %v165
    %v429 = vunpack.c.l.b16 %v166
    %v430 = vunpack.c.l.b16 %v167
    %v431 = vunpack.c.l.b16 %v168
    %v432 = vunpack.c.l.b16 %v169
    %v433 = vunpack.c.l.b16 %v170
    %v434 = vunpack.c.l.b16 %v171
    %v435 = vunpack.c.l.b16 %v172
    %v436 = vunpack.c.l.b16 %v173
    %v437 = vunpack.c.l.b16 %v174
    %v438 = vunpack.c.l.b16 %v175
    %v439 = vunpack.c.l.b16 %v176
    %v440 = vpack.c.b16 %v425, %v424
    %v441 = vpack.c.b16 %v427, %v426
    %v442 = vpack.c.b16 %v429, %v428
    %v443 = vpack.c.b16 %v431, %v430
    %v444 = vpack.c.b16 %v433, %v432
    %v445 = vpack.c.b16 %v435, %v434
    %v446 = vpack.c.b16 %v437, %v436
    %v447 = vpack.c.b16 %v439, %v438
    %456 = vmatprep.subr.bf16.mxu0 0
    %457 = vmatpush1.bf16.msra.mxu0 %v440
    %458 = vmatprep.subr.bf16.mxu0 0
    %459 = vmatpush1.bf16.msra.mxu0 %v441
    %460 = vmatprep.subr.bf16.mxu0 0
    %461 = vmatpush1.bf16.msra.mxu0 %v442
    %462 = vmatprep.subr.bf16.mxu0 0
    %463 = vmatpush1.bf16.msra.mxu0 %v443
    %464 = vmatprep.subr.bf16.mxu0 0
    %465 = vmatpush1.bf16.msra.mxu0 %v444
    %466 = vmatprep.subr.bf16.mxu0 0
    %467 = vmatpush1.bf16.msra.mxu0 %v445
    %468 = vmatprep.subr.bf16.mxu0 0
    %469 = vmatpush1.bf16.msra.mxu0 %v446
    %470 = vmatprep.subr.bf16.mxu0 0
    %471 = vmatpush1.bf16.msra.mxu0 %v447
    %472 = vmatprep.subr.bf16.mxu0 0
    %473 = vmatpush1.bf16.msra.mxu0 0
    %474 = vmatprep.subr.bf16.mxu0 0
    %475 = vmatpush1.bf16.msra.mxu0 0
    %476 = vmatprep.subr.bf16.mxu0 0
    %477 = vmatpush1.bf16.msra.mxu0 0
    %478 = vmatprep.subr.bf16.mxu0 0
    %479 = vmatpush1.bf16.msra.mxu0 0
    %480 = vmatprep.subr.bf16.mxu0 0
    %481 = vmatpush1.bf16.msra.mxu0 0
    %482 = vmatprep.subr.bf16.mxu0 0
    %483 = vmatpush1.bf16.msra.mxu0 0
    %484 = vmatprep.subr.bf16.mxu0 0
    %485 = vmatpush1.bf16.msra.mxu0 0
    %486 = vmatprep.subr.bf16.mxu0 0
    %487 = vmatpush1.bf16.msra.mxu0 0
    %488 = vmatprep.mubr.bf16.mxu0 0
    %489 = vmatmul.mubr.bf16.gmra.mrb[0].mxu0 %v323
    %v490 = vpop.f32.mrb[0].mxu0
    %v491 = vadd.f32 0.0, %v490
    %v492 = vpop.f32.mrb[0].mxu0
    %v493 = vpop.f32.mrb[0].mxu0
    %v494 = vadd.f32 0.0, %v493
    %v495 = vpop.f32.mrb[0].mxu0
    %496 = vmatprep.mubr.bf16.mxu0 0
    %497 = vmatmul.mubr.bf16.gmra.mrb[0].mxu0 %v324
    %v498 = vpop.f32.mrb[0].mxu0
    %v499 = vadd.f32 0.0, %v498
    %v500 = vpop.f32.mrb[0].mxu0
    %v501 = vpop.f32.mrb[0].mxu0
    %v502 = vadd.f32 0.0, %v501
    %v503 = vpop.f32.mrb[0].mxu0
    %504 = vmatprep.mubr.bf16.mxu0 0
    %505 = vmatmul.mubr.bf16.gmra.mrb[0].mxu0 %v325
    %v506 = vpop.f32.mrb[0].mxu0
    %v507 = vadd.f32 0.0, %v506
    %v508 = vpop.f32.mrb[0].mxu0
    %v509 = vpop.f32.mrb[0].mxu0
    %v510 = vadd.f32 0.0, %v509
    %v511 = vpop.f32.mrb[0].mxu0
    %512 = vmatprep.mubr.bf16.mxu0 0
    %513 = vmatmul.mubr.bf16.gmra.mrb[0].mxu0 %v326
    %v514 = vpop.f32.mrb[0].mxu0
    %v515 = vadd.f32 0.0, %v514
    %v516 = vpop.f32.mrb[0].mxu0
    %v517 = vpop.f32.mrb[0].mxu0
    %v518 = vadd.f32 0.0, %v517
    %v519 = vpop.f32.mrb[0].mxu0
    %520 = vmatprep.mubr.bf16.mxu0 0
    %521 = vmatmul.mubr.bf16.gmra.mrb[0].mxu0 %v327
    %v522 = vpop.f32.mrb[0].mxu0
    %v523 = vadd.f32 0.0, %v522
    %v524 = vpop.f32.mrb[0].mxu0
    %v525 = vpop.f32.mrb[0].mxu0
    %v526 = vadd.f32 0.0, %v525
    %v527 = vpop.f32.mrb[0].mxu0
    %528 = vmatprep.mubr.bf16.mxu0 0
    %529 = vmatmul.mubr.bf16.gmra.mrb[0].mxu0 %v328
    %v530 = vpop.f32.mrb[0].mxu0
    %v531 = vadd.f32 0.0, %v530
    %v532 = vpop.f32.mrb[0].mxu0
    %v533 = vpop.f32.mrb[0].mxu0
    %v534 = vadd.f32 0.0, %v533
    %v535 = vpop.f32.mrb[0].mxu0
    %536 = vmatprep.mubr.bf16.mxu0 0
    %537 = vmatmul.mubr.bf16.gmra.mrb[0].mxu0 %v329
    %v538 = vpop.f32.mrb[0].mxu0
    %v539 = vadd.f32 0.0, %v538
    %v540 = vpop.f32.mrb[0].mxu0
    %v541 = vpop.f32.mrb[0].mxu0
    %v542 = vadd.f32 0.0, %v541
    %v543 = vpop.f32.mrb[0].mxu0
    %544 = vmatprep.mubr.bf16.mxu0 0
    %545 = vmatmul.mubr.bf16.gmra.mrb[0].mxu0 %v330
    %v546 = vpop.f32.mrb[0].mxu0
    %v547 = vadd.f32 0.0, %v546
    %v548 = vpop.f32.mrb[0].mxu0
    %v549 = vpop.f32.mrb[0].mxu0
    %v550 = vadd.f32 0.0, %v549
    %v551 = vpop.f32.mrb[0].mxu0
    %552 = vdwg.mxu0
    %v553 = vunpack.c.l.bf16 %v177
    %v554 = vunpack.c.l.bf16 %v178
    %v555 = vunpack.c.l.bf16 %v179
    %v556 = vunpack.c.l.bf16 %v180
    %v557 = vunpack.c.l.bf16 %v181
    %v558 = vunpack.c.l.bf16 %v182
    %v559 = vunpack.c.l.bf16 %v183
    %v560 = vunpack.c.l.bf16 %v184
    %v561 = vunpack.c.l.bf16 %v185
    %v562 = vunpack.c.l.bf16 %v186
    %v563 = vunpack.c.l.bf16 %v187
    %v564 = vunpack.c.l.bf16 %v188
    %v565 = vunpack.c.l.bf16 %v189
    %v566 = vunpack.c.l.bf16 %v190
    %v567 = vunpack.c.l.bf16 %v191
    %v568 = vunpack.c.l.bf16 %v192
    %v569 = vmul.f32 %v553, %v491
    %v570 = vmul.f32 %v554, %v494
    %v571 = vmul.f32 %v555, %v499
    %v572 = vmul.f32 %v556, %v502
    %v573 = vmul.f32 %v557, %v507
    %v574 = vmul.f32 %v558, %v510
    %v575 = vmul.f32 %v559, %v515
    %v576 = vmul.f32 %v560, %v518
    %v577 = vmul.f32 %v561, %v523
    %v578 = vmul.f32 %v562, %v526
    %v579 = vmul.f32 %v563, %v531
    %v580 = vmul.f32 %v564, %v534
    %v581 = vmul.f32 %v565, %v539
    %v582 = vmul.f32 %v566, %v542
    %v583 = vmul.f32 %v567, %v547
    %v584 = vmul.f32 %v568, %v550
    %vm585 = vcmp.ge.s32.totalorder %v226, 4
    %v586 = vsel %vm585, -1e+30, 0.0
    %587 = vmatprep.subr.mxu0 0.0
    %588 = vmatpush1.msra.mxu0 %v193
    %589 = vmatprep.subr.mxu0 0.0
    %590 = vmatpush1.msra.mxu0 %v194
    %591 = vmatprep.subr.mxu0 0.0
    %592 = vmatpush1.msra.mxu0 %v195
    %593 = vmatprep.subr.mxu0 0.0
    %594 = vmatpush1.msra.mxu0 %v196
    %595 = vmatprep.subr.mxu0 0.0
    %596 = vmatpush1.msra.mxu0 %v197
    %597 = vmatprep.subr.mxu0 0.0
    %598 = vmatpush1.msra.mxu0 %v198
    %599 = vmatprep.subr.mxu0 0.0
    %600 = vmatpush1.msra.mxu0 %v199
    %601 = vmatprep.subr.mxu0 0.0
    %602 = vmatpush1.msra.mxu0 %v200
    %603 = vmatprep.subr.mxu0 0.0
    %604 = vmatpush1.msra.mxu0 %v201
    %605 = vmatprep.subr.mxu0 0.0
    %606 = vmatpush1.msra.mxu0 %v202
    %607 = vmatprep.subr.mxu0 0.0
    %608 = vmatpush1.msra.mxu0 %v203
    %609 = vmatprep.subr.mxu0 0.0
    %610 = vmatpush1.msra.mxu0 %v204
    %611 = vmatprep.subr.mxu0 0.0
    %612 = vmatpush1.msra.mxu0 %v205
    %613 = vmatprep.subr.mxu0 0.0
    %614 = vmatpush1.msra.mxu0 %v206
    %615 = vmatprep.subr.mxu0 0.0
    %616 = vmatpush1.msra.mxu0 %v207
    %617 = vmatprep.subr.mxu0 0.0
    %618 = vmatpush1.msra.mxu0 %v208
    %619 = vmatprep.subr.mxu0 0.0
    %620 = vmatpush1.msra.mxu0 0.0
    %621 = vmatprep.subr.mxu0 0.0
    %622 = vmatpush1.msra.mxu0 0.0
    %623 = vmatprep.subr.mxu0 0.0
    %624 = vmatpush1.msra.mxu0 0.0
    %625 = vmatprep.subr.mxu0 0.0
    %626 = vmatpush1.msra.mxu0 0.0
    %627 = vmatprep.subr.mxu0 0.0
    %628 = vmatpush1.msra.mxu0 0.0
    %629 = vmatprep.subr.mxu0 0.0
    %630 = vmatpush1.msra.mxu0 0.0
    %631 = vmatprep.subr.mxu0 0.0
    %632 = vmatpush1.msra.mxu0 0.0
    %633 = vmatprep.subr.mxu0 0.0
    %634 = vmatpush1.msra.mxu0 0.0
    %635 = vmatprep.subr.mxu0 0.0
    %636 = vmatpush1.msra.mxu0 0.0
    %637 = vmatprep.subr.mxu0 0.0
    %638 = vmatpush1.msra.mxu0 0.0
    %639 = vmatprep.subr.mxu0 0.0
    %640 = vmatpush1.msra.mxu0 0.0
    %641 = vmatprep.subr.mxu0 0.0
    %642 = vmatpush1.msra.mxu0 0.0
    %643 = vmatprep.subr.mxu0 0.0
    %644 = vmatpush1.msra.mxu0 0.0
    %645 = vmatprep.subr.mxu0 0.0
    %646 = vmatpush1.msra.mxu0 0.0
    %647 = vmatprep.subr.mxu0 0.0
    %648 = vmatpush1.msra.mxu0 0.0
    %649 = vmatprep.subr.mxu0 0.0
    %650 = vmatpush1.msra.mxu0 0.0
    %651 = vmatprep.mubr.f32.mxu0 0.0
    %652 = vmatmul.mubr.f32.gmra.mrb[0].mxu0 %v569
    %v653 = vpop.f32.mrb[0].mxu0
    %v654 = vadd.f32 %v586, %v653
    %v655 = vpop.f32.mrb[0].mxu0
    %656 = vmatprep.mubr.f32.mxu0 0.0
    %657 = vmatmul.mubr.f32.gmra.mrb[0].mxu0 %v570
    %v658 = vpop.f32.mrb[0].mxu0
    %v659 = vadd.f32 %v586, %v658
    %v660 = vpop.f32.mrb[0].mxu0
    %661 = vmatprep.mubr.f32.mxu0 0.0
    %662 = vmatmul.mubr.f32.gmra.mrb[0].mxu0 %v571
    %v663 = vpop.f32.mrb[0].mxu0
    %v664 = vadd.f32 %v586, %v663
    %v665 = vpop.f32.mrb[0].mxu0
    %666 = vmatprep.mubr.f32.mxu0 0.0
    %667 = vmatmul.mubr.f32.gmra.mrb[0].mxu0 %v572
    %v668 = vpop.f32.mrb[0].mxu0
    %v669 = vadd.f32 %v586, %v668
    %v670 = vpop.f32.mrb[0].mxu0
    %671 = vmatprep.mubr.f32.mxu0 0.0
    %672 = vmatmul.mubr.f32.gmra.mrb[0].mxu0 %v573
    %v673 = vpop.f32.mrb[0].mxu0
    %v674 = vadd.f32 %v586, %v673
    %v675 = vpop.f32.mrb[0].mxu0
    %676 = vmatprep.mubr.f32.mxu0 0.0
    %677 = vmatmul.mubr.f32.gmra.mrb[0].mxu0 %v574
    %v678 = vpop.f32.mrb[0].mxu0
    %v679 = vadd.f32 %v586, %v678
    %v680 = vpop.f32.mrb[0].mxu0
    %681 = vmatprep.mubr.f32.mxu0 0.0
    %682 = vmatmul.mubr.f32.gmra.mrb[0].mxu0 %v575
    %v683 = vpop.f32.mrb[0].mxu0
    %v684 = vadd.f32 %v586, %v683
    %v685 = vpop.f32.mrb[0].mxu0
    %686 = vmatprep.mubr.f32.mxu0 0.0
    %687 = vmatmul.mubr.f32.gmra.mrb[0].mxu0 %v576
    %v688 = vpop.f32.mrb[0].mxu0
    %v689 = vadd.f32 %v586, %v688
    %v690 = vpop.f32.mrb[0].mxu0
    %691 = vmatprep.mubr.f32.mxu0 0.0
    %692 = vmatmul.mubr.f32.gmra.mrb[0].mxu0 %v577
    %v693 = vpop.f32.mrb[0].mxu0
    %v694 = vadd.f32 %v586, %v693
    %v695 = vpop.f32.mrb[0].mxu0
    %696 = vmatprep.mubr.f32.mxu0 0.0
    %697 = vmatmul.mubr.f32.gmra.mrb[0].mxu0 %v578
    %v698 = vpop.f32.mrb[0].mxu0
    %v699 = vadd.f32 %v586, %v698
    %v700 = vpop.f32.mrb[0].mxu0
    %701 = vmatprep.mubr.f32.mxu0 0.0
    %702 = vmatmul.mubr.f32.gmra.mrb[0].mxu0 %v579
    %v703 = vpop.f32.mrb[0].mxu0
    %v704 = vadd.f32 %v586, %v703
    %v705 = vpop.f32.mrb[0].mxu0
    %706 = vmatprep.mubr.f32.mxu0 0.0
    %707 = vmatmul.mubr.f32.gmra.mrb[0].mxu0 %v580
    %v708 = vpop.f32.mrb[0].mxu0
    %v709 = vadd.f32 %v586, %v708
    %v710 = vpop.f32.mrb[0].mxu0
    %711 = vmatprep.mubr.f32.mxu0 0.0
    %712 = vmatmul.mubr.f32.gmra.mrb[0].mxu0 %v581
    %v713 = vpop.f32.mrb[0].mxu0
    %v714 = vadd.f32 %v586, %v713
    %v715 = vpop.f32.mrb[0].mxu0
    %716 = vmatprep.mubr.f32.mxu0 0.0
    %717 = vmatmul.mubr.f32.gmra.mrb[0].mxu0 %v582
    %v718 = vpop.f32.mrb[0].mxu0
    %v719 = vadd.f32 %v586, %v718
    %v720 = vpop.f32.mrb[0].mxu0
    %721 = vmatprep.mubr.f32.mxu0 0.0
    %722 = vmatmul.mubr.f32.gmra.mrb[0].mxu0 %v583
    %v723 = vpop.f32.mrb[0].mxu0
    %v724 = vadd.f32 %v586, %v723
    %v725 = vpop.f32.mrb[0].mxu0
    %726 = vmatprep.mubr.f32.mxu0 0.0
    %727 = vmatmul.mubr.f32.gmra.mrb[0].mxu0 %v584
    %v728 = vpop.f32.mrb[0].mxu0
    %v729 = vadd.f32 %v586, %v728
    %v730 = vpop.f32.mrb[0].mxu0
    %731 = vdwg.mxu0
    %732 = vmax.xlane.f32.xlu0 %v654
    %v733 = vpop.xlane.xlu0 %732
    %734 = vmax.xlane.f32.xlu0 %v659
    %v735 = vpop.xlane.xlu0 %734
    %736 = vmax.xlane.f32.xlu0 %v664
    %v737 = vpop.xlane.xlu0 %736
    %738 = vmax.xlane.f32.xlu0 %v669
    %v739 = vpop.xlane.xlu0 %738
    %740 = vmax.xlane.f32.xlu0 %v674
    %v741 = vpop.xlane.xlu0 %740
    %742 = vmax.xlane.f32.xlu0 %v679
    %v743 = vpop.xlane.xlu0 %742
    %744 = vmax.xlane.f32.xlu0 %v684
    %v745 = vpop.xlane.xlu0 %744
    %746 = vmax.xlane.f32.xlu0 %v689
    %v747 = vpop.xlane.xlu0 %746
    %748 = vmax.xlane.f32.xlu0 %v694
    %v749 = vpop.xlane.xlu0 %748
    %750 = vmax.xlane.f32.xlu0 %v699
    %v751 = vpop.xlane.xlu0 %750
    %752 = vmax.xlane.f32.xlu0 %v704
    %v753 = vpop.xlane.xlu0 %752
    %754 = vmax.xlane.f32.xlu0 %v709
    %v755 = vpop.xlane.xlu0 %754
    %756 = vmax.xlane.f32.xlu0 %v714
    %v757 = vpop.xlane.xlu0 %756
    %758 = vmax.xlane.f32.xlu0 %v719
    %v759 = vpop.xlane.xlu0 %758
    %760 = vmax.xlane.f32.xlu0 %v724
    %v761 = vpop.xlane.xlu0 %760
    %762 = vmax.xlane.f32.xlu0 %v729
    %v763 = vpop.xlane.xlu0 %762
    %v764 = vsub.f32 %v654, %v733
    %v765 = vsub.f32 %v659, %v735
    %v766 = vsub.f32 %v664, %v737
    %v767 = vsub.f32 %v669, %v739
    %v768 = vsub.f32 %v674, %v741
    %v769 = vsub.f32 %v679, %v743
    %v770 = vsub.f32 %v684, %v745
    %v771 = vsub.f32 %v689, %v747
    %v772 = vsub.f32 %v694, %v749
    %v773 = vsub.f32 %v699, %v751
    %v774 = vsub.f32 %v704, %v753
    %v775 = vsub.f32 %v709, %v755
    %v776 = vsub.f32 %v714, %v757
    %v777 = vsub.f32 %v719, %v759
    %v778 = vsub.f32 %v724, %v761
    %v779 = vsub.f32 %v729, %v763
    %v780 = vmul.f32 %v764, 1.442695
    %v781 = vpow.pop %v780
    %v782 = vmul.f32 %v765, 1.442695
    %v783 = vpow.pop %v782
    %v784 = vmul.f32 %v766, 1.442695
    %v785 = vpow.pop %v784
    %v786 = vmul.f32 %v767, 1.442695
    %v787 = vpow.pop %v786
    %v788 = vmul.f32 %v768, 1.442695
    %v789 = vpow.pop %v788
    %v790 = vmul.f32 %v769, 1.442695
    %v791 = vpow.pop %v790
    %v792 = vmul.f32 %v770, 1.442695
    %v793 = vpow.pop %v792
    %v794 = vmul.f32 %v771, 1.442695
    %v795 = vpow.pop %v794
    %v796 = vmul.f32 %v772, 1.442695
    %v797 = vpow.pop %v796
    %v798 = vmul.f32 %v773, 1.442695
    %v799 = vpow.pop %v798
    %v800 = vmul.f32 %v774, 1.442695
    %v801 = vpow.pop %v800
    %v802 = vmul.f32 %v775, 1.442695
    %v803 = vpow.pop %v802
    %v804 = vmul.f32 %v776, 1.442695
    %v805 = vpow.pop %v804
    %v806 = vmul.f32 %v777, 1.442695
    %v807 = vpow.pop %v806
    %v808 = vmul.f32 %v778, 1.442695
    %v809 = vpow.pop %v808
    %v810 = vmul.f32 %v779, 1.442695
    %v811 = vpow.pop %v810
    %812 = vadd.xlane.f32.xlu0 %v781
    %v813 = vpop.xlane.xlu0 %812
    %814 = vadd.xlane.f32.xlu0 %v783
    %v815 = vpop.xlane.xlu0 %814
    %816 = vadd.xlane.f32.xlu0 %v785
    %v817 = vpop.xlane.xlu0 %816
    %818 = vadd.xlane.f32.xlu0 %v787
    %v819 = vpop.xlane.xlu0 %818
    %820 = vadd.xlane.f32.xlu0 %v789
    %v821 = vpop.xlane.xlu0 %820
    %822 = vadd.xlane.f32.xlu0 %v791
    %v823 = vpop.xlane.xlu0 %822
    %824 = vadd.xlane.f32.xlu0 %v793
    %v825 = vpop.xlane.xlu0 %824
    %826 = vadd.xlane.f32.xlu0 %v795
    %v827 = vpop.xlane.xlu0 %826
    %828 = vadd.xlane.f32.xlu0 %v797
    %v829 = vpop.xlane.xlu0 %828
    %830 = vadd.xlane.f32.xlu0 %v799
    %v831 = vpop.xlane.xlu0 %830
    %832 = vadd.xlane.f32.xlu0 %v801
    %v833 = vpop.xlane.xlu0 %832
    %834 = vadd.xlane.f32.xlu0 %v803
    %v835 = vpop.xlane.xlu0 %834
    %836 = vadd.xlane.f32.xlu0 %v805
    %v837 = vpop.xlane.xlu0 %836
    %838 = vadd.xlane.f32.xlu0 %v807
    %v839 = vpop.xlane.xlu0 %838
    %840 = vadd.xlane.f32.xlu0 %v809
    %v841 = vpop.xlane.xlu0 %840
    %842 = vadd.xlane.f32.xlu0 %v811
    %v843 = vpop.xlane.xlu0 %842
    %v844 = vrcp.pop %v813
    %v845 = vrcp.pop %v815
    %v846 = vrcp.pop %v817
    %v847 = vrcp.pop %v819
    %v848 = vrcp.pop %v821
    %v849 = vrcp.pop %v823
    %v850 = vrcp.pop %v825
    %v851 = vrcp.pop %v827
    %v852 = vrcp.pop %v829
    %v853 = vrcp.pop %v831
    %v854 = vrcp.pop %v833
    %v855 = vrcp.pop %v835
    %v856 = vrcp.pop %v837
    %v857 = vrcp.pop %v839
    %v858 = vrcp.pop %v841
    %v859 = vrcp.pop %v843
    %v860 = vmul.f32 %v781, %v844
    %v861 = vmul.f32 %v783, %v845
    %v862 = vmul.f32 %v785, %v846
    %v863 = vmul.f32 %v787, %v847
    %v864 = vmul.f32 %v789, %v848
    %v865 = vmul.f32 %v791, %v849
    %v866 = vmul.f32 %v793, %v850
    %v867 = vmul.f32 %v795, %v851
    %v868 = vmul.f32 %v797, %v852
    %v869 = vmul.f32 %v799, %v853
    %v870 = vmul.f32 %v801, %v854
    %v871 = vmul.f32 %v803, %v855
    %v872 = vmul.f32 %v805, %v856
    %v873 = vmul.f32 %v807, %v857
    %v874 = vmul.f32 %v809, %v858
    %v875 = vmul.f32 %v811, %v859
    %876 = vmatprep.subr.mxu0 0.0
    %877 = vmatpush1.msra.mxu0 %v209
    %878 = vmatprep.subr.mxu0 0.0
    %879 = vmatpush1.msra.mxu0 %v210
    %880 = vmatprep.subr.mxu0 0.0
    %881 = vmatpush1.msra.mxu0 %v211
    %882 = vmatprep.subr.mxu0 0.0
    %883 = vmatpush1.msra.mxu0 %v212
    %884 = vmatprep.subr.mxu0 0.0
    %885 = vmatpush1.msra.mxu0 %v213
    %886 = vmatprep.subr.mxu0 0.0
    %887 = vmatpush1.msra.mxu0 %v214
    %888 = vmatprep.subr.mxu0 0.0
    %889 = vmatpush1.msra.mxu0 %v215
    %890 = vmatprep.subr.mxu0 0.0
    %891 = vmatpush1.msra.mxu0 %v216
    %892 = vmatprep.subr.mxu0 0.0
    %893 = vmatpush1.msra.mxu0 %v217
    %894 = vmatprep.subr.mxu0 0.0
    %895 = vmatpush1.msra.mxu0 %v218
    %896 = vmatprep.subr.mxu0 0.0
    %897 = vmatpush1.msra.mxu0 %v219
    %898 = vmatprep.subr.mxu0 0.0
    %899 = vmatpush1.msra.mxu0 %v220
    %900 = vmatprep.subr.mxu0 0.0
    %901 = vmatpush1.msra.mxu0 %v221
    %902 = vmatprep.subr.mxu0 0.0
    %903 = vmatpush1.msra.mxu0 %v222
    %904 = vmatprep.subr.mxu0 0.0
    %905 = vmatpush1.msra.mxu0 %v223
    %906 = vmatprep.subr.mxu0 0.0
    %907 = vmatpush1.msra.mxu0 %v224
    %908 = vmatprep.subr.mxu0 0.0
    %909 = vmatpush1.msra.mxu0 0.0
    %910 = vmatprep.subr.mxu0 0.0
    %911 = vmatpush1.msra.mxu0 0.0
    %912 = vmatprep.subr.mxu0 0.0
    %913 = vmatpush1.msra.mxu0 0.0
    %914 = vmatprep.subr.mxu0 0.0
    %915 = vmatpush1.msra.mxu0 0.0
    %916 = vmatprep.subr.mxu0 0.0
    %917 = vmatpush1.msra.mxu0 0.0
    %918 = vmatprep.subr.mxu0 0.0
    %919 = vmatpush1.msra.mxu0 0.0
    %920 = vmatprep.subr.mxu0 0.0
    %921 = vmatpush1.msra.mxu0 0.0
    %922 = vmatprep.subr.mxu0 0.0
    %923 = vmatpush1.msra.mxu0 0.0
    %924 = vmatprep.subr.mxu0 0.0
    %925 = vmatpush1.msra.mxu0 0.0
    %926 = vmatprep.subr.mxu0 0.0
    %927 = vmatpush1.msra.mxu0 0.0
    %928 = vmatprep.subr.mxu0 0.0
    %929 = vmatpush1.msra.mxu0 0.0
    %930 = vmatprep.subr.mxu0 0.0
    %931 = vmatpush1.msra.mxu0 0.0
    %932 = vmatprep.subr.mxu0 0.0
    %933 = vmatpush1.msra.mxu0 0.0
    %934 = vmatprep.subr.mxu0 0.0
    %935 = vmatpush1.msra.mxu0 0.0
    %936 = vmatprep.subr.mxu0 0.0
    %937 = vmatpush1.msra.mxu0 0.0
    %938 = vmatprep.subr.mxu0 0.0
    %939 = vmatpush1.msra.mxu0 0.0
    %940 = vmatprep.mubr.f32.mxu0 0.0
    %941 = vmatmul.mubr.f32.gmra.mrb[0].mxu0 %v860
    %v942 = vpop.f32.mrb[0].mxu0
    %v943 = vadd.f32 0.0, %v942
    %v944 = vpop.f32.mrb[0].mxu0
    %945 = vmatprep.mubr.f32.mxu0 0.0
    %946 = vmatmul.mubr.f32.gmra.mrb[0].mxu0 %v861
    %v947 = vpop.f32.mrb[0].mxu0
    %v948 = vadd.f32 0.0, %v947
    %v949 = vpop.f32.mrb[0].mxu0
    %950 = vmatprep.mubr.f32.mxu0 0.0
    %951 = vmatmul.mubr.f32.gmra.mrb[0].mxu0 %v862
    %v952 = vpop.f32.mrb[0].mxu0
    %v953 = vadd.f32 0.0, %v952
    %v954 = vpop.f32.mrb[0].mxu0
    %955 = vmatprep.mubr.f32.mxu0 0.0
    %956 = vmatmul.mubr.f32.gmra.mrb[0].mxu0 %v863
    %v957 = vpop.f32.mrb[0].mxu0
    %v958 = vadd.f32 0.0, %v957
    %v959 = vpop.f32.mrb[0].mxu0
    %960 = vmatprep.mubr.f32.mxu0 0.0
    %961 = vmatmul.mubr.f32.gmra.mrb[0].mxu0 %v864
    %v962 = vpop.f32.mrb[0].mxu0
    %v963 = vadd.f32 0.0, %v962
    %v964 = vpop.f32.mrb[0].mxu0
    %965 = vmatprep.mubr.f32.mxu0 0.0
    %966 = vmatmul.mubr.f32.gmra.mrb[0].mxu0 %v865
    %v967 = vpop.f32.mrb[0].mxu0
    %v968 = vadd.f32 0.0, %v967
    %v969 = vpop.f32.mrb[0].mxu0
    %970 = vmatprep.mubr.f32.mxu0 0.0
    %971 = vmatmul.mubr.f32.gmra.mrb[0].mxu0 %v866
    %v972 = vpop.f32.mrb[0].mxu0
    %v973 = vadd.f32 0.0, %v972
    %v974 = vpop.f32.mrb[0].mxu0
    %975 = vmatprep.mubr.f32.mxu0 0.0
    %976 = vmatmul.mubr.f32.gmra.mrb[0].mxu0 %v867
    %v977 = vpop.f32.mrb[0].mxu0
    %v978 = vadd.f32 0.0, %v977
    %v979 = vpop.f32.mrb[0].mxu0
    %980 = vmatprep.mubr.f32.mxu0 0.0
    %981 = vmatmul.mubr.f32.gmra.mrb[0].mxu0 %v868
    %v982 = vpop.f32.mrb[0].mxu0
    %v983 = vadd.f32 0.0, %v982
    %v984 = vpop.f32.mrb[0].mxu0
    %985 = vmatprep.mubr.f32.mxu0 0.0
    %986 = vmatmul.mubr.f32.gmra.mrb[0].mxu0 %v869
    %v987 = vpop.f32.mrb[0].mxu0
    %v988 = vadd.f32 0.0, %v987
    %v989 = vpop.f32.mrb[0].mxu0
    %990 = vmatprep.mubr.f32.mxu0 0.0
    %991 = vmatmul.mubr.f32.gmra.mrb[0].mxu0 %v870
    %v992 = vpop.f32.mrb[0].mxu0
    %v993 = vadd.f32 0.0, %v992
    %v994 = vpop.f32.mrb[0].mxu0
    %995 = vmatprep.mubr.f32.mxu0 0.0
    %996 = vmatmul.mubr.f32.gmra.mrb[0].mxu0 %v871
    %v997 = vpop.f32.mrb[0].mxu0
    %v998 = vadd.f32 0.0, %v997
    %v999 = vpop.f32.mrb[0].mxu0
    %1000 = vmatprep.mubr.f32.mxu0 0.0
    %1001 = vmatmul.mubr.f32.gmra.mrb[0].mxu0 %v872
    %v1002 = vpop.f32.mrb[0].mxu0
    %v1003 = vadd.f32 0.0, %v1002
    %v1004 = vpop.f32.mrb[0].mxu0
    %1005 = vmatprep.mubr.f32.mxu0 0.0
    %1006 = vmatmul.mubr.f32.gmra.mrb[0].mxu0 %v873
    %v1007 = vpop.f32.mrb[0].mxu0
    %v1008 = vadd.f32 0.0, %v1007
    %v1009 = vpop.f32.mrb[0].mxu0
    %1010 = vmatprep.mubr.f32.mxu0 0.0
    %1011 = vmatmul.mubr.f32.gmra.mrb[0].mxu0 %v874
    %v1012 = vpop.f32.mrb[0].mxu0
    %v1013 = vadd.f32 0.0, %v1012
    %v1014 = vpop.f32.mrb[0].mxu0
    %1015 = vmatprep.mubr.f32.mxu0 0.0
    %1016 = vmatmul.mubr.f32.gmra.mrb[0].mxu0 %v875
    %v1017 = vpop.f32.mrb[0].mxu0
    %v1018 = vadd.f32 0.0, %v1017
    %v1019 = vpop.f32.mrb[0].mxu0
    %1020 = vdwg.mxu0
    %v1021 = vpack.c.bf16 %v948, %v943
    %v1022 = vpack.c.bf16 %v958, %v953
    %v1023 = vpack.c.bf16 %v968, %v963
    %v1024 = vpack.c.bf16 %v978, %v973
    %v1025 = vpack.c.bf16 %v988, %v983
    %v1026 = vpack.c.bf16 %v998, %v993
    %v1027 = vpack.c.bf16 %v1008, %v1003
    %v1028 = vpack.c.bf16 %v1018, %v1013
    %v1037 = vunpack.c.l.b16 %v1021
    %v1038 = vunpack.c.h.b16 %v1021
    %v1039 = vunpack.c.l.b16 %v1022
    %v1040 = vunpack.c.h.b16 %v1022
    %v1041 = vunpack.c.l.b16 %v1023
    %v1042 = vunpack.c.h.b16 %v1023
    %v1043 = vunpack.c.l.b16 %v1024
    %v1044 = vunpack.c.h.b16 %v1024
    %v1045 = vunpack.c.l.b16 %v1025
    %v1046 = vunpack.c.h.b16 %v1025
    %v1047 = vunpack.c.l.b16 %v1026
    %v1048 = vunpack.c.h.b16 %v1026
    %v1049 = vunpack.c.l.b16 %v1027
    %v1050 = vunpack.c.h.b16 %v1027
    %v1051 = vunpack.c.l.b16 %v1028
    %v1052 = vunpack.c.h.b16 %v1028
    %v1053 = vpack.c.b16 %v1037, %v1037
    %v1054 = vpack.c.b16 %v1038, %v1038
    %v1055 = vpack.c.b16 %v1039, %v1039
    %v1056 = vpack.c.b16 %v1040, %v1040
    %v1057 = vpack.c.b16 %v1041, %v1041
    %v1058 = vpack.c.b16 %v1042, %v1042
    %v1059 = vpack.c.b16 %v1043, %v1043
    %v1060 = vpack.c.b16 %v1044, %v1044
    %v1061 = vpack.c.b16 %v1045, %v1045
    %v1062 = vpack.c.b16 %v1046, %v1046
    %v1063 = vpack.c.b16 %v1047, %v1047
    %v1064 = vpack.c.b16 %v1048, %v1048
    %v1065 = vpack.c.b16 %v1049, %v1049
    %v1066 = vpack.c.b16 %v1050, %v1050
    %v1067 = vpack.c.b16 %v1051, %v1051
    %v1068 = vpack.c.b16 %v1052, %v1052
    %v1085 = vmul.bf16 %v177, %v1053
    %v1086 = vmul.bf16 %v178, %v1054
    %v1087 = vmul.bf16 %v179, %v1055
    %v1088 = vmul.bf16 %v180, %v1056
    %v1089 = vmul.bf16 %v181, %v1057
    %v1090 = vmul.bf16 %v182, %v1058
    %v1091 = vmul.bf16 %v183, %v1059
    %v1092 = vmul.bf16 %v184, %v1060
    %v1093 = vmul.bf16 %v185, %v1061
    %v1094 = vmul.bf16 %v186, %v1062
    %v1095 = vmul.bf16 %v187, %v1063
    %v1096 = vmul.bf16 %v188, %v1064
    %v1097 = vmul.bf16 %v189, %v1065
    %v1098 = vmul.bf16 %v190, %v1066
    %v1099 = vmul.bf16 %v191, %v1067
    %v1100 = vmul.bf16 %v192, %v1068
    %v1101 = vld [vmem:[#allocation8] sm:$0xff]
    %v1102 = vld [vmem:[#allocation8 + $0x8] sm:$0xff]
    %v1103 = vld [vmem:[#allocation8 + $0x10] sm:$0xff]
    %v1104 = vld [vmem:[#allocation8 + $0x18] sm:$0xff]
    %v1105 = vld [vmem:[#allocation8 + $0x20] sm:$0xff]
    %v1106 = vld [vmem:[#allocation8 + $0x28] sm:$0xff]
    %v1107 = vld [vmem:[#allocation8 + $0x30] sm:$0xff]
    %v1108 = vld [vmem:[#allocation8 + $0x38] sm:$0xff]
    %v1109 = vld [vmem:[#allocation8 + $0x40] sm:$0xff]
    %v1110 = vld [vmem:[#allocation8 + $0x48] sm:$0xff]
    %v1111 = vld [vmem:[#allocation8 + $0x50] sm:$0xff]
    %v1112 = vld [vmem:[#allocation8 + $0x58] sm:$0xff]
    %v1113 = vld [vmem:[#allocation8 + $0x60] sm:$0xff]
    %v1114 = vld [vmem:[#allocation8 + $0x68] sm:$0xff]
    %v1115 = vld [vmem:[#allocation8 + $0x70] sm:$0xff]
    %v1116 = vld [vmem:[#allocation8 + $0x78] sm:$0xff]
    %v1133 = vunpack.c.l.b16 %v1085
    %v1134 = vunpack.c.l.b16 %v1086
    %v1135 = vunpack.c.l.b16 %v1087
    %v1136 = vunpack.c.l.b16 %v1088
    %v1137 = vunpack.c.l.b16 %v1089
    %v1138 = vunpack.c.l.b16 %v1090
    %v1139 = vunpack.c.l.b16 %v1091
    %v1140 = vunpack.c.l.b16 %v1092
    %v1141 = vunpack.c.l.b16 %v1093
    %v1142 = vunpack.c.l.b16 %v1094
    %v1143 = vunpack.c.l.b16 %v1095
    %v1144 = vunpack.c.l.b16 %v1096
    %v1145 = vunpack.c.l.b16 %v1097
    %v1146 = vunpack.c.l.b16 %v1098
    %v1147 = vunpack.c.l.b16 %v1099
    %v1148 = vunpack.c.l.b16 %v1100
    %v1149 = vpack.c.b16 %v1134, %v1133
    %v1150 = vpack.c.b16 %v1136, %v1135
    %v1151 = vpack.c.b16 %v1138, %v1137
    %v1152 = vpack.c.b16 %v1140, %v1139
    %v1153 = vpack.c.b16 %v1142, %v1141
    %v1154 = vpack.c.b16 %v1144, %v1143
    %v1155 = vpack.c.b16 %v1146, %v1145
    %v1156 = vpack.c.b16 %v1148, %v1147
    %1165 = vmatprep.subr.bf16.mxu0 0
    %1166 = vmatpush1.bf16.msra.mxu0 %v1149
    %1167 = vmatprep.subr.bf16.mxu0 0
    %1168 = vmatpush1.bf16.msra.mxu0 %v1150
    %1169 = vmatprep.subr.bf16.mxu0 0
    %1170 = vmatpush1.bf16.msra.mxu0 %v1151
    %1171 = vmatprep.subr.bf16.mxu0 0
    %1172 = vmatpush1.bf16.msra.mxu0 %v1152
    %1173 = vmatprep.subr.bf16.mxu0 0
    %1174 = vmatpush1.bf16.msra.mxu0 %v1153
    %1175 = vmatprep.subr.bf16.mxu0 0
    %1176 = vmatpush1.bf16.msra.mxu0 %v1154
    %1177 = vmatprep.subr.bf16.mxu0 0
    %1178 = vmatpush1.bf16.msra.mxu0 %v1155
    %1179 = vmatprep.subr.bf16.mxu0 0
    %1180 = vmatpush1.bf16.msra.mxu0 %v1156
    %1181 = vmatprep.subr.bf16.mxu0 0
    %1182 = vmatpush1.bf16.msra.mxu0 0
    %1183 = vmatprep.subr.bf16.mxu0 0
    %1184 = vmatpush1.bf16.msra.mxu0 0
    %1185 = vmatprep.subr.bf16.mxu0 0
    %1186 = vmatpush1.bf16.msra.mxu0 0
    %1187 = vmatprep.subr.bf16.mxu0 0
    %1188 = vmatpush1.bf16.msra.mxu0 0
    %1189 = vmatprep.subr.bf16.mxu0 0
    %1190 = vmatpush1.bf16.msra.mxu0 0
    %1191 = vmatprep.subr.bf16.mxu0 0
    %1192 = vmatpush1.bf16.msra.mxu0 0
    %1193 = vmatprep.subr.bf16.mxu0 0
    %1194 = vmatpush1.bf16.msra.mxu0 0
    %1195 = vmatprep.subr.bf16.mxu0 0
    %1196 = vmatpush1.bf16.msra.mxu0 0
    %1197 = vmatprep.mubr.bf16.mxu0 0
    %1198 = vmatmul.mubr.bf16.gmra.mrb[0].mxu0 %v400
    %v1199 = vpop.f32.mrb[0].mxu0
    %v1200 = vadd.f32 0.0, %v1199
    %v1201 = vpop.f32.mrb[0].mxu0
    %v1202 = vpop.f32.mrb[0].mxu0
    %v1203 = vadd.f32 0.0, %v1202
    %v1204 = vpop.f32.mrb[0].mxu0
    %1205 = vmatprep.mubr.bf16.mxu0 0
    %1206 = vmatmul.mubr.bf16.gmra.mrb[0].mxu0 %v401
    %v1207 = vpop.f32.mrb[0].mxu0
    %v1208 = vadd.f32 0.0, %v1207
    %v1209 = vpop.f32.mrb[0].mxu0
    %v1210 = vpop.f32.mrb[0].mxu0
    %v1211 = vadd.f32 0.0, %v1210
    %v1212 = vpop.f32.mrb[0].mxu0
    %1213 = vmatprep.mubr.bf16.mxu0 0
    %1214 = vmatmul.mubr.bf16.gmra.mrb[0].mxu0 %v402
    %v1215 = vpop.f32.mrb[0].mxu0
    %v1216 = vadd.f32 0.0, %v1215
    %v1217 = vpop.f32.mrb[0].mxu0
    %v1218 = vpop.f32.mrb[0].mxu0
    %v1219 = vadd.f32 0.0, %v1218
    %v1220 = vpop.f32.mrb[0].mxu0
    %1221 = vmatprep.mubr.bf16.mxu0 0
    %1222 = vmatmul.mubr.bf16.gmra.mrb[0].mxu0 %v403
    %v1223 = vpop.f32.mrb[0].mxu0
    %v1224 = vadd.f32 0.0, %v1223
    %v1225 = vpop.f32.mrb[0].mxu0
    %v1226 = vpop.f32.mrb[0].mxu0
    %v1227 = vadd.f32 0.0, %v1226
    %v1228 = vpop.f32.mrb[0].mxu0
    %1229 = vmatprep.mubr.bf16.mxu0 0
    %1230 = vmatmul.mubr.bf16.gmra.mrb[0].mxu0 %v404
    %v1231 = vpop.f32.mrb[0].mxu0
    %v1232 = vadd.f32 0.0, %v1231
    %v1233 = vpop.f32.mrb[0].mxu0
    %v1234 = vpop.f32.mrb[0].mxu0
    %v1235 = vadd.f32 0.0, %v1234
    %v1236 = vpop.f32.mrb[0].mxu0
    %1237 = vmatprep.mubr.bf16.mxu0 0
    %1238 = vmatmul.mubr.bf16.gmra.mrb[0].mxu0 %v405
    %v1239 = vpop.f32.mrb[0].mxu0
    %v1240 = vadd.f32 0.0, %v1239
    %v1241 = vpop.f32.mrb[0].mxu0
    %v1242 = vpop.f32.mrb[0].mxu0
    %v1243 = vadd.f32 0.0, %v1242
    %v1244 = vpop.f32.mrb[0].mxu0
    %1245 = vmatprep.mubr.bf16.mxu0 0
    %1246 = vmatmul.mubr.bf16.gmra.mrb[0].mxu0 %v406
    %v1247 = vpop.f32.mrb[0].mxu0
    %v1248 = vadd.f32 0.0, %v1247
    %v1249 = vpop.f32.mrb[0].mxu0
    %v1250 = vpop.f32.mrb[0].mxu0
    %v1251 = vadd.f32 0.0, %v1250
    %v1252 = vpop.f32.mrb[0].mxu0
    %1253 = vmatprep.mubr.bf16.mxu0 0
    %1254 = vmatmul.mubr.bf16.gmra.mrb[0].mxu0 %v407
    %v1255 = vpop.f32.mrb[0].mxu0
    %v1256 = vadd.f32 0.0, %v1255
    %v1257 = vpop.f32.mrb[0].mxu0
    %v1258 = vpop.f32.mrb[0].mxu0
    %v1259 = vadd.f32 0.0, %v1258
    %v1260 = vpop.f32.mrb[0].mxu0
    %1261 = vdwg.mxu0
    %v1262 = vadd.f32 %v1101, %v1200
    %v1263 = vadd.f32 %v1102, %v1203
    %v1264 = vadd.f32 %v1103, %v1208
    %v1265 = vadd.f32 %v1104, %v1211
    %v1266 = vadd.f32 %v1105, %v1216
    %v1267 = vadd.f32 %v1106, %v1219
    %v1268 = vadd.f32 %v1107, %v1224
    %v1269 = vadd.f32 %v1108, %v1227
    %v1270 = vadd.f32 %v1109, %v1232
    %v1271 = vadd.f32 %v1110, %v1235
    %v1272 = vadd.f32 %v1111, %v1240
    %v1273 = vadd.f32 %v1112, %v1243
    %v1274 = vadd.f32 %v1113, %v1248
    %v1275 = vadd.f32 %v1114, %v1251
    %v1276 = vadd.f32 %v1115, %v1256
    %v1277 = vadd.f32 %v1116, %v1259
    %1278 = vst [vmem:[#allocation8] sm:$0xff] %v1262
    %1279 = vst [vmem:[#allocation8 + $0x8] sm:$0xff] %v1263
    %1280 = vst [vmem:[#allocation8 + $0x10] sm:$0xff] %v1264
    %1281 = vst [vmem:[#allocation8 + $0x18] sm:$0xff] %v1265
    %1282 = vst [vmem:[#allocation8 + $0x20] sm:$0xff] %v1266
    %1283 = vst [vmem:[#allocation8 + $0x28] sm:$0xff] %v1267
    %1284 = vst [vmem:[#allocation8 + $0x30] sm:$0xff] %v1268
    %1285 = vst [vmem:[#allocation8 + $0x38] sm:$0xff] %v1269
    %1286 = vst [vmem:[#allocation8 + $0x40] sm:$0xff] %v1270
    %1287 = vst [vmem:[#allocation8 + $0x48] sm:$0xff] %v1271
    %1288 = vst [vmem:[#allocation8 + $0x50] sm:$0xff] %v1272
    %1289 = vst [vmem:[#allocation8 + $0x58] sm:$0xff] %v1273
    %1290 = vst [vmem:[#allocation8 + $0x60] sm:$0xff] %v1274
    %1291 = vst [vmem:[#allocation8 + $0x68] sm:$0xff] %v1275
    %1292 = vst [vmem:[#allocation8 + $0x70] sm:$0xff] %v1276
    %1293 = vst [vmem:[#allocation8 + $0x78] sm:$0xff] %v1277
    %vm1294 = vcmask 31744
    %1295 = vst.msk [vmem:[%s120] sm:$0xff] %vm1294, %v860
    %1296 = vst.msk [vmem:[%s120 + $0x8] sm:$0xff] %vm1294, %v861
    %1297 = vst.msk [vmem:[%s120 + $0x10] sm:$0xff] %vm1294, %v862
    %1298 = vst.msk [vmem:[%s120 + $0x18] sm:$0xff] %vm1294, %v863
    %1299 = vst.msk [vmem:[%s120 + $0x20] sm:$0xff] %vm1294, %v864
    %1300 = vst.msk [vmem:[%s120 + $0x28] sm:$0xff] %vm1294, %v865
    %1301 = vst.msk [vmem:[%s120 + $0x30] sm:$0xff] %vm1294, %v866
    %1302 = vst.msk [vmem:[%s120 + $0x38] sm:$0xff] %vm1294, %v867
    %1303 = vst.msk [vmem:[%s120 + $0x40] sm:$0xff] %vm1294, %v868
    %1304 = vst.msk [vmem:[%s120 + $0x48] sm:$0xff] %vm1294, %v869
    %1305 = vst.msk [vmem:[%s120 + $0x50] sm:$0xff] %vm1294, %v870
    %1306 = vst.msk [vmem:[%s120 + $0x58] sm:$0xff] %vm1294, %v871
    %1307 = vst.msk [vmem:[%s120 + $0x60] sm:$0xff] %vm1294, %v872
    %1308 = vst.msk [vmem:[%s120 + $0x68] sm:$0xff] %vm1294, %v873
    %1309 = vst.msk [vmem:[%s120 + $0x70] sm:$0xff] %vm1294, %v874
    %1310 = vst.msk [vmem:[%s120 + $0x78] sm:$0xff] %vm1294, %v875
    %s1311 = sadd.s32 0, 0
    %s1312 = smul.u32 16, %s1311
    %p1313 = scmp.lt.s32.totalorder %s1312, 15
    %s1314 = scalar_select %p1313, %s1312, 15
    %s1315 = smul.addr %s1314, 8
    %s1316 = scalar_lea.vmem %s7, %s1315
    // Predicated region
    $region42: #{tpu_custom_call.1} parent=1 // pred_check
      _
    $region43: #{tpu_custom_call.1} parent=1 // pred_check_branch
      %1318 = sbr.rel (0) target = $region45
    $region44: #{tpu_custom_call.1} parent=1 // pred_region
      %s1320 = ssub.s32 2048, 2048
      %1321 = vsyncadd [#allocation4], %s1320
      %s1322 = sshll.u32 [#allocation8], 4
      %s1323 = int_to_ptr.vmem [resolvable:$true] %s1322
      %1328 = dma.vmem_to_hbm [thread:$0]  %s1323, 2048, %s6, [#allocation4], 128, 128, 8
    $region45: #{tpu_custom_call.1} parent=1 // pred_fallthru
      _
    // Predicated region
    $region46: #{tpu_custom_call.1} parent=1 // pred_check
      _
    $region47: #{tpu_custom_call.1} parent=1 // pred_check_branch
      %1330 = sbr.rel (0) target = $region49
    $region48: #{tpu_custom_call.1} parent=1 // pred_region
      %s1331 = sadd.s32 0, 0
      %s1332 = smul.u32 16, %s1331
    $region49: #{tpu_custom_call.1} parent=1 // pred_fallthru
      _
    // Predicated region
    $region50: #{tpu_custom_call.1} parent=1 // pred_check
      _
    $region51: #{tpu_custom_call.1} parent=1 // pred_check_branch
      %1334 = sbr.rel (0) target = $region53
    $region52: #{tpu_custom_call.1} parent=1 // pred_region
      %1335 = dma.done [#allocation4], 2048
    $region53: #{tpu_custom_call.1} parent=1 // pred_fallthru
      _
    // Predicated region
    $region54: #{tpu_custom_call.1} parent=1 // pred_check
      _
    $region55: #{tpu_custom_call.1} parent=1 // pred_check_branch
      %1337 = sbr.rel (0) target = $region57
    $region56: #{tpu_custom_call.1} parent=1 // pred_region
      %s1338 = sadd.s32 0, 0
      %s1339 = smul.u32 16, %s1338
      %p1340 = scmp.lt.s32.totalorder %s1339, 15
      %s1341 = scalar_select %p1340, %s1339, 15
      %s1342 = smul.addr %s1341, 8
      %s1343 = scalar_lea.vmem %s7, %s1342
    $region57: #{tpu_custom_call.1} parent=1 // pred_fallthru
      _
    %1344 = vsyncpa [#allocation3], 1
    %1345 = vsyncpa [#allocation6], 1
    %1346 = vsyncpa [#allocation4], 1

// kernel: tpu_custom_call.1
$region0: #{tpu_custom_call.1}
  #allocation0 [shape = 'u32[]', space=smem, size = 0x4, offset = 0x4, fixed_abs, tag = 'smem constant byte address 0x4 - core index']
  #allocation1 [shape = 'u32[144,128]{1,0:T(1,128)}', space=vmem, size = 0x12000, scoped, tag = 'internal scratch']
  %s0 = inlined_call_operand.vmem [shape: s32[128,1], index: 0, kind: input, shape index: {}]
  %s1 = inlined_call_operand.vmem [shape: s32[1,128], index: 1, kind: input, shape index: {}]
  %s2 = inlined_call_operand.hbm [shape: bf16[128,128], index: 2, kind: input, shape index: {}]
  %s3 = inlined_call_operand.hbm [shape: bf16[128,128], index: 3, kind: input, shape index: {}]
  %s4 = inlined_call_operand.vmem [shape: f32[128,128], index: 4, kind: input, shape index: {}]
  %s5 = inlined_call_operand.hbm [shape: f32[128,128], index: 5, kind: input, shape index: {}]
  %s6 = inlined_call_operand.hbm [shape: f32[1,128,128], index: 6, kind: output, shape index: {0}]
  %s7 = inlined_call_operand.vmem [shape: f32[128,4], index: 7, kind: output, shape index: {1}]
  %8 = xla_tuple %s6, %s7
  %s9 = sld [smem:[#allocation0]]
  $region58: #{tpu_custom_call.1} parent=0
    _
  %s11 = ssub.s32 1, %s9
  %s12 = scalar_select 0, %s11, %s9
  $region1: #{tpu_custom_call.1} parent=0
    #allocation2 [shape = 'u8[32768]{0}', space=vmem, size = 0x8000, scoped, tag = 'input window, operand 2, single buffered']
    #allocation3 [shape = 's32[1]{0}', space=sflag, size = 0x4, scoped, tag = 'scoped memory for tpu_custom_call.1']
    #allocation4 [shape = 's32[1]{0}', space=sflag, size = 0x4, scoped, tag = 'scoped memory for tpu_custom_call.1']
    #allocation5 [shape = 'u8[32768]{0}', space=vmem, size = 0x8000, scoped, tag = 'input window, operand 3, single buffered']
    #allocation6 [shape = 's32[1]{0}', space=sflag, size = 0x4, scoped, tag = 'scoped memory for tpu_custom_call.1']
    #allocation7 [shape = 'u8[65536]{0}', space=vmem, size = 0x10000, scoped, tag = 'input window, operand 5, single buffered']
    #allocation8 [shape = 'u8[65536]{0}', space=vmem, size = 0x10000, scoped, tag = 'output window, operand 0, single buffered']
    %13 = vsyncpa [#allocation3], 0
    %14 = vsyncpa [#allocation6], 0
    %15 = vsyncpa [#allocation4], 0
    // Predicated region
    $region2: #{tpu_custom_call.1} parent=1 // pred_check
      _
    $region3: #{tpu_custom_call.1} parent=1 // pred_check_branch
      %17 = sbr.rel (0) target = $region5
    $region4: #{tpu_custom_call.1} parent=1 // pred_region
      %s18 = sadd.s32 0, 0
      %s19 = smul.u32 16, %s18
      %p20 = scmp.lt.s32.totalorder %s19, 15
      %s21 = scalar_select %p20, %s19, 15
      %s22 = smul.addr %s21, 8
      %s23 = scalar_lea.vmem %s0, %s22
      %s24 = sadd.s32 0, 0
      %s25 = smul.u32 16, %s24
    $region5: #{tpu_custom_call.1} parent=1 // pred_fallthru
      _
    // Predicated region
    $region6: #{tpu_custom_call.1} parent=1 // pred_check
      _
    $region7: #{tpu_custom_call.1} parent=1 // pred_check_branch
      %27 = sbr.rel (0) target = $region9
    $region8: #{tpu_custom_call.1} parent=1 // pred_region
      %s28 = sadd.s32 0, 0
      %p29 = scmp.lt.s32.totalorder %s28, 0
      %s30 = scalar_select %p29, %s28, 0
      %s31 = scalar_lea.vmem %s1, %s30
      %s32 = sadd.s32 0, 0
    $region9: #{tpu_custom_call.1} parent=1 // pred_fallthru
      _
    // Predicated region
    $region10: #{tpu_custom_call.1} parent=1 // pred_check
      _
    $region11: #{tpu_custom_call.1} parent=1 // pred_check_branch
      %34 = sbr.rel (0) target = $region13
    $region12: #{tpu_custom_call.1} parent=1 // pred_region
      %s36 = ssub.s32 1024, 1024
      %37 = vsyncadd [#allocation3], %s36
      %s38 = sshll.u32 [#allocation2], 4
      %s39 = int_to_ptr.vmem [resolvable:$true] %s38
      %44 = dma.hbm_to_vmem [thread:$0]  %s2, 1024, %s39, [#allocation3], 64, 64, 4
    $region13: #{tpu_custom_call.1} parent=1 // pred_fallthru
      _
    // Predicated region
    $region14: #{tpu_custom_call.1} parent=1 // pred_check
      _
    $region15: #{tpu_custom_call.1} parent=1 // pred_check_branch
      %46 = sbr.rel (0) target = $region17
    $region16: #{tpu_custom_call.1} parent=1 // pred_region
      %s47 = sadd.s32 0, 0
      %s48 = smul.u32 16, %s47
      %s50 = ssub.s32 1024, 1024
      %51 = vsyncadd [#allocation6], %s50
      %s52 = smul.addr %s48, 64
      %s53 = scalar_lea.hbm %s3, %s52
      %s54 = sshll.u32 [#allocation5], 4
      %s55 = int_to_ptr.vmem [resolvable:$true] %s54
      %60 = dma.hbm_to_vmem [thread:$0]  %s53, 1024, %s55, [#allocation6], 64, 64, 4
    $region17: #{tpu_custom_call.1} parent=1 // pred_fallthru
      _
    // Predicated region
    $region18: #{tpu_custom_call.1} parent=1 // pred_check
      _
    $region19: #{tpu_custom_call.1} parent=1 // pred_check_branch
      %62 = sbr.rel (0) target = $region21
    $region20: #{tpu_custom_call.1} parent=1 // pred_region
      _
    $region21: #{tpu_custom_call.1} parent=1 // pred_fallthru
      _
    // Predicated region
    $region22: #{tpu_custom_call.1} parent=1 // pred_check
      _
    $region23: #{tpu_custom_call.1} parent=1 // pred_check_branch
      %64 = sbr.rel (0) target = $region25
    $region24: #{tpu_custom_call.1} parent=1 // pred_region
      %s66 = ssub.s32 2048, 2048
      %67 = vsyncadd [#allocation6], %s66
      %s68 = sshll.u32 [#allocation7], 4
      %s69 = int_to_ptr.vmem [resolvable:$true] %s68
      %74 = dma.hbm_to_vmem [thread:$0]  %s5, 2048, %s69, [#allocation6], 128, 128, 8
    $region25: #{tpu_custom_call.1} parent=1 // pred_fallthru
      _
    // Predicated region
    $region26: #{tpu_custom_call.1} parent=1 // pred_check
      _
    $region27: #{tpu_custom_call.1} parent=1 // pred_check_branch
      %76 = sbr.rel (0) target = $region29
    $region28: #{tpu_custom_call.1} parent=1 // pred_region
      %77 = dma.done [#allocation3], 1024
    $region29: #{tpu_custom_call.1} parent=1 // pred_fallthru
      _
    // Predicated region
    $region30: #{tpu_custom_call.1} parent=1 // pred_check
      _
    $region31: #{tpu_custom_call.1} parent=1 // pred_check_branch
      %79 = sbr.rel (0) target = $region33
    $region32: #{tpu_custom_call.1} parent=1 // pred_region
      %80 = dma.done [#allocation6], 1024
    $region33: #{tpu_custom_call.1} parent=1 // pred_fallthru
      _
    // Predicated region
    $region34: #{tpu_custom_call.1} parent=1 // pred_check
      _
    $region35: #{tpu_custom_call.1} parent=1 // pred_check_branch
      %82 = sbr.rel (0) target = $region37
    $region36: #{tpu_custom_call.1} parent=1 // pred_region
      %83 = dma.done [#allocation6], 2048
    $region37: #{tpu_custom_call.1} parent=1 // pred_fallthru
      _
    %s84 = sadd.s32 0, 0
    %s85 = smul.u32 16, %s84
    %p86 = scmp.lt.s32.totalorder %s85, 15
    %s87 = scalar_select %p86, %s85, 15
    %s88 = smul.addr %s87, 8
    %s89 = scalar_lea.vmem %s0, %s88
    %s90 = sadd.s32 0, 0
    %p91 = scmp.lt.s32.totalorder %s90, 0
    %s92 = scalar_select %p91, %s90, 0
    %s93 = scalar_lea.vmem %s1, %s92
    %s94 = sadd.s32 0, 0
    %s95 = smul.u32 16, %s94
    %p96 = scmp.lt.s32.totalorder %s95, 15
    %s97 = scalar_select %p96, %s95, 15
    %s98 = smul.addr %s97, 8
    %s99 = scalar_lea.vmem %s7, %s98
    %s100 = sadd.s32 0, 0
    %s101 = smul.u32 16, %s100
    %p102 = scmp.lt.s32.totalorder %s101, 15
    %s103 = scalar_select %p102, %s101, 15
    %s104 = smul.addr %s103, 8
    %s105 = scalar_lea.vmem %s0, %s104
    %s106 = sadd.s32 0, 0
    %s107 = smul.u32 16, %s106
    %s108 = sadd.s32 0, 0
    %p109 = scmp.lt.s32.totalorder %s108, 0
    %s110 = scalar_select %p109, %s108, 0
    %s111 = scalar_lea.vmem %s1, %s110
    %s112 = sadd.s32 0, 0
    %s113 = sadd.s32 0, 0
    %s114 = smul.u32 16, %s113
    %s115 = sadd.s32 0, 0
    %s116 = smul.u32 16, %s115
    %p117 = scmp.lt.s32.totalorder %s116, 15
    %s118 = scalar_select %p117, %s116, 15
    %s119 = smul.addr %s118, 8
    %s120 = scalar_lea.vmem %s7, %s119
    %s121 = sadd.s32 0, 0
    %s122 = smul.u32 16, %s121
    %p124 = scmp.eq.s32.totalorder 0, 0
    // Predicated region
    $region38: #{tpu_custom_call.1} parent=1 // pred_check
      %p125 = pneg %p124
    $region39: #{tpu_custom_call.1} parent=1 // pred_check_branch
      %127 = sbr.rel (%p125) target = $region41
    $region40: #{tpu_custom_call.1} parent=1 // pred_region
      %128 = vst [vmem:[#allocation8] sm:$0xff] 0.0
      %129 = vst [vmem:[#allocation8 + $0x8] sm:$0xff] 0.0
      %130 = vst [vmem:[#allocation8 + $0x10] sm:$0xff] 0.0
      %131 = vst [vmem:[#allocation8 + $0x18] sm:$0xff] 0.0
      %132 = vst [vmem:[#allocation8 + $0x20] sm:$0xff] 0.0
      %133 = vst [vmem:[#allocation8 + $0x28] sm:$0xff] 0.0
      %134 = vst [vmem:[#allocation8 + $0x30] sm:$0xff] 0.0
      %135 = vst [vmem:[#allocation8 + $0x38] sm:$0xff] 0.0
      %136 = vst [vmem:[#allocation8 + $0x40] sm:$0xff] 0.0
      %137 = vst [vmem:[#allocation8 + $0x48] sm:$0xff] 0.0
      %138 = vst [vmem:[#allocation8 + $0x50] sm:$0xff] 0.0
      %139 = vst [vmem:[#allocation8 + $0x58] sm:$0xff] 0.0
      %140 = vst [vmem:[#allocation8 + $0x60] sm:$0xff] 0.0
      %141 = vst [vmem:[#allocation8 + $0x68] sm:$0xff] 0.0
      %142 = vst [vmem:[#allocation8 + $0x70] sm:$0xff] 0.0
      %143 = vst [vmem:[#allocation8 + $0x78] sm:$0xff] 0.0
    $region41: #{tpu_custom_call.1} parent=1 // pred_fallthru
      _
    %v144 = vld [vmem:[%s105] sm:$0xff]
    %v145 = vld [vmem:[%s105 + $0x8] sm:$0xff]
    %v146 = vld [vmem:[%s105 + $0x10] sm:$0xff]
    %v147 = vld [vmem:[%s105 + $0x18] sm:$0xff]
    %v148 = vld [vmem:[%s105 + $0x20] sm:$0xff]
    %v149 = vld [vmem:[%s105 + $0x28] sm:$0xff]
    %v150 = vld [vmem:[%s105 + $0x30] sm:$0xff]
    %v151 = vld [vmem:[%s105 + $0x38] sm:$0xff]
    %v152 = vld [vmem:[%s105 + $0x40] sm:$0xff]
    %v153 = vld [vmem:[%s105 + $0x48] sm:$0xff]
    %v154 = vld [vmem:[%s105 + $0x50] sm:$0xff]
    %v155 = vld [vmem:[%s105 + $0x58] sm:$0xff]
    %v156 = vld [vmem:[%s105 + $0x60] sm:$0xff]
    %v157 = vld [vmem:[%s105 + $0x68] sm:$0xff]
    %v158 = vld [vmem:[%s105 + $0x70] sm:$0xff]
    %v159 = vld [vmem:[%s105 + $0x78] sm:$0xff]
    %v160 = vld [vmem:[%s111] sm:$0x1]
    %v161 = vld [vmem:[#allocation2] sm:$0xf]
    %v162 = vld [vmem:[#allocation2 + $0x4] sm:$0xf]
    %v163 = vld [vmem:[#allocation2 + $0x8] sm:$0xf]
    %v164 = vld [vmem:[#allocation2 + $0xc] sm:$0xf]
    %v165 = vld [vmem:[#allocation2 + $0x10] sm:$0xf]
    %v166 = vld [vmem:[#allocation2 + $0x14] sm:$0xf]
    %v167 = vld [vmem:[#allocation2 + $0x18] sm:$0xf]
    %v168 = vld [vmem:[#allocation2 + $0x1c] sm:$0xf]
    %v169 = vld [vmem:[#allocation2 + $0x20] sm:$0xf]
    %v170 = vld [vmem:[#allocation2 + $0x24] sm:$0xf]
    %v171 = vld [vmem:[#allocation2 + $0x28] sm:$0xf]
    %v172 = vld [vmem:[#allocation2 + $0x2c] sm:$0xf]
    %v173 = vld [vmem:[#allocation2 + $0x30] sm:$0xf]
    %v174 = vld [vmem:[#allocation2 + $0x34] sm:$0xf]
    %v175 = vld [vmem:[#allocation2 + $0x38] sm:$0xf]
    %v176 = vld [vmem:[#allocation2 + $0x3c] sm:$0xf]
    %v177 = vld [vmem:[#allocation5] sm:$0xf]
    %v178 = vld [vmem:[#allocation5 + $0x4] sm:$0xf]
    %v179 = vld [vmem:[#allocation5 + $0x8] sm:$0xf]
    %v180 = vld [vmem:[#allocation5 + $0xc] sm:$0xf]
    %v181 = vld [vmem:[#allocation5 + $0x10] sm:$0xf]
    %v182 = vld [vmem:[#allocation5 + $0x14] sm:$0xf]
    %v183 = vld [vmem:[#allocation5 + $0x18] sm:$0xf]
    %v184 = vld [vmem:[#allocation5 + $0x1c] sm:$0xf]
    %v185 = vld [vmem:[#allocation5 + $0x20] sm:$0xf]
    %v186 = vld [vmem:[#allocation5 + $0x24] sm:$0xf]
    %v187 = vld [vmem:[#allocation5 + $0x28] sm:$0xf]
    %v188 = vld [vmem:[#allocation5 + $0x2c] sm:$0xf]
    %v189 = vld [vmem:[#allocation5 + $0x30] sm:$0xf]
    %v190 = vld [vmem:[#allocation5 + $0x34] sm:$0xf]
    %v191 = vld [vmem:[#allocation5 + $0x38] sm:$0xf]
    %v192 = vld [vmem:[#allocation5 + $0x3c] sm:$0xf]
    %v193 = vld [vmem:[%s4] sm:$0xff]
    %v194 = vld [vmem:[%s4 + $0x8] sm:$0xff]
    %v195 = vld [vmem:[%s4 + $0x10] sm:$0xff]
    %v196 = vld [vmem:[%s4 + $0x18] sm:$0xff]
    %v197 = vld [vmem:[%s4 + $0x20] sm:$0xff]
    %v198 = vld [vmem:[%s4 + $0x28] sm:$0xff]
    %v199 = vld [vmem:[%s4 + $0x30] sm:$0xff]
    %v200 = vld [vmem:[%s4 + $0x38] sm:$0xff]
    %v201 = vld [vmem:[%s4 + $0x40] sm:$0xff]
    %v202 = vld [vmem:[%s4 + $0x48] sm:$0xff]
    %v203 = vld [vmem:[%s4 + $0x50] sm:$0xff]
    %v204 = vld [vmem:[%s4 + $0x58] sm:$0xff]
    %v205 = vld [vmem:[%s4 + $0x60] sm:$0xff]
    %v206 = vld [vmem:[%s4 + $0x68] sm:$0xff]
    %v207 = vld [vmem:[%s4 + $0x70] sm:$0xff]
    %v208 = vld [vmem:[%s4 + $0x78] sm:$0xff]
    %v209 = vld [vmem:[#allocation7] sm:$0xff]
    %v210 = vld [vmem:[#allocation7 + $0x8] sm:$0xff]
    %v211 = vld [vmem:[#allocation7 + $0x10] sm:$0xff]
    %v212 = vld [vmem:[#allocation7 + $0x18] sm:$0xff]
    %v213 = vld [vmem:[#allocation7 + $0x20] sm:$0xff]
    %v214 = vld [vmem:[#allocation7 + $0x28] sm:$0xff]
    %v215 = vld [vmem:[#allocation7 + $0x30] sm:$0xff]
    %v216 = vld [vmem:[#allocation7 + $0x38] sm:$0xff]
    %v217 = vld [vmem:[#allocation7 + $0x40] sm:$0xff]
    %v218 = vld [vmem:[#allocation7 + $0x48] sm:$0xff]
    %v219 = vld [vmem:[#allocation7 + $0x50] sm:$0xff]
    %v220 = vld [vmem:[#allocation7 + $0x58] sm:$0xff]
    %v221 = vld [vmem:[#allocation7 + $0x60] sm:$0xff]
    %v222 = vld [vmem:[#allocation7 + $0x68] sm:$0xff]
    %v223 = vld [vmem:[#allocation7 + $0x70] sm:$0xff]
    %v224 = vld [vmem:[#allocation7 + $0x78] sm:$0xff]
    %v225 = vlaneseq
    %v226 = vand.u32 %v225, 127
    %227 = vset.pattern.permute.xlu0 0
    %228 = vperm.xlu0 %227, %v144
    %v229 = vpop.permute.xlu0 %228
    %230 = vset.pattern.permute.xlu0 0
    %231 = vperm.xlu0 %230, %v145
    %v232 = vpop.permute.xlu0 %231
    %233 = vset.pattern.permute.xlu0 0
    %234 = vperm.xlu0 %233, %v146
    %v235 = vpop.permute.xlu0 %234
    %236 = vset.pattern.permute.xlu0 0
    %237 = vperm.xlu0 %236, %v147
    %v238 = vpop.permute.xlu0 %237
    %239 = vset.pattern.permute.xlu0 0
    %240 = vperm.xlu0 %239, %v148
    %v241 = vpop.permute.xlu0 %240
    %242 = vset.pattern.permute.xlu0 0
    %243 = vperm.xlu0 %242, %v149
    %v244 = vpop.permute.xlu0 %243
    %245 = vset.pattern.permute.xlu0 0
    %246 = vperm.xlu0 %245, %v150
    %v247 = vpop.permute.xlu0 %246
    %248 = vset.pattern.permute.xlu0 0
    %249 = vperm.xlu0 %248, %v151
    %v250 = vpop.permute.xlu0 %249
    %251 = vset.pattern.permute.xlu0 0
    %252 = vperm.xlu0 %251, %v152
    %v253 = vpop.permute.xlu0 %252
    %254 = vset.pattern.permute.xlu0 0
    %255 = vperm.xlu0 %254, %v153
    %v256 = vpop.permute.xlu0 %255
    %257 = vset.pattern.permute.xlu0 0
    %258 = vperm.xlu0 %257, %v154
    %v259 = vpop.permute.xlu0 %258
    %260 = vset.pattern.permute.xlu0 0
    %261 = vperm.xlu0 %260, %v155
    %v262 = vpop.permute.xlu0 %261
    %263 = vset.pattern.permute.xlu0 0
    %264 = vperm.xlu0 %263, %v156
    %v265 = vpop.permute.xlu0 %264
    %266 = vset.pattern.permute.xlu0 0
    %267 = vperm.xlu0 %266, %v157
    %v268 = vpop.permute.xlu0 %267
    %269 = vset.pattern.permute.xlu0 0
    %270 = vperm.xlu0 %269, %v158
    %v271 = vpop.permute.xlu0 %270
    %272 = vset.pattern.permute.xlu0 0
    %273 = vperm.xlu0 %272, %v159
    %v274 = vpop.permute.xlu0 %273
    %vm275 = vcmp.eq.s32.totalorder %v226, %v229
    %vm276 = vcmp.eq.s32.totalorder %v226, %v232
    %vm277 = vcmp.eq.s32.totalorder %v226, %v235
    %vm278 = vcmp.eq.s32.totalorder %v226, %v238
    %vm279 = vcmp.eq.s32.totalorder %v226, %v241
    %vm280 = vcmp.eq.s32.totalorder %v226, %v244
    %vm281 = vcmp.eq.s32.totalorder %v226, %v247
    %vm282 = vcmp.eq.s32.totalorder %v226, %v250
    %vm283 = vcmp.eq.s32.totalorder %v226, %v253
    %vm284 = vcmp.eq.s32.totalorder %v226, %v256
    %vm285 = vcmp.eq.s32.totalorder %v226, %v259
    %vm286 = vcmp.eq.s32.totalorder %v226, %v262
    %vm287 = vcmp.eq.s32.totalorder %v226, %v265
    %vm288 = vcmp.eq.s32.totalorder %v226, %v268
    %vm289 = vcmp.eq.s32.totalorder %v226, %v271
    %vm290 = vcmp.eq.s32.totalorder %v226, %v274
    %v291 = vsel %vm275, 1, 0
    %v292 = vsel %vm276, 1, 0
    %v293 = vsel %vm277, 1, 0
    %v294 = vsel %vm278, 1, 0
    %v295 = vsel %vm279, 1, 0
    %v296 = vsel %vm280, 1, 0
    %v297 = vsel %vm281, 1, 0
    %v298 = vsel %vm282, 1, 0
    %v299 = vsel %vm283, 1, 0
    %v300 = vsel %vm284, 1, 0
    %v301 = vsel %vm285, 1, 0
    %v302 = vsel %vm286, 1, 0
    %v303 = vsel %vm287, 1, 0
    %v304 = vsel %vm288, 1, 0
    %v305 = vsel %vm289, 1, 0
    %v306 = vsel %vm290, 1, 0
    %v307 = vcvt.s32.f32 %v291
    %v308 = vcvt.s32.f32 %v292
    %v309 = vcvt.s32.f32 %v293
    %v310 = vcvt.s32.f32 %v294
    %v311 = vcvt.s32.f32 %v295
    %v312 = vcvt.s32.f32 %v296
    %v313 = vcvt.s32.f32 %v297
    %v314 = vcvt.s32.f32 %v298
    %v315 = vcvt.s32.f32 %v299
    %v316 = vcvt.s32.f32 %v300
    %v317 = vcvt.s32.f32 %v301
    %v318 = vcvt.s32.f32 %v302
    %v319 = vcvt.s32.f32 %v303
    %v320 = vcvt.s32.f32 %v304
    %v321 = vcvt.s32.f32 %v305
    %v322 = vcvt.s32.f32 %v306
    %v323 = vpack.c.bf16 %v308, %v307
    %v324 = vpack.c.bf16 %v310, %v309
    %v325 = vpack.c.bf16 %v312, %v311
    %v326 = vpack.c.bf16 %v314, %v313
    %v327 = vpack.c.bf16 %v316, %v315
    %v328 = vpack.c.bf16 %v318, %v317
    %v329 = vpack.c.bf16 %v320, %v319
    %v330 = vpack.c.bf16 %v322, %v321
    %v331 = vlaneseq
    %v332 = vshrl.u32 %v331, 7
    %v333 = vadd.s32 %v332, 8
    %v334 = vadd.s32 %v332, 16
    %v335 = vadd.s32 %v332, 24
    %v336 = vadd.s32 %v332, 32
    %v337 = vadd.s32 %v332, 40
    %v338 = vadd.s32 %v332, 48
    %v339 = vadd.s32 %v332, 56
    %v340 = vadd.s32 %v332, 64
    %v341 = vadd.s32 %v332, 72
    %v342 = vadd.s32 %v332, 80
    %v343 = vadd.s32 %v332, 88
    %v344 = vadd.s32 %v332, 96
    %v345 = vadd.s32 %v332, 104
    %v346 = vadd.s32 %v332, 112
    %v347 = vadd.s32 %v332, 120
    %v348 = vlaneseq
    %v349 = vshrl.u32 %v348, 7
    %v350 = vsub.s32 0, %v349
    %v351 = vrot.slane %v160, %v350
    %vm352 = vcmp.eq.s32.totalorder %v332, %v351
    %vm353 = vcmp.eq.s32.totalorder %v333, %v351
    %vm354 = vcmp.eq.s32.totalorder %v334, %v351
    %vm355 = vcmp.eq.s32.totalorder %v335, %v351
    %vm356 = vcmp.eq.s32.totalorder %v336, %v351
    %vm357 = vcmp.eq.s32.totalorder %v337, %v351
    %vm358 = vcmp.eq.s32.totalorder %v338, %v351
    %vm359 = vcmp.eq.s32.totalorder %v339, %v351
    %vm360 = vcmp.eq.s32.totalorder %v340, %v351
    %vm361 = vcmp.eq.s32.totalorder %v341, %v351
    %vm362 = vcmp.eq.s32.totalorder %v342, %v351
    %vm363 = vcmp.eq.s32.totalorder %v343, %v351
    %vm364 = vcmp.eq.s32.totalorder %v344, %v351
    %vm365 = vcmp.eq.s32.totalorder %v345, %v351
    %vm366 = vcmp.eq.s32.totalorder %v346, %v351
    %vm367 = vcmp.eq.s32.totalorder %v347, %v351
    %v368 = vsel %vm352, 1, 0
    %v369 = vsel %vm353, 1, 0
    %v370 = vsel %vm354, 1, 0
    %v371 = vsel %vm355, 1, 0
    %v372 = vsel %vm356, 1, 0
    %v373 = vsel %vm357, 1, 0
    %v374 = vsel %vm358, 1, 0
    %v375 = vsel %vm359, 1, 0
    %v376 = vsel %vm360, 1, 0
    %v377 = vsel %vm361, 1, 0
    %v378 = vsel %vm362, 1, 0
    %v379 = vsel %vm363, 1, 0
    %v380 = vsel %vm364, 1, 0
    %v381 = vsel %vm365, 1, 0
    %v382 = vsel %vm366, 1, 0
    %v383 = vsel %vm367, 1, 0
    %v384 = vcvt.s32.f32 %v368
    %v385 = vcvt.s32.f32 %v369
    %v386 = vcvt.s32.f32 %v370
    %v387 = vcvt.s32.f32 %v371
    %v388 = vcvt.s32.f32 %v372
    %v389 = vcvt.s32.f32 %v373
    %v390 = vcvt.s32.f32 %v374
    %v391 = vcvt.s32.f32 %v375
    %v392 = vcvt.s32.f32 %v376
    %v393 = vcvt.s32.f32 %v377
    %v394 = vcvt.s32.f32 %v378
    %v395 = vcvt.s32.f32 %v379
    %v396 = vcvt.s32.f32 %v380
    %v397 = vcvt.s32.f32 %v381
    %v398 = vcvt.s32.f32 %v382
    %v399 = vcvt.s32.f32 %v383
    %v400 = vpack.c.bf16 %v385, %v384
    %v401 = vpack.c.bf16 %v387, %v386
    %v402 = vpack.c.bf16 %v389, %v388
    %v403 = vpack.c.bf16 %v391, %v390
    %v404 = vpack.c.bf16 %v393, %v392
    %v405 = vpack.c.bf16 %v395, %v394
    %v406 = vpack.c.bf16 %v397, %v396
    %v407 = vpack.c.bf16 %v399, %v398
    %v424 = vunpack.c.l.b16 %v161
    %v425 = vunpack.c.l.b16 %v162
    %v426 = vunpack.c.l.b16 %v163
    %v427 = vunpack.c.l.b16 %v164
    %v428 = vunpack.c.l.b16 %v165
    %v429 = vunpack.c.l.b16 %v166
    %v430 = vunpack.c.l.b16 %v167
    %v431 = vunpack.c.l.b16 %v168
    %v432 = vunpack.c.l.b16 %v169
    %v433 = vunpack.c.l.b16 %v170
    %v434 = vunpack.c.l.b16 %v171
    %v435 = vunpack.c.l.b16 %v172
    %v436 = vunpack.c.l.b16 %v173
    %v437 = vunpack.c.l.b16 %v174
    %v438 = vunpack.c.l.b16 %v175
    %v439 = vunpack.c.l.b16 %v176
    %v440 = vpack.c.b16 %v425, %v424
    %v441 = vpack.c.b16 %v427, %v426
    %v442 = vpack.c.b16 %v429, %v428
    %v443 = vpack.c.b16 %v431, %v430
    %v444 = vpack.c.b16 %v433, %v432
    %v445 = vpack.c.b16 %v435, %v434
    %v446 = vpack.c.b16 %v437, %v436
    %v447 = vpack.c.b16 %v439, %v438
    %456 = vmatprep.subr.bf16.mxu0 0
    %457 = vmatpush1.bf16.msra.mxu0 %v440
    %458 = vmatprep.subr.bf16.mxu0 0
    %459 = vmatpush1.bf16.msra.mxu0 %v441
    %460 = vmatprep.subr.bf16.mxu0 0
    %461 = vmatpush1.bf16.msra.mxu0 %v442
    %462 = vmatprep.subr.bf16.mxu0 0
    %463 = vmatpush1.bf16.msra.mxu0 %v443
    %464 = vmatprep.subr.bf16.mxu0 0
    %465 = vmatpush1.bf16.msra.mxu0 %v444
    %466 = vmatprep.subr.bf16.mxu0 0
    %467 = vmatpush1.bf16.msra.mxu0 %v445
    %468 = vmatprep.subr.bf16.mxu0 0
    %469 = vmatpush1.bf16.msra.mxu0 %v446
    %470 = vmatprep.subr.bf16.mxu0 0
    %471 = vmatpush1.bf16.msra.mxu0 %v447
    %472 = vmatprep.subr.bf16.mxu0 0
    %473 = vmatpush1.bf16.msra.mxu0 0
    %474 = vmatprep.subr.bf16.mxu0 0
    %475 = vmatpush1.bf16.msra.mxu0 0
    %476 = vmatprep.subr.bf16.mxu0 0
    %477 = vmatpush1.bf16.msra.mxu0 0
    %478 = vmatprep.subr.bf16.mxu0 0
    %479 = vmatpush1.bf16.msra.mxu0 0
    %480 = vmatprep.subr.bf16.mxu0 0
    %481 = vmatpush1.bf16.msra.mxu0 0
    %482 = vmatprep.subr.bf16.mxu0 0
    %483 = vmatpush1.bf16.msra.mxu0 0
    %484 = vmatprep.subr.bf16.mxu0 0
    %485 = vmatpush1.bf16.msra.mxu0 0
    %486 = vmatprep.subr.bf16.mxu0 0
    %487 = vmatpush1.bf16.msra.mxu0 0
    %488 = vmatprep.mubr.bf16.mxu0 0
    %489 = vmatmul.mubr.bf16.gmra.mrb[0].mxu0 %v323
    %v490 = vpop.f32.mrb[0].mxu0
    %v491 = vadd.f32 0.0, %v490
    %v492 = vpop.f32.mrb[0].mxu0
    %v493 = vpop.f32.mrb[0].mxu0
    %v494 = vadd.f32 0.0, %v493
    %v495 = vpop.f32.mrb[0].mxu0
    %496 = vmatprep.mubr.bf16.mxu0 0
    %497 = vmatmul.mubr.bf16.gmra.mrb[0].mxu0 %v324
    %v498 = vpop.f32.mrb[0].mxu0
    %v499 = vadd.f32 0.0, %v498
    %v500 = vpop.f32.mrb[0].mxu0
    %v501 = vpop.f32.mrb[0].mxu0
    %v502 = vadd.f32 0.0, %v501
    %v503 = vpop.f32.mrb[0].mxu0
    %504 = vmatprep.mubr.bf16.mxu0 0
    %505 = vmatmul.mubr.bf16.gmra.mrb[0].mxu0 %v325
    %v506 = vpop.f32.mrb[0].mxu0
    %v507 = vadd.f32 0.0, %v506
    %v508 = vpop.f32.mrb[0].mxu0
    %v509 = vpop.f32.mrb[0].mxu0
    %v510 = vadd.f32 0.0, %v509
    %v511 = vpop.f32.mrb[0].mxu0
    %512 = vmatprep.mubr.bf16.mxu0 0
    %513 = vmatmul.mubr.bf16.gmra.mrb[0].mxu0 %v326
    %v514 = vpop.f32.mrb[0].mxu0
    %v515 = vadd.f32 0.0, %v514
    %v516 = vpop.f32.mrb[0].mxu0
    %v517 = vpop.f32.mrb[0].mxu0
    %v518 = vadd.f32 0.0, %v517
    %v519 = vpop.f32.mrb[0].mxu0
    %520 = vmatprep.mubr.bf16.mxu0 0
    %521 = vmatmul.mubr.bf16.gmra.mrb[0].mxu0 %v327
    %v522 = vpop.f32.mrb[0].mxu0
    %v523 = vadd.f32 0.0, %v522
    %v524 = vpop.f32.mrb[0].mxu0
    %v525 = vpop.f32.mrb[0].mxu0
    %v526 = vadd.f32 0.0, %v525
    %v527 = vpop.f32.mrb[0].mxu0
    %528 = vmatprep.mubr.bf16.mxu0 0
    %529 = vmatmul.mubr.bf16.gmra.mrb[0].mxu0 %v328
    %v530 = vpop.f32.mrb[0].mxu0
    %v531 = vadd.f32 0.0, %v530
    %v532 = vpop.f32.mrb[0].mxu0
    %v533 = vpop.f32.mrb[0].mxu0
    %v534 = vadd.f32 0.0, %v533
    %v535 = vpop.f32.mrb[0].mxu0
    %536 = vmatprep.mubr.bf16.mxu0 0
    %537 = vmatmul.mubr.bf16.gmra.mrb[0].mxu0 %v329
    %v538 = vpop.f32.mrb[0].mxu0
    %v539 = vadd.f32 0.0, %v538
    %v540 = vpop.f32.mrb[0].mxu0
    %v541 = vpop.f32.mrb[0].mxu0
    %v542 = vadd.f32 0.0, %v541
    %v543 = vpop.f32.mrb[0].mxu0
    %544 = vmatprep.mubr.bf16.mxu0 0
    %545 = vmatmul.mubr.bf16.gmra.mrb[0].mxu0 %v330
    %v546 = vpop.f32.mrb[0].mxu0
    %v547 = vadd.f32 0.0, %v546
    %v548 = vpop.f32.mrb[0].mxu0
    %v549 = vpop.f32.mrb[0].mxu0
    %v550 = vadd.f32 0.0, %v549
    %v551 = vpop.f32.mrb[0].mxu0
    %552 = vdwg.mxu0
    %v553 = vunpack.c.l.bf16 %v177
    %v554 = vunpack.c.l.bf16 %v178
    %v555 = vunpack.c.l.bf16 %v179
    %v556 = vunpack.c.l.bf16 %v180
    %v557 = vunpack.c.l.bf16 %v181
    %v558 = vunpack.c.l.bf16 %v182
    %v559 = vunpack.c.l.bf16 %v183
    %v560 = vunpack.c.l.bf16 %v184
    %v561 = vunpack.c.l.bf16 %v185
    %v562 = vunpack.c.l.bf16 %v186
    %v563 = vunpack.c.l.bf16 %v187
    %v564 = vunpack.c.l.bf16 %v188
    %v565 = vunpack.c.l.bf16 %v189
    %v566 = vunpack.c.l.bf16 %v190
    %v567 = vunpack.c.l.bf16 %v191
    %v568 = vunpack.c.l.bf16 %v192
    %v569 = vmul.f32 %v553, %v491
    %v570 = vmul.f32 %v554, %v494
    %v571 = vmul.f32 %v555, %v499
    %v572 = vmul.f32 %v556, %v502
    %v573 = vmul.f32 %v557, %v507
    %v574 = vmul.f32 %v558, %v510
    %v575 = vmul.f32 %v559, %v515
    %v576 = vmul.f32 %v560, %v518
    %v577 = vmul.f32 %v561, %v523
    %v578 = vmul.f32 %v562, %v526
    %v579 = vmul.f32 %v563, %v531
    %v580 = vmul.f32 %v564, %v534
    %v581 = vmul.f32 %v565, %v539
    %v582 = vmul.f32 %v566, %v542
    %v583 = vmul.f32 %v567, %v547
    %v584 = vmul.f32 %v568, %v550
    %vm585 = vcmp.ge.s32.totalorder %v226, 4
    %v586 = vsel %vm585, -1e+30, 0.0
    %587 = vmatprep.subr.mxu0 0.0
    %588 = vmatpush1.msra.mxu0 %v193
    %589 = vmatprep.subr.mxu0 0.0
    %590 = vmatpush1.msra.mxu0 %v194
    %591 = vmatprep.subr.mxu0 0.0
    %592 = vmatpush1.msra.mxu0 %v195
    %593 = vmatprep.subr.mxu0 0.0
    %594 = vmatpush1.msra.mxu0 %v196
    %595 = vmatprep.subr.mxu0 0.0
    %596 = vmatpush1.msra.mxu0 %v197
    %597 = vmatprep.subr.mxu0 0.0
    %598 = vmatpush1.msra.mxu0 %v198
    %599 = vmatprep.subr.mxu0 0.0
    %600 = vmatpush1.msra.mxu0 %v199
    %601 = vmatprep.subr.mxu0 0.0
    %602 = vmatpush1.msra.mxu0 %v200
    %603 = vmatprep.subr.mxu0 0.0
    %604 = vmatpush1.msra.mxu0 %v201
    %605 = vmatprep.subr.mxu0 0.0
    %606 = vmatpush1.msra.mxu0 %v202
    %607 = vmatprep.subr.mxu0 0.0
    %608 = vmatpush1.msra.mxu0 %v203
    %609 = vmatprep.subr.mxu0 0.0
    %610 = vmatpush1.msra.mxu0 %v204
    %611 = vmatprep.subr.mxu0 0.0
    %612 = vmatpush1.msra.mxu0 %v205
    %613 = vmatprep.subr.mxu0 0.0
    %614 = vmatpush1.msra.mxu0 %v206
    %615 = vmatprep.subr.mxu0 0.0
    %616 = vmatpush1.msra.mxu0 %v207
    %617 = vmatprep.subr.mxu0 0.0
    %618 = vmatpush1.msra.mxu0 %v208
    %619 = vmatprep.subr.mxu0 0.0
    %620 = vmatpush1.msra.mxu0 0.0
    %621 = vmatprep.subr.mxu0 0.0
    %622 = vmatpush1.msra.mxu0 0.0
    %623 = vmatprep.subr.mxu0 0.0
    %624 = vmatpush1.msra.mxu0 0.0
    %625 = vmatprep.subr.mxu0 0.0
    %626 = vmatpush1.msra.mxu0 0.0
    %627 = vmatprep.subr.mxu0 0.0
    %628 = vmatpush1.msra.mxu0 0.0
    %629 = vmatprep.subr.mxu0 0.0
    %630 = vmatpush1.msra.mxu0 0.0
    %631 = vmatprep.subr.mxu0 0.0
    %632 = vmatpush1.msra.mxu0 0.0
    %633 = vmatprep.subr.mxu0 0.0
    %634 = vmatpush1.msra.mxu0 0.0
    %635 = vmatprep.subr.mxu0 0.0
    %636 = vmatpush1.msra.mxu0 0.0
    %637 = vmatprep.subr.mxu0 0.0
    %638 = vmatpush1.msra.mxu0 0.0
    %639 = vmatprep.subr.mxu0 0.0
    %640 = vmatpush1.msra.mxu0 0.0
    %641 = vmatprep.subr.mxu0 0.0
    %642 = vmatpush1.msra.mxu0 0.0
    %643 = vmatprep.subr.mxu0 0.0
    %644 = vmatpush1.msra.mxu0 0.0
    %645 = vmatprep.subr.mxu0 0.0
    %646 = vmatpush1.msra.mxu0 0.0
    %647 = vmatprep.subr.mxu0 0.0
    %648 = vmatpush1.msra.mxu0 0.0
    %649 = vmatprep.subr.mxu0 0.0
    %650 = vmatpush1.msra.mxu0 0.0
    %651 = vmatprep.mubr.f32.mxu0 0.0
    %652 = vmatmul.mubr.f32.gmra.mrb[0].mxu0 %v569
    %v653 = vpop.f32.mrb[0].mxu0
    %v654 = vadd.f32 %v586, %v653
    %v655 = vpop.f32.mrb[0].mxu0
    %656 = vmatprep.mubr.f32.mxu0 0.0
    %657 = vmatmul.mubr.f32.gmra.mrb[0].mxu0 %v570
    %v658 = vpop.f32.mrb[0].mxu0
    %v659 = vadd.f32 %v586, %v658
    %v660 = vpop.f32.mrb[0].mxu0
    %661 = vmatprep.mubr.f32.mxu0 0.0
    %662 = vmatmul.mubr.f32.gmra.mrb[0].mxu0 %v571
    %v663 = vpop.f32.mrb[0].mxu0
    %v664 = vadd.f32 %v586, %v663
    %v665 = vpop.f32.mrb[0].mxu0
    %666 = vmatprep.mubr.f32.mxu0 0.0
    %667 = vmatmul.mubr.f32.gmra.mrb[0].mxu0 %v572
    %v668 = vpop.f32.mrb[0].mxu0
    %v669 = vadd.f32 %v586, %v668
    %v670 = vpop.f32.mrb[0].mxu0
    %671 = vmatprep.mubr.f32.mxu0 0.0
    %672 = vmatmul.mubr.f32.gmra.mrb[0].mxu0 %v573
    %v673 = vpop.f32.mrb[0].mxu0
    %v674 = vadd.f32 %v586, %v673
    %v675 = vpop.f32.mrb[0].mxu0
    %676 = vmatprep.mubr.f32.mxu0 0.0
    %677 = vmatmul.mubr.f32.gmra.mrb[0].mxu0 %v574
    %v678 = vpop.f32.mrb[0].mxu0
    %v679 = vadd.f32 %v586, %v678
    %v680 = vpop.f32.mrb[0].mxu0
    %681 = vmatprep.mubr.f32.mxu0 0.0
    %682 = vmatmul.mubr.f32.gmra.mrb[0].mxu0 %v575
    %v683 = vpop.f32.mrb[0].mxu0
    %v684 = vadd.f32 %v586, %v683
    %v685 = vpop.f32.mrb[0].mxu0
    %686 = vmatprep.mubr.f32.mxu0 0.0
    %687 = vmatmul.mubr.f32.gmra.mrb[0].mxu0 %v576
    %v688 = vpop.f32.mrb[0].mxu0
    %v689 = vadd.f32 %v586, %v688
    %v690 = vpop.f32.mrb[0].mxu0
    %691 = vmatprep.mubr.f32.mxu0 0.0
    %692 = vmatmul.mubr.f32.gmra.mrb[0].mxu0 %v577
    %v693 = vpop.f32.mrb[0].mxu0
    %v694 = vadd.f32 %v586, %v693
    %v695 = vpop.f32.mrb[0].mxu0
    %696 = vmatprep.mubr.f32.mxu0 0.0
    %697 = vmatmul.mubr.f32.gmra.mrb[0].mxu0 %v578
    %v698 = vpop.f32.mrb[0].mxu0
    %v699 = vadd.f32 %v586, %v698
    %v700 = vpop.f32.mrb[0].mxu0
    %701 = vmatprep.mubr.f32.mxu0 0.0
    %702 = vmatmul.mubr.f32.gmra.mrb[0].mxu0 %v579
    %v703 = vpop.f32.mrb[0].mxu0
    %v704 = vadd.f32 %v586, %v703
    %v705 = vpop.f32.mrb[0].mxu0
    %706 = vmatprep.mubr.f32.mxu0 0.0
    %707 = vmatmul.mubr.f32.gmra.mrb[0].mxu0 %v580
    %v708 = vpop.f32.mrb[0].mxu0
    %v709 = vadd.f32 %v586, %v708
    %v710 = vpop.f32.mrb[0].mxu0
    %711 = vmatprep.mubr.f32.mxu0 0.0
    %712 = vmatmul.mubr.f32.gmra.mrb[0].mxu0 %v581
    %v713 = vpop.f32.mrb[0].mxu0
    %v714 = vadd.f32 %v586, %v713
    %v715 = vpop.f32.mrb[0].mxu0
    %716 = vmatprep.mubr.f32.mxu0 0.0
    %717 = vmatmul.mubr.f32.gmra.mrb[0].mxu0 %v582
    %v718 = vpop.f32.mrb[0].mxu0
    %v719 = vadd.f32 %v586, %v718
    %v720 = vpop.f32.mrb[0].mxu0
    %721 = vmatprep.mubr.f32.mxu0 0.0
    %722 = vmatmul.mubr.f32.gmra.mrb[0].mxu0 %v583
    %v723 = vpop.f32.mrb[0].mxu0
    %v724 = vadd.f32 %v586, %v723
    %v725 = vpop.f32.mrb[0].mxu0
    %726 = vmatprep.mubr.f32.mxu0 0.0
    %727 = vmatmul.mubr.f32.gmra.mrb[0].mxu0 %v584
    %v728 = vpop.f32.mrb[0].mxu0
    %v729 = vadd.f32 %v586, %v728
    %v730 = vpop.f32.mrb[0].mxu0
    %731 = vdwg.mxu0
    %732 = vmax.xlane.f32.xlu0 %v654
    %v733 = vpop.xlane.xlu0 %732
    %734 = vmax.xlane.f32.xlu0 %v659
    %v735 = vpop.xlane.xlu0 %734
    %736 = vmax.xlane.f32.xlu0 %v664
    %v737 = vpop.xlane.xlu0 %736
    %738 = vmax.xlane.f32.xlu0 %v669
    %v739 = vpop.xlane.xlu0 %738
    %740 = vmax.xlane.f32.xlu0 %v674
    %v741 = vpop.xlane.xlu0 %740
    %742 = vmax.xlane.f32.xlu0 %v679
    %v743 = vpop.xlane.xlu0 %742
    %744 = vmax.xlane.f32.xlu0 %v684
    %v745 = vpop.xlane.xlu0 %744
    %746 = vmax.xlane.f32.xlu0 %v689
    %v747 = vpop.xlane.xlu0 %746
    %748 = vmax.xlane.f32.xlu0 %v694
    %v749 = vpop.xlane.xlu0 %748
    %750 = vmax.xlane.f32.xlu0 %v699
    %v751 = vpop.xlane.xlu0 %750
    %752 = vmax.xlane.f32.xlu0 %v704
    %v753 = vpop.xlane.xlu0 %752
    %754 = vmax.xlane.f32.xlu0 %v709
    %v755 = vpop.xlane.xlu0 %754
    %756 = vmax.xlane.f32.xlu0 %v714
    %v757 = vpop.xlane.xlu0 %756
    %758 = vmax.xlane.f32.xlu0 %v719
    %v759 = vpop.xlane.xlu0 %758
    %760 = vmax.xlane.f32.xlu0 %v724
    %v761 = vpop.xlane.xlu0 %760
    %762 = vmax.xlane.f32.xlu0 %v729
    %v763 = vpop.xlane.xlu0 %762
    %v764 = vsub.f32 %v654, %v733
    %v765 = vsub.f32 %v659, %v735
    %v766 = vsub.f32 %v664, %v737
    %v767 = vsub.f32 %v669, %v739
    %v768 = vsub.f32 %v674, %v741
    %v769 = vsub.f32 %v679, %v743
    %v770 = vsub.f32 %v684, %v745
    %v771 = vsub.f32 %v689, %v747
    %v772 = vsub.f32 %v694, %v749
    %v773 = vsub.f32 %v699, %v751
    %v774 = vsub.f32 %v704, %v753
    %v775 = vsub.f32 %v709, %v755
    %v776 = vsub.f32 %v714, %v757
    %v777 = vsub.f32 %v719, %v759
    %v778 = vsub.f32 %v724, %v761
    %v779 = vsub.f32 %v729, %v763
    %v780 = vmul.f32 %v764, 1.442695
    %v781 = vpow.pop %v780
    %v782 = vmul.f32 %v765, 1.442695
    %v783 = vpow.pop %v782
    %v784 = vmul.f32 %v766, 1.442695
    %v785 = vpow.pop %v784
    %v786 = vmul.f32 %v767, 1.442695
    %v787 = vpow.pop %v786
    %v788 = vmul.f32 %v768, 1.442695
    %v789 = vpow.pop %v788
    %v790 = vmul.f32 %v769, 1.442695
    %v791 = vpow.pop %v790
    %v792 = vmul.f32 %v770, 1.442695
    %v793 = vpow.pop %v792
    %v794 = vmul.f32 %v771, 1.442695
    %v795 = vpow.pop %v794
    %v796 = vmul.f32 %v772, 1.442695
    %v797 = vpow.pop %v796
    %v798 = vmul.f32 %v773, 1.442695
    %v799 = vpow.pop %v798
    %v800 = vmul.f32 %v774, 1.442695
    %v801 = vpow.pop %v800
    %v802 = vmul.f32 %v775, 1.442695
    %v803 = vpow.pop %v802
    %v804 = vmul.f32 %v776, 1.442695
    %v805 = vpow.pop %v804
    %v806 = vmul.f32 %v777, 1.442695
    %v807 = vpow.pop %v806
    %v808 = vmul.f32 %v778, 1.442695
    %v809 = vpow.pop %v808
    %v810 = vmul.f32 %v779, 1.442695
    %v811 = vpow.pop %v810
    %812 = vadd.xlane.f32.xlu0 %v781
    %v813 = vpop.xlane.xlu0 %812
    %814 = vadd.xlane.f32.xlu0 %v783
    %v815 = vpop.xlane.xlu0 %814
    %816 = vadd.xlane.f32.xlu0 %v785
    %v817 = vpop.xlane.xlu0 %816
    %818 = vadd.xlane.f32.xlu0 %v787
    %v819 = vpop.xlane.xlu0 %818
    %820 = vadd.xlane.f32.xlu0 %v789
    %v821 = vpop.xlane.xlu0 %820
    %822 = vadd.xlane.f32.xlu0 %v791
    %v823 = vpop.xlane.xlu0 %822
    %824 = vadd.xlane.f32.xlu0 %v793
    %v825 = vpop.xlane.xlu0 %824
    %826 = vadd.xlane.f32.xlu0 %v795
    %v827 = vpop.xlane.xlu0 %826
    %828 = vadd.xlane.f32.xlu0 %v797
    %v829 = vpop.xlane.xlu0 %828
    %830 = vadd.xlane.f32.xlu0 %v799
    %v831 = vpop.xlane.xlu0 %830
    %832 = vadd.xlane.f32.xlu0 %v801
    %v833 = vpop.xlane.xlu0 %832
    %834 = vadd.xlane.f32.xlu0 %v803
    %v835 = vpop.xlane.xlu0 %834
    %836 = vadd.xlane.f32.xlu0 %v805
    %v837 = vpop.xlane.xlu0 %836
    %838 = vadd.xlane.f32.xlu0 %v807
    %v839 = vpop.xlane.xlu0 %838
    %840 = vadd.xlane.f32.xlu0 %v809
    %v841 = vpop.xlane.xlu0 %840
    %842 = vadd.xlane.f32.xlu0 %v811
    %v843 = vpop.xlane.xlu0 %842
    %v844 = vrcp.pop %v813
    %v845 = vrcp.pop %v815
    %v846 = vrcp.pop %v817
    %v847 = vrcp.pop %v819
    %v848 = vrcp.pop %v821
    %v849 = vrcp.pop %v823
    %v850 = vrcp.pop %v825
    %v851 = vrcp.pop %v827
    %v852 = vrcp.pop %v829
    %v853 = vrcp.pop %v831
    %v854 = vrcp.pop %v833
    %v855 = vrcp.pop %v835
    %v856 = vrcp.pop %v837
    %v857 = vrcp.pop %v839
    %v858 = vrcp.pop %v841
    %v859 = vrcp.pop %v843
    %v860 = vmul.f32 %v781, %v844
    %v861 = vmul.f32 %v783, %v845
    %v862 = vmul.f32 %v785, %v846
    %v863 = vmul.f32 %v787, %v847
    %v864 = vmul.f32 %v789, %v848
    %v865 = vmul.f32 %v791, %v849
    %v866 = vmul.f32 %v793, %v850
    %v867 = vmul.f32 %v795, %v851
    %v868 = vmul.f32 %v797, %v852
    %v869 = vmul.f32 %v799, %v853
    %v870 = vmul.f32 %v801, %v854
    %v871 = vmul.f32 %v803, %v855
    %v872 = vmul.f32 %v805, %v856
    %v873 = vmul.f32 %v807, %v857
    %v874 = vmul.f32 %v809, %v858
    %v875 = vmul.f32 %v811, %v859
    %876 = vmatprep.subr.mxu0 0.0
    %877 = vmatpush1.msra.mxu0 %v209
    %878 = vmatprep.subr.mxu0 0.0
    %879 = vmatpush1.msra.mxu0 %v210
    %880 = vmatprep.subr.mxu0 0.0
    %881 = vmatpush1.msra.mxu0 %v211
    %882 = vmatprep.subr.mxu0 0.0
    %883 = vmatpush1.msra.mxu0 %v212
    %884 = vmatprep.subr.mxu0 0.0
    %885 = vmatpush1.msra.mxu0 %v213
    %886 = vmatprep.subr.mxu0 0.0
    %887 = vmatpush1.msra.mxu0 %v214
    %888 = vmatprep.subr.mxu0 0.0
    %889 = vmatpush1.msra.mxu0 %v215
    %890 = vmatprep.subr.mxu0 0.0
    %891 = vmatpush1.msra.mxu0 %v216
    %892 = vmatprep.subr.mxu0 0.0
    %893 = vmatpush1.msra.mxu0 %v217
    %894 = vmatprep.subr.mxu0 0.0
    %895 = vmatpush1.msra.mxu0 %v218
    %896 = vmatprep.subr.mxu0 0.0
    %897 = vmatpush1.msra.mxu0 %v219
    %898 = vmatprep.subr.mxu0 0.0
    %899 = vmatpush1.msra.mxu0 %v220
    %900 = vmatprep.subr.mxu0 0.0
    %901 = vmatpush1.msra.mxu0 %v221
    %902 = vmatprep.subr.mxu0 0.0
    %903 = vmatpush1.msra.mxu0 %v222
    %904 = vmatprep.subr.mxu0 0.0
    %905 = vmatpush1.msra.mxu0 %v223
    %906 = vmatprep.subr.mxu0 0.0
    %907 = vmatpush1.msra.mxu0 %v224
    %908 = vmatprep.subr.mxu0 0.0
    %909 = vmatpush1.msra.mxu0 0.0
    %910 = vmatprep.subr.mxu0 0.0
    %911 = vmatpush1.msra.mxu0 0.0
    %912 = vmatprep.subr.mxu0 0.0
    %913 = vmatpush1.msra.mxu0 0.0
    %914 = vmatprep.subr.mxu0 0.0
    %915 = vmatpush1.msra.mxu0 0.0
    %916 = vmatprep.subr.mxu0 0.0
    %917 = vmatpush1.msra.mxu0 0.0
    %918 = vmatprep.subr.mxu0 0.0
    %919 = vmatpush1.msra.mxu0 0.0
    %920 = vmatprep.subr.mxu0 0.0
    %921 = vmatpush1.msra.mxu0 0.0
    %922 = vmatprep.subr.mxu0 0.0
    %923 = vmatpush1.msra.mxu0 0.0
    %924 = vmatprep.subr.mxu0 0.0
    %925 = vmatpush1.msra.mxu0 0.0
    %926 = vmatprep.subr.mxu0 0.0
    %927 = vmatpush1.msra.mxu0 0.0
    %928 = vmatprep.subr.mxu0 0.0
    %929 = vmatpush1.msra.mxu0 0.0
    %930 = vmatprep.subr.mxu0 0.0
    %931 = vmatpush1.msra.mxu0 0.0
    %932 = vmatprep.subr.mxu0 0.0
    %933 = vmatpush1.msra.mxu0 0.0
    %934 = vmatprep.subr.mxu0 0.0
    %935 = vmatpush1.msra.mxu0 0.0
    %936 = vmatprep.subr.mxu0 0.0
    %937 = vmatpush1.msra.mxu0 0.0
    %938 = vmatprep.subr.mxu0 0.0
    %939 = vmatpush1.msra.mxu0 0.0
    %940 = vmatprep.mubr.f32.mxu0 0.0
    %941 = vmatmul.mubr.f32.gmra.mrb[0].mxu0 %v860
    %v942 = vpop.f32.mrb[0].mxu0
    %v943 = vadd.f32 0.0, %v942
    %v944 = vpop.f32.mrb[0].mxu0
    %945 = vmatprep.mubr.f32.mxu0 0.0
    %946 = vmatmul.mubr.f32.gmra.mrb[0].mxu0 %v861
    %v947 = vpop.f32.mrb[0].mxu0
    %v948 = vadd.f32 0.0, %v947
    %v949 = vpop.f32.mrb[0].mxu0
    %950 = vmatprep.mubr.f32.mxu0 0.0
    %951 = vmatmul.mubr.f32.gmra.mrb[0].mxu0 %v862
    %v952 = vpop.f32.mrb[0].mxu0
    %v953 = vadd.f32 0.0, %v952
    %v954 = vpop.f32.mrb[0].mxu0
    %955 = vmatprep.mubr.f32.mxu0 0.0
    %956 = vmatmul.mubr.f32.gmra.mrb[0].mxu0 %v863
    %v957 = vpop.f32.mrb[0].mxu0
    %v958 = vadd.f32 0.0, %v957
    %v959 = vpop.f32.mrb[0].mxu0
    %960 = vmatprep.mubr.f32.mxu0 0.0
    %961 = vmatmul.mubr.f32.gmra.mrb[0].mxu0 %v864
    %v962 = vpop.f32.mrb[0].mxu0
    %v963 = vadd.f32 0.0, %v962
    %v964 = vpop.f32.mrb[0].mxu0
    %965 = vmatprep.mubr.f32.mxu0 0.0
    %966 = vmatmul.mubr.f32.gmra.mrb[0].mxu0 %v865
    %v967 = vpop.f32.mrb[0].mxu0
    %v968 = vadd.f32 0.0, %v967
    %v969 = vpop.f32.mrb[0].mxu0
    %970 = vmatprep.mubr.f32.mxu0 0.0
    %971 = vmatmul.mubr.f32.gmra.mrb[0].mxu0 %v866
    %v972 = vpop.f32.mrb[0].mxu0
    %v973 = vadd.f32 0.0, %v972
    %v974 = vpop.f32.mrb[0].mxu0
    %975 = vmatprep.mubr.f32.mxu0 0.0
    %976 = vmatmul.mubr.f32.gmra.mrb[0].mxu0 %v867
    %v977 = vpop.f32.mrb[0].mxu0
    %v978 = vadd.f32 0.0, %v977
    %v979 = vpop.f32.mrb[0].mxu0
    %980 = vmatprep.mubr.f32.mxu0 0.0
    %981 = vmatmul.mubr.f32.gmra.mrb[0].mxu0 %v868
    %v982 = vpop.f32.mrb[0].mxu0
    %v983 = vadd.f32 0.0, %v982
    %v984 = vpop.f32.mrb[0].mxu0
    %985 = vmatprep.mubr.f32.mxu0 0.0
    %986 = vmatmul.mubr.f32.gmra.mrb[0].mxu0 %v869
    %v987 = vpop.f32.mrb[0].mxu0
    %v988 = vadd.f32 0.0, %v987
    %v989 = vpop.f32.mrb[0].mxu0
    %990 = vmatprep.mubr.f32.mxu0 0.0
    %991 = vmatmul.mubr.f32.gmra.mrb[0].mxu0 %v870
    %v992 = vpop.f32.mrb[0].mxu0
    %v993 = vadd.f32 0.0, %v992
    %v994 = vpop.f32.mrb[0].mxu0
    %995 = vmatprep.mubr.f32.mxu0 0.0
    %996 = vmatmul.mubr.f32.gmra.mrb[0].mxu0 %v871
    %v997 = vpop.f32.mrb[0].mxu0
    %v998 = vadd.f32 0.0, %v997
    %v999 = vpop.f32.mrb[0].mxu0
    %1000 = vmatprep.mubr.f32.mxu0 0.0
    %1001 = vmatmul.mubr.f32.gmra.mrb[0].mxu0 %v872
    %v1002 = vpop.f32.mrb[0].mxu0
    %v1003 = vadd.f32 0.0, %v1002
    %v1004 = vpop.f32.mrb[0].mxu0
    %1005 = vmatprep.mubr.f32.mxu0 0.0
    %1006 = vmatmul.mubr.f32.gmra.mrb[0].mxu0 %v873
    %v1007 = vpop.f32.mrb[0].mxu0
    %v1008 = vadd.f32 0.0, %v1007
    %v1009 = vpop.f32.mrb[0].mxu0
    %1010 = vmatprep.mubr.f32.mxu0 0.0
    %1011 = vmatmul.mubr.f32.gmra.mrb[0].mxu0 %v874
    %v1012 = vpop.f32.mrb[0].mxu0
    %v1013 = vadd.f32 0.0, %v1012
    %v1014 = vpop.f32.mrb[0].mxu0
    %1015 = vmatprep.mubr.f32.mxu0 0.0
    %1016 = vmatmul.mubr.f32.gmra.mrb[0].mxu0 %v875
    %v1017 = vpop.f32.mrb[0].mxu0
    %v1018 = vadd.f32 0.0, %v1017
    %v1019 = vpop.f32.mrb[0].mxu0
    %1020 = vdwg.mxu0
    %v1021 = vpack.c.bf16 %v948, %v943
    %v1022 = vpack.c.bf16 %v958, %v953
    %v1023 = vpack.c.bf16 %v968, %v963
    %v1024 = vpack.c.bf16 %v978, %v973
    %v1025 = vpack.c.bf16 %v988, %v983
    %v1026 = vpack.c.bf16 %v998, %v993
    %v1027 = vpack.c.bf16 %v1008, %v1003
    %v1028 = vpack.c.bf16 %v1018, %v1013
    %v1037 = vunpack.c.l.b16 %v1021
    %v1038 = vunpack.c.h.b16 %v1021
    %v1039 = vunpack.c.l.b16 %v1022
    %v1040 = vunpack.c.h.b16 %v1022
    %v1041 = vunpack.c.l.b16 %v1023
    %v1042 = vunpack.c.h.b16 %v1023
    %v1043 = vunpack.c.l.b16 %v1024
    %v1044 = vunpack.c.h.b16 %v1024
    %v1045 = vunpack.c.l.b16 %v1025
    %v1046 = vunpack.c.h.b16 %v1025
    %v1047 = vunpack.c.l.b16 %v1026
    %v1048 = vunpack.c.h.b16 %v1026
    %v1049 = vunpack.c.l.b16 %v1027
    %v1050 = vunpack.c.h.b16 %v1027
    %v1051 = vunpack.c.l.b16 %v1028
    %v1052 = vunpack.c.h.b16 %v1028
    %v1053 = vpack.c.b16 %v1037, %v1037
    %v1054 = vpack.c.b16 %v1038, %v1038
    %v1055 = vpack.c.b16 %v1039, %v1039
    %v1056 = vpack.c.b16 %v1040, %v1040
    %v1057 = vpack.c.b16 %v1041, %v1041
    %v1058 = vpack.c.b16 %v1042, %v1042
    %v1059 = vpack.c.b16 %v1043, %v1043
    %v1060 = vpack.c.b16 %v1044, %v1044
    %v1061 = vpack.c.b16 %v1045, %v1045
    %v1062 = vpack.c.b16 %v1046, %v1046
    %v1063 = vpack.c.b16 %v1047, %v1047
    %v1064 = vpack.c.b16 %v1048, %v1048
    %v1065 = vpack.c.b16 %v1049, %v1049
    %v1066 = vpack.c.b16 %v1050, %v1050
    %v1067 = vpack.c.b16 %v1051, %v1051
    %v1068 = vpack.c.b16 %v1052, %v1052
    %v1085 = vmul.bf16 %v177, %v1053
    %v1086 = vmul.bf16 %v178, %v1054
    %v1087 = vmul.bf16 %v179, %v1055
    %v1088 = vmul.bf16 %v180, %v1056
    %v1089 = vmul.bf16 %v181, %v1057
    %v1090 = vmul.bf16 %v182, %v1058
    %v1091 = vmul.bf16 %v183, %v1059
    %v1092 = vmul.bf16 %v184, %v1060
    %v1093 = vmul.bf16 %v185, %v1061
    %v1094 = vmul.bf16 %v186, %v1062
    %v1095 = vmul.bf16 %v187, %v1063
    %v1096 = vmul.bf16 %v188, %v1064
    %v1097 = vmul.bf16 %v189, %v1065
    %v1098 = vmul.bf16 %v190, %v1066
    %v1099 = vmul.bf16 %v191, %v1067
    %v1100 = vmul.bf16 %v192, %v1068
    %v1101 = vld [vmem:[#allocation8] sm:$0xff]
    %v1102 = vld [vmem:[#allocation8 + $0x8] sm:$0xff]
    %v1103 = vld [vmem:[#allocation8 + $0x10] sm:$0xff]
    %v1104 = vld [vmem:[#allocation8 + $0x18] sm:$0xff]
    %v1105 = vld [vmem:[#allocation8 + $0x20] sm:$0xff]
    %v1106 = vld [vmem:[#allocation8 + $0x28] sm:$0xff]
    %v1107 = vld [vmem:[#allocation8 + $0x30] sm:$0xff]
    %v1108 = vld [vmem:[#allocation8 + $0x38] sm:$0xff]
    %v1109 = vld [vmem:[#allocation8 + $0x40] sm:$0xff]
    %v1110 = vld [vmem:[#allocation8 + $0x48] sm:$0xff]
    %v1111 = vld [vmem:[#allocation8 + $0x50] sm:$0xff]
    %v1112 = vld [vmem:[#allocation8 + $0x58] sm:$0xff]
    %v1113 = vld [vmem:[#allocation8 + $0x60] sm:$0xff]
    %v1114 = vld [vmem:[#allocation8 + $0x68] sm:$0xff]
    %v1115 = vld [vmem:[#allocation8 + $0x70] sm:$0xff]
    %v1116 = vld [vmem:[#allocation8 + $0x78] sm:$0xff]
    %v1133 = vunpack.c.l.b16 %v1085
    %v1134 = vunpack.c.l.b16 %v1086
    %v1135 = vunpack.c.l.b16 %v1087
    %v1136 = vunpack.c.l.b16 %v1088
    %v1137 = vunpack.c.l.b16 %v1089
    %v1138 = vunpack.c.l.b16 %v1090
    %v1139 = vunpack.c.l.b16 %v1091
    %v1140 = vunpack.c.l.b16 %v1092
    %v1141 = vunpack.c.l.b16 %v1093
    %v1142 = vunpack.c.l.b16 %v1094
    %v1143 = vunpack.c.l.b16 %v1095
    %v1144 = vunpack.c.l.b16 %v1096
    %v1145 = vunpack.c.l.b16 %v1097
    %v1146 = vunpack.c.l.b16 %v1098
    %v1147 = vunpack.c.l.b16 %v1099
    %v1148 = vunpack.c.l.b16 %v1100
    %v1149 = vpack.c.b16 %v1134, %v1133
    %v1150 = vpack.c.b16 %v1136, %v1135
    %v1151 = vpack.c.b16 %v1138, %v1137
    %v1152 = vpack.c.b16 %v1140, %v1139
    %v1153 = vpack.c.b16 %v1142, %v1141
    %v1154 = vpack.c.b16 %v1144, %v1143
    %v1155 = vpack.c.b16 %v1146, %v1145
    %v1156 = vpack.c.b16 %v1148, %v1147
    %1165 = vmatprep.subr.bf16.mxu0 0
    %1166 = vmatpush1.bf16.msra.mxu0 %v1149
    %1167 = vmatprep.subr.bf16.mxu0 0
    %1168 = vmatpush1.bf16.msra.mxu0 %v1150
    %1169 = vmatprep.subr.bf16.mxu0 0
    %1170 = vmatpush1.bf16.msra.mxu0 %v1151
    %1171 = vmatprep.subr.bf16.mxu0 0
    %1172 = vmatpush1.bf16.msra.mxu0 %v1152
    %1173 = vmatprep.subr.bf16.mxu0 0
    %1174 = vmatpush1.bf16.msra.mxu0 %v1153
    %1175 = vmatprep.subr.bf16.mxu0 0
    %1176 = vmatpush1.bf16.msra.mxu0 %v1154
    %1177 = vmatprep.subr.bf16.mxu0 0
    %1178 = vmatpush1.bf16.msra.mxu0 %v1155
    %1179 = vmatprep.subr.bf16.mxu0 0
    %1180 = vmatpush1.bf16.msra.mxu0 %v1156
    %1181 = vmatprep.subr.bf16.mxu0 0
    %1182 = vmatpush1.bf16.msra.mxu0 0
    %1183 = vmatprep.subr.bf16.mxu0 0
    %1184 = vmatpush1.bf16.msra.mxu0 0
    %1185 = vmatprep.subr.bf16.mxu0 0
    %1186 = vmatpush1.bf16.msra.mxu0 0
    %1187 = vmatprep.subr.bf16.mxu0 0
    %1188 = vmatpush1.bf16.msra.mxu0 0
    %1189 = vmatprep.subr.bf16.mxu0 0
    %1190 = vmatpush1.bf16.msra.mxu0 0
    %1191 = vmatprep.subr.bf16.mxu0 0
    %1192 = vmatpush1.bf16.msra.mxu0 0
    %1193 = vmatprep.subr.bf16.mxu0 0
    %1194 = vmatpush1.bf16.msra.mxu0 0
    %1195 = vmatprep.subr.bf16.mxu0 0
    %1196 = vmatpush1.bf16.msra.mxu0 0
    %1197 = vmatprep.mubr.bf16.mxu0 0
    %1198 = vmatmul.mubr.bf16.gmra.mrb[0].mxu0 %v400
    %v1199 = vpop.f32.mrb[0].mxu0
    %v1200 = vadd.f32 0.0, %v1199
    %v1201 = vpop.f32.mrb[0].mxu0
    %v1202 = vpop.f32.mrb[0].mxu0
    %v1203 = vadd.f32 0.0, %v1202
    %v1204 = vpop.f32.mrb[0].mxu0
    %1205 = vmatprep.mubr.bf16.mxu0 0
    %1206 = vmatmul.mubr.bf16.gmra.mrb[0].mxu0 %v401
    %v1207 = vpop.f32.mrb[0].mxu0
    %v1208 = vadd.f32 0.0, %v1207
    %v1209 = vpop.f32.mrb[0].mxu0
    %v1210 = vpop.f32.mrb[0].mxu0
    %v1211 = vadd.f32 0.0, %v1210
    %v1212 = vpop.f32.mrb[0].mxu0
    %1213 = vmatprep.mubr.bf16.mxu0 0
    %1214 = vmatmul.mubr.bf16.gmra.mrb[0].mxu0 %v402
    %v1215 = vpop.f32.mrb[0].mxu0
    %v1216 = vadd.f32 0.0, %v1215
    %v1217 = vpop.f32.mrb[0].mxu0
    %v1218 = vpop.f32.mrb[0].mxu0
    %v1219 = vadd.f32 0.0, %v1218
    %v1220 = vpop.f32.mrb[0].mxu0
    %1221 = vmatprep.mubr.bf16.mxu0 0
    %1222 = vmatmul.mubr.bf16.gmra.mrb[0].mxu0 %v403
    %v1223 = vpop.f32.mrb[0].mxu0
    %v1224 = vadd.f32 0.0, %v1223
    %v1225 = vpop.f32.mrb[0].mxu0
    %v1226 = vpop.f32.mrb[0].mxu0
    %v1227 = vadd.f32 0.0, %v1226
    %v1228 = vpop.f32.mrb[0].mxu0
    %1229 = vmatprep.mubr.bf16.mxu0 0
    %1230 = vmatmul.mubr.bf16.gmra.mrb[0].mxu0 %v404
    %v1231 = vpop.f32.mrb[0].mxu0
    %v1232 = vadd.f32 0.0, %v1231
    %v1233 = vpop.f32.mrb[0].mxu0
    %v1234 = vpop.f32.mrb[0].mxu0
    %v1235 = vadd.f32 0.0, %v1234
    %v1236 = vpop.f32.mrb[0].mxu0
    %1237 = vmatprep.mubr.bf16.mxu0 0
    %1238 = vmatmul.mubr.bf16.gmra.mrb[0].mxu0 %v405
    %v1239 = vpop.f32.mrb[0].mxu0
    %v1240 = vadd.f32 0.0, %v1239
    %v1241 = vpop.f32.mrb[0].mxu0
    %v1242 = vpop.f32.mrb[0].mxu0
    %v1243 = vadd.f32 0.0, %v1242
    %v1244 = vpop.f32.mrb[0].mxu0
    %1245 = vmatprep.mubr.bf16.mxu0 0
    %1246 = vmatmul.mubr.bf16.gmra.mrb[0].mxu0 %v406
    %v1247 = vpop.f32.mrb[0].mxu0
    %v1248 = vadd.f32 0.0, %v1247
    %v1249 = vpop.f32.mrb[0].mxu0
    %v1250 = vpop.f32.mrb[0].mxu0
    %v1251 = vadd.f32 0.0, %v1250
    %v1252 = vpop.f32.mrb[0].mxu0
    %1253 = vmatprep.mubr.bf16.mxu0 0
    %1254 = vmatmul.mubr.bf16.gmra.mrb[0].mxu0 %v407
    %v1255 = vpop.f32.mrb[0].mxu0
    %v1256 = vadd.f32 0.0, %v1255
    %v1257 = vpop.f32.mrb[0].mxu0
    %v1258 = vpop.f32.mrb[0].mxu0
    %v1259 = vadd.f32 0.0, %v1258
    %v1260 = vpop.f32.mrb[0].mxu0
    %1261 = vdwg.mxu0
    %v1262 = vadd.f32 %v1101, %v1200
    %v1263 = vadd.f32 %v1102, %v1203
    %v1264 = vadd.f32 %v1103, %v1208
    %v1265 = vadd.f32 %v1104, %v1211
    %v1266 = vadd.f32 %v1105, %v1216
    %v1267 = vadd.f32 %v1106, %v1219
    %v1268 = vadd.f32 %v1107, %v1224
    %v1269 = vadd.f32 %v1108, %v1227
    %v1270 = vadd.f32 %v1109, %v1232
    %v1271 = vadd.f32 %v1110, %v1235
    %v1272 = vadd.f32 %v1111, %v1240
    %v1273 = vadd.f32 %v1112, %v1243
    %v1274 = vadd.f32 %v1113, %v1248
    %v1275 = vadd.f32 %v1114, %v1251
    %v1276 = vadd.f32 %v1115, %v1256
    %v1277 = vadd.f32 %v1116, %v1259
    %1278 = vst [vmem:[#allocation8] sm:$0xff] %v1262
    %1279 = vst [vmem:[#allocation8 + $0x8] sm:$0xff] %v1263
    %1280 = vst [vmem:[#allocation8 + $0x10] sm:$0xff] %v1264
    %1281 = vst [vmem:[#allocation8 + $0x18] sm:$0xff] %v1265
    %1282 = vst [vmem:[#allocation8 + $0x20] sm:$0xff] %v1266
    %1283 = vst [vmem:[#allocation8 + $0x28] sm:$0xff] %v1267
    %1284 = vst [vmem:[#allocation8 + $0x30] sm:$0xff] %v1268
    %1285 = vst [vmem:[#allocation8 + $0x38] sm:$0xff] %v1269
    %1286 = vst [vmem:[#allocation8 + $0x40] sm:$0xff] %v1270
    %1287 = vst [vmem:[#allocation8 + $0x48] sm:$0xff] %v1271
    %1288 = vst [vmem:[#allocation8 + $0x50] sm:$0xff] %v1272
    %1289 = vst [vmem:[#allocation8 + $0x58] sm:$0xff] %v1273
    %1290 = vst [vmem:[#allocation8 + $0x60] sm:$0xff] %v1274
    %1291 = vst [vmem:[#allocation8 + $0x68] sm:$0xff] %v1275
    %1292 = vst [vmem:[#allocation8 + $0x70] sm:$0xff] %v1276
    %1293 = vst [vmem:[#allocation8 + $0x78] sm:$0xff] %v1277
    %vm1294 = vcmask 31744
    %1295 = vst.msk [vmem:[%s120] sm:$0xff] %vm1294, %v860
    %1296 = vst.msk [vmem:[%s120 + $0x8] sm:$0xff] %vm1294, %v861
    %1297 = vst.msk [vmem:[%s120 + $0x10] sm:$0xff] %vm1294, %v862
    %1298 = vst.msk [vmem:[%s120 + $0x18] sm:$0xff] %vm1294, %v863
    %1299 = vst.msk [vmem:[%s120 + $0x20] sm:$0xff] %vm1294, %v864
    %1300 = vst.msk [vmem:[%s120 + $0x28] sm:$0xff] %vm1294, %v865
    %1301 = vst.msk [vmem:[%s120 + $0x30] sm:$0xff] %vm1294, %v866
    %1302 = vst.msk [vmem:[%s120 + $0x38] sm:$0xff] %vm1294, %v867
    %1303 = vst.msk [vmem:[%s120 + $0x40] sm:$0xff] %vm1294, %v868
    %1304 = vst.msk [vmem:[%s120 + $0x48] sm:$0xff] %vm1294, %v869
    %1305 = vst.msk [vmem:[%s120 + $0x50] sm:$0xff] %vm1294, %v870
    %1306 = vst.msk [vmem:[%s120 + $0x58] sm:$0xff] %vm1294, %v871
    %1307 = vst.msk [vmem:[%s120 + $0x60] sm:$0xff] %vm1294, %v872
    %1308 = vst.msk [vmem:[%s120 + $0x68] sm:$0xff] %vm1294, %v873
    %1309 = vst.msk [vmem:[%s120 + $0x70] sm:$0xff] %vm1294, %v874
    %1310 = vst.msk [vmem:[%s120 + $0x78] sm:$0xff] %vm1294, %v875
    %s1311 = sadd.s32 0, 0
    %s1312 = smul.u32 16, %s1311
    %p1313 = scmp.lt.s32.totalorder %s1312, 15
    %s1314 = scalar_select %p1313, %s1312, 15
    %s1315 = smul.addr %s1314, 8
    %s1316 = scalar_lea.vmem %s7, %s1315
    // Predicated region
    $region42: #{tpu_custom_call.1} parent=1 // pred_check
      _
    $region43: #{tpu_custom_call.1} parent=1 // pred_check_branch
      %1318 = sbr.rel (0) target = $region45
    $region44: #{tpu_custom_call.1} parent=1 // pred_region
      %s1320 = ssub.s32 2048, 2048
      %1321 = vsyncadd [#allocation4], %s1320
      %s1322 = sshll.u32 [#allocation8], 4
      %s1323 = int_to_ptr.vmem [resolvable:$true] %s1322
      %1328 = dma.vmem_to_hbm [thread:$0]  %s1323, 2048, %s6, [#allocation4], 128, 128, 8
    $region45: #{tpu_custom_call.1} parent=1 // pred_fallthru
      _
    // Predicated region
    $region46: #{tpu_custom_call.1} parent=1 // pred_check
      _
    $region47: #{tpu_custom_call.1} parent=1 // pred_check_branch
      %1330 = sbr.rel (0) target = $region49
    $region48: #{tpu_custom_call.1} parent=1 // pred_region
      %s1331 = sadd.s32 0, 0
      %s1332 = smul.u32 16, %s1331
    $region49: #{tpu_custom_call.1} parent=1 // pred_fallthru
      _
    // Predicated region
    $region50: #{tpu_custom_call.1} parent=1 // pred_check
      _
    $region51: #{tpu_custom_call.1} parent=1 // pred_check_branch
      %1334 = sbr.rel (0) target = $region53
    $region52: #{tpu_custom_call.1} parent=1 // pred_region
      %1335 = dma.done [#allocation4], 2048
    $region53: #{tpu_custom_call.1} parent=1 // pred_fallthru
      _
    // Predicated region
    $region54: #{tpu_custom_call.1} parent=1 // pred_check
      _
    $region55: #{tpu_custom_call.1} parent=1 // pred_check_branch
      %1337 = sbr.rel (0) target = $region57
    $region56: #{tpu_custom_call.1} parent=1 // pred_region
      %s1338 = sadd.s32 0, 0
      %s1339 = smul.u32 16, %s1338
      %p1340 = scmp.lt.s32.totalorder %s1339, 15
      %s1341 = scalar_select %p1340, %s1339, 15
      %s1342 = smul.addr %s1341, 8
      %s1343 = scalar_lea.vmem %s7, %s1342
    $region57: #{tpu_custom_call.1} parent=1 // pred_fallthru
      _
    %1344 = vsyncpa [#allocation3], 1
    %1345 = vsyncpa [#allocation6], 1
    %1346 = vsyncpa [#allocation4], 1

</llo_original>
